<compile_context>
chip_gen: v6e
topology: v6e:2x2x1
jax: 0.10.0
libtpu: 0.0.40
codegen_flags: <defaults>
</compile_context>

<pallas_src>
import functools
import math

import jax
import jax.numpy as jnp
from jax import lax
from jax.experimental import pallas as pl
from jax.experimental.pallas import tpu as pltpu


# --------------------------------------------------------------------------
# Fused kernel: q/kv projection + multi-head attention + output projection
# --------------------------------------------------------------------------
def _fused_attention_kernel(xq_ref, xkv_ref, wq_ref, wk_ref, wv_ref,
                            wp_ref, b_ref, o_ref, *, num_heads, scale):
    # xq_ref : (1, TQ, C)   query rows of this grid step
    # xkv_ref: (1, N,  C)   full sequence (key/value source), VMEM-resident
    # wq/wk/wv/wp_ref: (C, C)   b_ref: (1, C)   o_ref: (1, TQ, C)
    C = wq_ref.shape[0]
    hd = C // num_heads
    dt = xq_ref.dtype                      # MXU operand dtype (bf16 if x is bf16)

    xq = xq_ref[0]                         # (TQ, C)
    xkv = xkv_ref[0]                       # (N,  C)

    # ---- fused projections: lane-dense (.., C) @ (C, C), f32 accumulation ----
    q = jnp.dot(xq, wq_ref[...], preferred_element_type=jnp.float32) * scale
    k = jnp.dot(xkv, wk_ref[...], preferred_element_type=jnp.float32)
    v = jnp.dot(xkv, wv_ref[...], preferred_element_type=jnp.float32)
    q = q.astype(dt)
    k = k.astype(dt)
    v = v.astype(dt)

    wp = wp_ref[...]                       # (C, C), loaded once (hoisted)

    TQ = xq.shape[0]
    y = jnp.zeros((TQ, C), jnp.float32)    # projected-output accumulator

    # ---- per-head attention; head-merge + Wproj folded into the loop ----
    for h in range(num_heads):
        sl = slice(h * hd, (h + 1) * hd)
        qh, kh, vh = q[:, sl], k[:, sl], v[:, sl]          # (TQ|N, hd)

        # scores = (q * scale) @ k^T, f32 MXU accumulation
        s = lax.dot_general(qh, kh, (((1,), (1,)), ((), ())),
                            preferred_element_type=jnp.float32)   # (TQ, N)

        # numerically-stable softmax, normalization deferred to the output
        m = jnp.max(s, axis=-1, keepdims=True)
        p = jnp.exp(s - m)
        l = jnp.sum(p, axis=-1, keepdims=True)              # (TQ, 1)

        o = jnp.dot(p.astype(dt), vh,
                    preferred_element_type=jnp.float32)     # (TQ, hd) unnormalized
        o = o * pl.reciprocal(l, approx=True)                # EUP reciprocal

        # merged @ Wproj  ==  sum_h  o_h @ Wproj[h*hd:(h+1)*hd, :]
        y = y + jnp.dot(o.astype(dt), wp[sl, :],
                        preferred_element_type=jnp.float32)  # (TQ, C)

    y = y + b_ref[...].astype(jnp.float32)
    o_ref[0] = y.astype(o_ref.dtype)


# --------------------------------------------------------------------------
# Wrapper
# --------------------------------------------------------------------------
def attention_forward(x, wq, wkv, wproj, bproj, *, num_heads, sr_ratio=1):
    """x: (B, N, C). Weights stored as (in, out): wq (C,C), wkv (C,2C),
    wproj (C,C), bproj (C,). Returns (B, N, C)."""
    B, N, C = x.shape
    assert C % num_heads == 0
    assert sr_ratio == 1, "only sr_ratio == 1 is implemented"
    hd = C // num_heads
    scale = float(hd) ** -0.5

    # Split Wkv into Wk / Wv (cheap slices; avoids concatenating a (C,3C) array).
    wk = wkv[:, :C]
    wv = wkv[:, C:]
    b2 = bproj.reshape(1, C)

    # Query-tile size: biggest standard tile that divides N (full N if small).
    TQ = N
    for cand in (512, 256, 128):
        if N % cand == 0:
            TQ = cand
            break

    kernel = functools.partial(
        _fused_attention_kernel, num_heads=num_heads, scale=scale)

    return pl.pallas_call(
        kernel,
        out_shape=jax.ShapeDtypeStruct((B, N, C), x.dtype),
        grid_spec=pltpu.PrefetchScalarGridSpec(
            num_scalar_prefetch=0,
            grid=(B, N // TQ),
            in_specs=[
                # query rows of this tile
                pl.BlockSpec((1, TQ, C), lambda b, i: (b, i, 0)),
                # full sequence for k/v (index map ignores i -> stays resident)
                pl.BlockSpec((1, N, C), lambda b, i: (b, 0, 0)),
                pl.BlockSpec((C, C), lambda b, i: (0, 0)),      # Wq
                pl.BlockSpec((C, C), lambda b, i: (0, 0)),      # Wk
                pl.BlockSpec((C, C), lambda b, i: (0, 0)),      # Wv
                pl.BlockSpec((C, C), lambda b, i: (0, 0)),      # Wproj
                pl.BlockSpec((1, C), lambda b, i: (0, 0)),      # bproj
            ],
            out_specs=pl.BlockSpec((1, TQ, C), lambda b, i: (b, i, 0)),
        ),
        compiler_params=pltpu.CompilerParams(
            dimension_semantics=("parallel", "parallel")),
    )(x, x, wq, wk, wv, wproj, b2)


# --------------------------------------------------------------------------
# Plain-JAX reference (mirrors the PyTorch forward, sr_ratio=1)
# --------------------------------------------------------------------------
def _reference(x, wq, wkv, wproj, bproj, *, num_heads):
    B, N, C = x.shape
    hd = C // num_heads
    scale = float(hd) ** -0.5
    q = jnp.transpose((x @ wq).reshape(B, N, num_heads, hd), (0, 2, 1, 3))
    kv = jnp.transpose((x @ wkv).reshape(B, N, 2, num_heads, hd),
                       (2, 0, 3, 1, 4))
    k, v = kv[0], kv[1]
    attn = jnp.einsum("bhqd,bhkd->bhqk", q, k) * scale
    attn = jax.nn.softmax(attn, axis=-1)
    o = jnp.einsum("bhqk,bhkd->bhqd", attn, v)
    o = jnp.transpose(o, (0, 2, 1, 3)).reshape(B, N, C)
    return o @ wproj + bproj[None, None, :]


if __name__ == "__main__":
    B, C, num_heads = 2, 64, 8
    Hs = Ws = 8
    N = Hs * Ws                      # sequence length = H*W = 64

    key = jax.random.PRNGKey(0)
    kx, kq, kkv, kp, kb = jax.random.split(key, 5)

    x = jax.random.normal(kx, (B, N, C), dtype=jnp.float32)

    # Linear weights stored as (in, out) so kernels compute x @ W.
    bound = 1.0 / math.sqrt(C)
    wq = jax.random.uniform(kq, (C, C), jnp.float32, -bound, bound)
    wkv = jax.random.uniform(kkv, (C, 2 * C), jnp.float32, -bound, bound)
    wproj = jax.random.uniform(kp, (C, C), jnp.float32, -bound, bound)
    bproj = jax.random.uniform(kb, (C,), jnp.float32, -bound, bound)

    y = attention_forward(x, wq, wkv, wproj, bproj, num_heads=num_heads)
    y = jax.block_until_ready(y)

    y_ref = _reference(x, wq, wkv, wproj, bproj, num_heads=num_heads)
    assert y.shape == (B, N, C)
    err = float(jnp.max(jnp.abs(y - y_ref)))
    # 2e-3 tolerance: approx (EUP) reciprocal used for the deferred softmax
    # normalization has a small relative error vs. exact divide.
    assert jnp.allclose(y, y_ref, atol=2e-3, rtol=2e-3), f"max abs err {err}"

    print("KERNEL_OK")
</pallas_src>

<mosaic_0001>
module attributes {stable_mosaic.version = 11 : i64} {
  func.func @_fused_attention_kernel(%arg0: i32, %arg1: i32, %arg2: memref<1x64x64xf32, #tpu.memory_space<vmem>>, %arg3: memref<1x64x64xf32, #tpu.memory_space<vmem>>, %arg4: memref<64x64xf32, #tpu.memory_space<vmem>>, %arg5: memref<64x64xf32, #tpu.memory_space<vmem>>, %arg6: memref<64x64xf32, #tpu.memory_space<vmem>>, %arg7: memref<64x64xf32, #tpu.memory_space<vmem>>, %arg8: memref<1x64xf32, #tpu.memory_space<vmem>>, %arg9: memref<1x64x64xf32, #tpu.memory_space<vmem>>) attributes {dimension_semantics = [#tpu.dimension_semantics<parallel>, #tpu.dimension_semantics<parallel>], iteration_bounds = array<i64: 2, 1>, scalar_prefetch = 0 : i64, scratch_operands = 0 : i64, tpu.core_type = #tpu.core_type<tc>, window_params = [{transform_indices = @transform_0, window_bounds = array<i64: 1, 64, 64>}, {transform_indices = @transform_1, window_bounds = array<i64: 1, 64, 64>}, {pipeline_mode = #tpu.pipeline_mode<synchronous>, transform_indices = @transform_2, window_bounds = array<i64: 64, 64>}, {pipeline_mode = #tpu.pipeline_mode<synchronous>, transform_indices = @transform_3, window_bounds = array<i64: 64, 64>}, {pipeline_mode = #tpu.pipeline_mode<synchronous>, transform_indices = @transform_4, window_bounds = array<i64: 64, 64>}, {pipeline_mode = #tpu.pipeline_mode<synchronous>, transform_indices = @transform_5, window_bounds = array<i64: 64, 64>}, {pipeline_mode = #tpu.pipeline_mode<synchronous>, transform_indices = @transform_6, window_bounds = array<i64: 1, 64>}, {transform_indices = @transform_7, window_bounds = array<i64: 1, 64, 64>}]} {
    %c0 = arith.constant 0 : index
    %c0_0 = arith.constant 0 : index
    %c0_1 = arith.constant 0 : index
    %0 = vector.load %arg2[%c0, %c0_0, %c0_1] : memref<1x64x64xf32, #tpu.memory_space<vmem>>, vector<1x64x64xf32>
    %1 = vector.shape_cast %0 : vector<1x64x64xf32> to vector<64x64xf32>
    %c0_2 = arith.constant 0 : index
    %c0_3 = arith.constant 0 : index
    %c0_4 = arith.constant 0 : index
    %2 = vector.load %arg3[%c0_2, %c0_3, %c0_4] : memref<1x64x64xf32, #tpu.memory_space<vmem>>, vector<1x64x64xf32>
    %3 = vector.shape_cast %2 : vector<1x64x64xf32> to vector<64x64xf32>
    %c0_5 = arith.constant 0 : index
    %c0_6 = arith.constant 0 : index
    %4 = vector.load %arg4[%c0_5, %c0_6] : memref<64x64xf32, #tpu.memory_space<vmem>>, vector<64x64xf32>
    %cst = arith.constant dense<0.000000e+00> : vector<64x64xf32>
    %5 = tpu.matmul %1, %4, %cst {dimension_numbers = #tpu.dot_dimension_numbers<[1], [0], [0], [1], [0, 0, 1, 1], [], []>} : vector<64x64xf32>, vector<64x64xf32>, vector<64x64xf32> -> vector<64x64xf32>
    %cst_7 = arith.constant 0.353553385 : f32
    %6 = vector.broadcast %cst_7 : f32 to vector<64x64xf32>
    %7 = arith.mulf %5, %6 : vector<64x64xf32>
    %c0_8 = arith.constant 0 : index
    %c0_9 = arith.constant 0 : index
    %8 = vector.load %arg5[%c0_8, %c0_9] : memref<64x64xf32, #tpu.memory_space<vmem>>, vector<64x64xf32>
    %cst_10 = arith.constant dense<0.000000e+00> : vector<64x64xf32>
    %9 = tpu.matmul %3, %8, %cst_10 {dimension_numbers = #tpu.dot_dimension_numbers<[1], [0], [0], [1], [0, 0, 1, 1], [], []>} : vector<64x64xf32>, vector<64x64xf32>, vector<64x64xf32> -> vector<64x64xf32>
    %c0_11 = arith.constant 0 : index
    %c0_12 = arith.constant 0 : index
    %10 = vector.load %arg6[%c0_11, %c0_12] : memref<64x64xf32, #tpu.memory_space<vmem>>, vector<64x64xf32>
    %cst_13 = arith.constant dense<0.000000e+00> : vector<64x64xf32>
    %11 = tpu.matmul %3, %10, %cst_13 {dimension_numbers = #tpu.dot_dimension_numbers<[1], [0], [0], [1], [0, 0, 1, 1], [], []>} : vector<64x64xf32>, vector<64x64xf32>, vector<64x64xf32> -> vector<64x64xf32>
    %c0_14 = arith.constant 0 : index
    %c0_15 = arith.constant 0 : index
    %12 = vector.load %arg7[%c0_14, %c0_15] : memref<64x64xf32, #tpu.memory_space<vmem>>, vector<64x64xf32>
    %cst_16 = arith.constant 0.000000e+00 : f32
    %13 = vector.broadcast %cst_16 : f32 to vector<64x64xf32>
    %14 = vector.extract_strided_slice %7 {offsets = [0, 0], sizes = [64, 8], strides = [1, 1]} : vector<64x64xf32> to vector<64x8xf32>
    %15 = vector.extract_strided_slice %9 {offsets = [0, 0], sizes = [64, 8], strides = [1, 1]} : vector<64x64xf32> to vector<64x8xf32>
    %16 = vector.extract_strided_slice %11 {offsets = [0, 0], sizes = [64, 8], strides = [1, 1]} : vector<64x64xf32> to vector<64x8xf32>
    %cst_17 = arith.constant dense<0.000000e+00> : vector<64x64xf32>
    %17 = tpu.matmul %14, %15, %cst_17 {dimension_numbers = #tpu.dot_dimension_numbers<[1], [1], [0], [0], [0, 0, 1, 0], [], []>} : vector<64x8xf32>, vector<64x8xf32>, vector<64x64xf32> -> vector<64x64xf32>
    %cst_18 = arith.constant dense<0xFF800000> : vector<64xf32>
    %18 = vector.multi_reduction <maximumf>, %17, %cst_18 [1] : vector<64x64xf32> to vector<64xf32>
    %19 = vector.shape_cast %18 : vector<64xf32> to vector<64x1xf32>
    %20 = vector.broadcast %19 : vector<64x1xf32> to vector<64x64xf32>
    %21 = arith.subf %17, %20 : vector<64x64xf32>
    %22 = math.exp %21 : vector<64x64xf32>
    %cst_19 = arith.constant dense<0.000000e+00> : vector<64xf32>
    %23 = vector.multi_reduction <add>, %22, %cst_19 [1] : vector<64x64xf32> to vector<64xf32>
    %24 = vector.shape_cast %23 : vector<64xf32> to vector<64x1xf32>
    %cst_20 = arith.constant dense<0.000000e+00> : vector<64x8xf32>
    %25 = tpu.matmul %22, %16, %cst_20 {dimension_numbers = #tpu.dot_dimension_numbers<[1], [0], [0], [1], [0, 0, 1, 1], [], []>} : vector<64x64xf32>, vector<64x8xf32>, vector<64x8xf32> -> vector<64x8xf32>
    %26 = tpu.reciprocal %24 {approx = true} : vector<64x1xf32> -> vector<64x1xf32>
    %27 = vector.broadcast %26 : vector<64x1xf32> to vector<64x8xf32>
    %28 = arith.mulf %25, %27 : vector<64x8xf32>
    %29 = vector.extract_strided_slice %12 {offsets = [0, 0], sizes = [8, 64], strides = [1, 1]} : vector<64x64xf32> to vector<8x64xf32>
    %cst_21 = arith.constant dense<0.000000e+00> : vector<64x64xf32>
    %30 = tpu.matmul %28, %29, %cst_21 {dimension_numbers = #tpu.dot_dimension_numbers<[1], [0], [0], [1], [0, 0, 1, 1], [], []>} : vector<64x8xf32>, vector<8x64xf32>, vector<64x64xf32> -> vector<64x64xf32>
    %31 = arith.addf %13, %30 : vector<64x64xf32>
    %32 = vector.extract_strided_slice %7 {offsets = [0, 8], sizes = [64, 8], strides = [1, 1]} : vector<64x64xf32> to vector<64x8xf32>
    %33 = vector.extract_strided_slice %9 {offsets = [0, 8], sizes = [64, 8], strides = [1, 1]} : vector<64x64xf32> to vector<64x8xf32>
    %34 = vector.extract_strided_slice %11 {offsets = [0, 8], sizes = [64, 8], strides = [1, 1]} : vector<64x64xf32> to vector<64x8xf32>
    %cst_22 = arith.constant dense<0.000000e+00> : vector<64x64xf32>
    %35 = tpu.matmul %32, %33, %cst_22 {dimension_numbers = #tpu.dot_dimension_numbers<[1], [1], [0], [0], [0, 0, 1, 0], [], []>} : vector<64x8xf32>, vector<64x8xf32>, vector<64x64xf32> -> vector<64x64xf32>
    %cst_23 = arith.constant dense<0xFF800000> : vector<64xf32>
    %36 = vector.multi_reduction <maximumf>, %35, %cst_23 [1] : vector<64x64xf32> to vector<64xf32>
    %37 = vector.shape_cast %36 : vector<64xf32> to vector<64x1xf32>
    %38 = vector.broadcast %37 : vector<64x1xf32> to vector<64x64xf32>
    %39 = arith.subf %35, %38 : vector<64x64xf32>
    %40 = math.exp %39 : vector<64x64xf32>
    %cst_24 = arith.constant dense<0.000000e+00> : vector<64xf32>
    %41 = vector.multi_reduction <add>, %40, %cst_24 [1] : vector<64x64xf32> to vector<64xf32>
    %42 = vector.shape_cast %41 : vector<64xf32> to vector<64x1xf32>
    %cst_25 = arith.constant dense<0.000000e+00> : vector<64x8xf32>
    %43 = tpu.matmul %40, %34, %cst_25 {dimension_numbers = #tpu.dot_dimension_numbers<[1], [0], [0], [1], [0, 0, 1, 1], [], []>} : vector<64x64xf32>, vector<64x8xf32>, vector<64x8xf32> -> vector<64x8xf32>
    %44 = tpu.reciprocal %42 {approx = true} : vector<64x1xf32> -> vector<64x1xf32>
    %45 = vector.broadcast %44 : vector<64x1xf32> to vector<64x8xf32>
    %46 = arith.mulf %43, %45 : vector<64x8xf32>
    %47 = vector.extract_strided_slice %12 {offsets = [8, 0], sizes = [8, 64], strides = [1, 1]} : vector<64x64xf32> to vector<8x64xf32>
    %cst_26 = arith.constant dense<0.000000e+00> : vector<64x64xf32>
    %48 = tpu.matmul %46, %47, %cst_26 {dimension_numbers = #tpu.dot_dimension_numbers<[1], [0], [0], [1], [0, 0, 1, 1], [], []>} : vector<64x8xf32>, vector<8x64xf32>, vector<64x64xf32> -> vector<64x64xf32>
    %49 = arith.addf %31, %48 : vector<64x64xf32>
    %50 = vector.extract_strided_slice %7 {offsets = [0, 16], sizes = [64, 8], strides = [1, 1]} : vector<64x64xf32> to vector<64x8xf32>
    %51 = vector.extract_strided_slice %9 {offsets = [0, 16], sizes = [64, 8], strides = [1, 1]} : vector<64x64xf32> to vector<64x8xf32>
    %52 = vector.extract_strided_slice %11 {offsets = [0, 16], sizes = [64, 8], strides = [1, 1]} : vector<64x64xf32> to vector<64x8xf32>
    %cst_27 = arith.constant dense<0.000000e+00> : vector<64x64xf32>
    %53 = tpu.matmul %50, %51, %cst_27 {dimension_numbers = #tpu.dot_dimension_numbers<[1], [1], [0], [0], [0, 0, 1, 0], [], []>} : vector<64x8xf32>, vector<64x8xf32>, vector<64x64xf32> -> vector<64x64xf32>
    %cst_28 = arith.constant dense<0xFF800000> : vector<64xf32>
    %54 = vector.multi_reduction <maximumf>, %53, %cst_28 [1] : vector<64x64xf32> to vector<64xf32>
    %55 = vector.shape_cast %54 : vector<64xf32> to vector<64x1xf32>
    %56 = vector.broadcast %55 : vector<64x1xf32> to vector<64x64xf32>
    %57 = arith.subf %53, %56 : vector<64x64xf32>
    %58 = math.exp %57 : vector<64x64xf32>
    %cst_29 = arith.constant dense<0.000000e+00> : vector<64xf32>
    %59 = vector.multi_reduction <add>, %58, %cst_29 [1] : vector<64x64xf32> to vector<64xf32>
    %60 = vector.shape_cast %59 : vector<64xf32> to vector<64x1xf32>
    %cst_30 = arith.constant dense<0.000000e+00> : vector<64x8xf32>
    %61 = tpu.matmul %58, %52, %cst_30 {dimension_numbers = #tpu.dot_dimension_numbers<[1], [0], [0], [1], [0, 0, 1, 1], [], []>} : vector<64x64xf32>, vector<64x8xf32>, vector<64x8xf32> -> vector<64x8xf32>
    %62 = tpu.reciprocal %60 {approx = true} : vector<64x1xf32> -> vector<64x1xf32>
    %63 = vector.broadcast %62 : vector<64x1xf32> to vector<64x8xf32>
    %64 = arith.mulf %61, %63 : vector<64x8xf32>
    %65 = vector.extract_strided_slice %12 {offsets = [16, 0], sizes = [8, 64], strides = [1, 1]} : vector<64x64xf32> to vector<8x64xf32>
    %cst_31 = arith.constant dense<0.000000e+00> : vector<64x64xf32>
    %66 = tpu.matmul %64, %65, %cst_31 {dimension_numbers = #tpu.dot_dimension_numbers<[1], [0], [0], [1], [0, 0, 1, 1], [], []>} : vector<64x8xf32>, vector<8x64xf32>, vector<64x64xf32> -> vector<64x64xf32>
    %67 = arith.addf %49, %66 : vector<64x64xf32>
    %68 = vector.extract_strided_slice %7 {offsets = [0, 24], sizes = [64, 8], strides = [1, 1]} : vector<64x64xf32> to vector<64x8xf32>
    %69 = vector.extract_strided_slice %9 {offsets = [0, 24], sizes = [64, 8], strides = [1, 1]} : vector<64x64xf32> to vector<64x8xf32>
    %70 = vector.extract_strided_slice %11 {offsets = [0, 24], sizes = [64, 8], strides = [1, 1]} : vector<64x64xf32> to vector<64x8xf32>
    %cst_32 = arith.constant dense<0.000000e+00> : vector<64x64xf32>
    %71 = tpu.matmul %68, %69, %cst_32 {dimension_numbers = #tpu.dot_dimension_numbers<[1], [1], [0], [0], [0, 0, 1, 0], [], []>} : vector<64x8xf32>, vector<64x8xf32>, vector<64x64xf32> -> vector<64x64xf32>
    %cst_33 = arith.constant dense<0xFF800000> : vector<64xf32>
    %72 = vector.multi_reduction <maximumf>, %71, %cst_33 [1] : vector<64x64xf32> to vector<64xf32>
    %73 = vector.shape_cast %72 : vector<64xf32> to vector<64x1xf32>
    %74 = vector.broadcast %73 : vector<64x1xf32> to vector<64x64xf32>
    %75 = arith.subf %71, %74 : vector<64x64xf32>
    %76 = math.exp %75 : vector<64x64xf32>
    %cst_34 = arith.constant dense<0.000000e+00> : vector<64xf32>
    %77 = vector.multi_reduction <add>, %76, %cst_34 [1] : vector<64x64xf32> to vector<64xf32>
    %78 = vector.shape_cast %77 : vector<64xf32> to vector<64x1xf32>
    %cst_35 = arith.constant dense<0.000000e+00> : vector<64x8xf32>
    %79 = tpu.matmul %76, %70, %cst_35 {dimension_numbers = #tpu.dot_dimension_numbers<[1], [0], [0], [1], [0, 0, 1, 1], [], []>} : vector<64x64xf32>, vector<64x8xf32>, vector<64x8xf32> -> vector<64x8xf32>
    %80 = tpu.reciprocal %78 {approx = true} : vector<64x1xf32> -> vector<64x1xf32>
    %81 = vector.broadcast %80 : vector<64x1xf32> to vector<64x8xf32>
    %82 = arith.mulf %79, %81 : vector<64x8xf32>
    %83 = vector.extract_strided_slice %12 {offsets = [24, 0], sizes = [8, 64], strides = [1, 1]} : vector<64x64xf32> to vector<8x64xf32>
    %cst_36 = arith.constant dense<0.000000e+00> : vector<64x64xf32>
    %84 = tpu.matmul %82, %83, %cst_36 {dimension_numbers = #tpu.dot_dimension_numbers<[1], [0], [0], [1], [0, 0, 1, 1], [], []>} : vector<64x8xf32>, vector<8x64xf32>, vector<64x64xf32> -> vector<64x64xf32>
    %85 = arith.addf %67, %84 : vector<64x64xf32>
    %86 = vector.extract_strided_slice %7 {offsets = [0, 32], sizes = [64, 8], strides = [1, 1]} : vector<64x64xf32> to vector<64x8xf32>
    %87 = vector.extract_strided_slice %9 {offsets = [0, 32], sizes = [64, 8], strides = [1, 1]} : vector<64x64xf32> to vector<64x8xf32>
    %88 = vector.extract_strided_slice %11 {offsets = [0, 32], sizes = [64, 8], strides = [1, 1]} : vector<64x64xf32> to vector<64x8xf32>
    %cst_37 = arith.constant dense<0.000000e+00> : vector<64x64xf32>
    %89 = tpu.matmul %86, %87, %cst_37 {dimension_numbers = #tpu.dot_dimension_numbers<[1], [1], [0], [0], [0, 0, 1, 0], [], []>} : vector<64x8xf32>, vector<64x8xf32>, vector<64x64xf32> -> vector<64x64xf32>
    %cst_38 = arith.constant dense<0xFF800000> : vector<64xf32>
    %90 = vector.multi_reduction <maximumf>, %89, %cst_38 [1] : vector<64x64xf32> to vector<64xf32>
    %91 = vector.shape_cast %90 : vector<64xf32> to vector<64x1xf32>
    %92 = vector.broadcast %91 : vector<64x1xf32> to vector<64x64xf32>
    %93 = arith.subf %89, %92 : vector<64x64xf32>
    %94 = math.exp %93 : vector<64x64xf32>
    %cst_39 = arith.constant dense<0.000000e+00> : vector<64xf32>
    %95 = vector.multi_reduction <add>, %94, %cst_39 [1] : vector<64x64xf32> to vector<64xf32>
    %96 = vector.shape_cast %95 : vector<64xf32> to vector<64x1xf32>
    %cst_40 = arith.constant dense<0.000000e+00> : vector<64x8xf32>
    %97 = tpu.matmul %94, %88, %cst_40 {dimension_numbers = #tpu.dot_dimension_numbers<[1], [0], [0], [1], [0, 0, 1, 1], [], []>} : vector<64x64xf32>, vector<64x8xf32>, vector<64x8xf32> -> vector<64x8xf32>
    %98 = tpu.reciprocal %96 {approx = true} : vector<64x1xf32> -> vector<64x1xf32>
    %99 = vector.broadcast %98 : vector<64x1xf32> to vector<64x8xf32>
    %100 = arith.mulf %97, %99 : vector<64x8xf32>
    %101 = vector.extract_strided_slice %12 {offsets = [32, 0], sizes = [8, 64], strides = [1, 1]} : vector<64x64xf32> to vector<8x64xf32>
    %cst_41 = arith.constant dense<0.000000e+00> : vector<64x64xf32>
    %102 = tpu.matmul %100, %101, %cst_41 {dimension_numbers = #tpu.dot_dimension_numbers<[1], [0], [0], [1], [0, 0, 1, 1], [], []>} : vector<64x8xf32>, vector<8x64xf32>, vector<64x64xf32> -> vector<64x64xf32>
    %103 = arith.addf %85, %102 : vector<64x64xf32>
    %104 = vector.extract_strided_slice %7 {offsets = [0, 40], sizes = [64, 8], strides = [1, 1]} : vector<64x64xf32> to vector<64x8xf32>
    %105 = vector.extract_strided_slice %9 {offsets = [0, 40], sizes = [64, 8], strides = [1, 1]} : vector<64x64xf32> to vector<64x8xf32>
    %106 = vector.extract_strided_slice %11 {offsets = [0, 40], sizes = [64, 8], strides = [1, 1]} : vector<64x64xf32> to vector<64x8xf32>
    %cst_42 = arith.constant dense<0.000000e+00> : vector<64x64xf32>
    %107 = tpu.matmul %104, %105, %cst_42 {dimension_numbers = #tpu.dot_dimension_numbers<[1], [1], [0], [0], [0, 0, 1, 0], [], []>} : vector<64x8xf32>, vector<64x8xf32>, vector<64x64xf32> -> vector<64x64xf32>
    %cst_43 = arith.constant dense<0xFF800000> : vector<64xf32>
    %108 = vector.multi_reduction <maximumf>, %107, %cst_43 [1] : vector<64x64xf32> to vector<64xf32>
    %109 = vector.shape_cast %108 : vector<64xf32> to vector<64x1xf32>
    %110 = vector.broadcast %109 : vector<64x1xf32> to vector<64x64xf32>
    %111 = arith.subf %107, %110 : vector<64x64xf32>
    %112 = math.exp %111 : vector<64x64xf32>
    %cst_44 = arith.constant dense<0.000000e+00> : vector<64xf32>
    %113 = vector.multi_reduction <add>, %112, %cst_44 [1] : vector<64x64xf32> to vector<64xf32>
    %114 = vector.shape_cast %113 : vector<64xf32> to vector<64x1xf32>
    %cst_45 = arith.constant dense<0.000000e+00> : vector<64x8xf32>
    %115 = tpu.matmul %112, %106, %cst_45 {dimension_numbers = #tpu.dot_dimension_numbers<[1], [0], [0], [1], [0, 0, 1, 1], [], []>} : vector<64x64xf32>, vector<64x8xf32>, vector<64x8xf32> -> vector<64x8xf32>
    %116 = tpu.reciprocal %114 {approx = true} : vector<64x1xf32> -> vector<64x1xf32>
    %117 = vector.broadcast %116 : vector<64x1xf32> to vector<64x8xf32>
    %118 = arith.mulf %115, %117 : vector<64x8xf32>
    %119 = vector.extract_strided_slice %12 {offsets = [40, 0], sizes = [8, 64], strides = [1, 1]} : vector<64x64xf32> to vector<8x64xf32>
    %cst_46 = arith.constant dense<0.000000e+00> : vector<64x64xf32>
    %120 = tpu.matmul %118, %119, %cst_46 {dimension_numbers = #tpu.dot_dimension_numbers<[1], [0], [0], [1], [0, 0, 1, 1], [], []>} : vector<64x8xf32>, vector<8x64xf32>, vector<64x64xf32> -> vector<64x64xf32>
    %121 = arith.addf %103, %120 : vector<64x64xf32>
    %122 = vector.extract_strided_slice %7 {offsets = [0, 48], sizes = [64, 8], strides = [1, 1]} : vector<64x64xf32> to vector<64x8xf32>
    %123 = vector.extract_strided_slice %9 {offsets = [0, 48], sizes = [64, 8], strides = [1, 1]} : vector<64x64xf32> to vector<64x8xf32>
    %124 = vector.extract_strided_slice %11 {offsets = [0, 48], sizes = [64, 8], strides = [1, 1]} : vector<64x64xf32> to vector<64x8xf32>
    %cst_47 = arith.constant dense<0.000000e+00> : vector<64x64xf32>
    %125 = tpu.matmul %122, %123, %cst_47 {dimension_numbers = #tpu.dot_dimension_numbers<[1], [1], [0], [0], [0, 0, 1, 0], [], []>} : vector<64x8xf32>, vector<64x8xf32>, vector<64x64xf32> -> vector<64x64xf32>
    %cst_48 = arith.constant dense<0xFF800000> : vector<64xf32>
    %126 = vector.multi_reduction <maximumf>, %125, %cst_48 [1] : vector<64x64xf32> to vector<64xf32>
    %127 = vector.shape_cast %126 : vector<64xf32> to vector<64x1xf32>
    %128 = vector.broadcast %127 : vector<64x1xf32> to vector<64x64xf32>
    %129 = arith.subf %125, %128 : vector<64x64xf32>
    %130 = math.exp %129 : vector<64x64xf32>
    %cst_49 = arith.constant dense<0.000000e+00> : vector<64xf32>
    %131 = vector.multi_reduction <add>, %130, %cst_49 [1] : vector<64x64xf32> to vector<64xf32>
    %132 = vector.shape_cast %131 : vector<64xf32> to vector<64x1xf32>
    %cst_50 = arith.constant dense<0.000000e+00> : vector<64x8xf32>
    %133 = tpu.matmul %130, %124, %cst_50 {dimension_numbers = #tpu.dot_dimension_numbers<[1], [0], [0], [1], [0, 0, 1, 1], [], []>} : vector<64x64xf32>, vector<64x8xf32>, vector<64x8xf32> -> vector<64x8xf32>
    %134 = tpu.reciprocal %132 {approx = true} : vector<64x1xf32> -> vector<64x1xf32>
    %135 = vector.broadcast %134 : vector<64x1xf32> to vector<64x8xf32>
    %136 = arith.mulf %133, %135 : vector<64x8xf32>
    %137 = vector.extract_strided_slice %12 {offsets = [48, 0], sizes = [8, 64], strides = [1, 1]} : vector<64x64xf32> to vector<8x64xf32>
    %cst_51 = arith.constant dense<0.000000e+00> : vector<64x64xf32>
    %138 = tpu.matmul %136, %137, %cst_51 {dimension_numbers = #tpu.dot_dimension_numbers<[1], [0], [0], [1], [0, 0, 1, 1], [], []>} : vector<64x8xf32>, vector<8x64xf32>, vector<64x64xf32> -> vector<64x64xf32>
    %139 = arith.addf %121, %138 : vector<64x64xf32>
    %140 = vector.extract_strided_slice %7 {offsets = [0, 56], sizes = [64, 8], strides = [1, 1]} : vector<64x64xf32> to vector<64x8xf32>
    %141 = vector.extract_strided_slice %9 {offsets = [0, 56], sizes = [64, 8], strides = [1, 1]} : vector<64x64xf32> to vector<64x8xf32>
    %142 = vector.extract_strided_slice %11 {offsets = [0, 56], sizes = [64, 8], strides = [1, 1]} : vector<64x64xf32> to vector<64x8xf32>
    %cst_52 = arith.constant dense<0.000000e+00> : vector<64x64xf32>
    %143 = tpu.matmul %140, %141, %cst_52 {dimension_numbers = #tpu.dot_dimension_numbers<[1], [1], [0], [0], [0, 0, 1, 0], [], []>} : vector<64x8xf32>, vector<64x8xf32>, vector<64x64xf32> -> vector<64x64xf32>
    %cst_53 = arith.constant dense<0xFF800000> : vector<64xf32>
    %144 = vector.multi_reduction <maximumf>, %143, %cst_53 [1] : vector<64x64xf32> to vector<64xf32>
    %145 = vector.shape_cast %144 : vector<64xf32> to vector<64x1xf32>
    %146 = vector.broadcast %145 : vector<64x1xf32> to vector<64x64xf32>
    %147 = arith.subf %143, %146 : vector<64x64xf32>
    %148 = math.exp %147 : vector<64x64xf32>
    %cst_54 = arith.constant dense<0.000000e+00> : vector<64xf32>
    %149 = vector.multi_reduction <add>, %148, %cst_54 [1] : vector<64x64xf32> to vector<64xf32>
    %150 = vector.shape_cast %149 : vector<64xf32> to vector<64x1xf32>
    %cst_55 = arith.constant dense<0.000000e+00> : vector<64x8xf32>
    %151 = tpu.matmul %148, %142, %cst_55 {dimension_numbers = #tpu.dot_dimension_numbers<[1], [0], [0], [1], [0, 0, 1, 1], [], []>} : vector<64x64xf32>, vector<64x8xf32>, vector<64x8xf32> -> vector<64x8xf32>
    %152 = tpu.reciprocal %150 {approx = true} : vector<64x1xf32> -> vector<64x1xf32>
    %153 = vector.broadcast %152 : vector<64x1xf32> to vector<64x8xf32>
    %154 = arith.mulf %151, %153 : vector<64x8xf32>
    %155 = vector.extract_strided_slice %12 {offsets = [56, 0], sizes = [8, 64], strides = [1, 1]} : vector<64x64xf32> to vector<8x64xf32>
    %cst_56 = arith.constant dense<0.000000e+00> : vector<64x64xf32>
    %156 = tpu.matmul %154, %155, %cst_56 {dimension_numbers = #tpu.dot_dimension_numbers<[1], [0], [0], [1], [0, 0, 1, 1], [], []>} : vector<64x8xf32>, vector<8x64xf32>, vector<64x64xf32> -> vector<64x64xf32>
    %157 = arith.addf %139, %156 : vector<64x64xf32>
    %c0_57 = arith.constant 0 : index
    %c0_58 = arith.constant 0 : index
    %158 = vector.load %arg8[%c0_57, %c0_58] : memref<1x64xf32, #tpu.memory_space<vmem>>, vector<1x64xf32>
    %159 = vector.broadcast %158 : vector<1x64xf32> to vector<64x64xf32>
    %160 = arith.addf %157, %159 : vector<64x64xf32>
    %c0_59 = arith.constant 0 : index
    %c0_60 = arith.constant 0 : index
    %c0_61 = arith.constant 0 : index
    %161 = vector.load %arg9[%c0_59, %c0_60, %c0_61] : memref<1x64x64xf32, #tpu.memory_space<vmem>>, vector<1x64x64xf32>
    %162 = vector.shape_cast %161 : vector<1x64x64xf32> to vector<64x64xf32>
    %163 = vector.shape_cast %160 : vector<64x64xf32> to vector<1x64x64xf32>
    tpu.vector_store %arg9[%c0_59, %c0_60, %c0_61], %163 {strides = array<i32>} : memref<1x64x64xf32, #tpu.memory_space<vmem>>, vector<1x64x64xf32>,
    return
  }
  func.func @transform_0(%arg0: i32, %arg1: i32) -> (i32, i32, i32) {
    %c0_i32 = arith.constant 0 : i32
    %c0_i32_0 = arith.constant 0 : i32
    return %arg0, %arg1, %c0_i32 : i32, i32, i32
  }
  func.func @transform_1(%arg0: i32, %arg1: i32) -> (i32, i32, i32) {
    %c0_i32 = arith.constant 0 : i32
    %c0_i32_0 = arith.constant 0 : i32
    %c0_i32_1 = arith.constant 0 : i32
    return %arg0, %c0_i32, %c0_i32_0 : i32, i32, i32
  }
  func.func @transform_2(%arg0: i32, %arg1: i32) -> (i32, i32) {
    %c0_i32 = arith.constant 0 : i32
    %c0_i32_0 = arith.constant 0 : i32
    %c0_i32_1 = arith.constant 0 : i32
    return %c0_i32, %c0_i32_0 : i32, i32
  }
  func.func @transform_3(%arg0: i32, %arg1: i32) -> (i32, i32) {
    %c0_i32 = arith.constant 0 : i32
    %c0_i32_0 = arith.constant 0 : i32
    %c0_i32_1 = arith.constant 0 : i32
    return %c0_i32, %c0_i32_0 : i32, i32
  }
  func.func @transform_4(%arg0: i32, %arg1: i32) -> (i32, i32) {
    %c0_i32 = arith.constant 0 : i32
    %c0_i32_0 = arith.constant 0 : i32
    %c0_i32_1 = arith.constant 0 : i32
    return %c0_i32, %c0_i32_0 : i32, i32
  }
  func.func @transform_5(%arg0: i32, %arg1: i32) -> (i32, i32) {
    %c0_i32 = arith.constant 0 : i32
    %c0_i32_0 = arith.constant 0 : i32
    %c0_i32_1 = arith.constant 0 : i32
    return %c0_i32, %c0_i32_0 : i32, i32
  }
  func.func @transform_6(%arg0: i32, %arg1: i32) -> (i32, i32) {
    %c0_i32 = arith.constant 0 : i32
    %c0_i32_0 = arith.constant 0 : i32
    %c0_i32_1 = arith.constant 0 : i32
    return %c0_i32, %c0_i32_0 : i32, i32
  }
  func.func @transform_7(%arg0: i32, %arg1: i32) -> (i32, i32, i32) {
    %c0_i32 = arith.constant 0 : i32
    %c0_i32_0 = arith.constant 0 : i32
    return %arg0, %arg1, %c0_i32 : i32, i32, i32
  }
}

</mosaic_0001>

<llo_original>
// kernel: tpu_custom_call.1
$region0: #{tpu_custom_call.1}
  #allocation0 [shape = 'u32[]', space=smem, size = 0x4, offset = 0x4, fixed_abs, tag = 'smem constant byte address 0x4 - core index']
  #allocation1 [shape = 'u32[144,128]{1,0:T(1,128)}', space=vmem, size = 0x12000, scoped, tag = 'internal scratch']
  %s0 = inlined_call_operand.hbm [shape: f32[2,64,64], index: 0, kind: input, shape index: {}]
  %s1 = inlined_call_operand.hbm [shape: f32[2,64,64], index: 1, kind: input, shape index: {}]
  %s2 = inlined_call_operand.hbm [shape: f32[64,64], index: 2, kind: input, shape index: {}]
  %s3 = inlined_call_operand.hbm [shape: f32[64,64], index: 3, kind: input, shape index: {}]
  %s4 = inlined_call_operand.hbm [shape: f32[64,64], index: 4, kind: input, shape index: {}]
  %s5 = inlined_call_operand.hbm [shape: f32[64,64], index: 5, kind: input, shape index: {}]
  %s6 = inlined_call_operand.vmem [shape: f32[1,64], index: 6, kind: input, shape index: {}]
  %s7 = inlined_call_operand.hbm [shape: f32[2,64,64], index: 7, kind: output, shape index: {}]
  %s8 = sld [smem:[#allocation0]]
  $region85: #{tpu_custom_call.1} parent=0
    _
  %s10 = ssub.s32 1, %s8
  %s11 = scalar_select 0, %s10, %s8
  $region1: #{tpu_custom_call.1} parent=0
    #allocation2 [shape = 'u8[65536]{0}', space=vmem, size = 0x10000, scoped, tag = 'input window, operand 0']
    #allocation3 [shape = 's32[2]{0}', space=sflag, size = 0x8, scoped, tag = 'scoped memory for tpu_custom_call.1']
    #allocation4 [shape = 's32[2]{0}', space=sflag, size = 0x8, scoped, tag = 'scoped memory for tpu_custom_call.1']
    #allocation5 [shape = 'u8[65536]{0}', space=vmem, size = 0x10000, scoped, tag = 'input window, operand 1']
    #allocation6 [shape = 's32[2]{0}', space=sflag, size = 0x8, scoped, tag = 'scoped memory for tpu_custom_call.1']
    #allocation7 [shape = 'u8[32768]{0}', space=vmem, size = 0x8000, scoped, tag = 'input window, operand 2, single buffered']
    #allocation8 [shape = 'u8[32768]{0}', space=vmem, size = 0x8000, scoped, tag = 'input window, operand 3, single buffered']
    #allocation9 [shape = 's32[1]{0}', space=sflag, size = 0x4, scoped, tag = 'scoped memory for tpu_custom_call.1']
    #allocation10 [shape = 'u8[32768]{0}', space=vmem, size = 0x8000, scoped, tag = 'input window, operand 4, single buffered']
    #allocation11 [shape = 'u8[32768]{0}', space=vmem, size = 0x8000, scoped, tag = 'input window, operand 5, single buffered']
    #allocation12 [shape = 's32[1]{0}', space=sflag, size = 0x4, scoped, tag = 'scoped memory for tpu_custom_call.1']
    #allocation13 [shape = 'u8[65536]{0}', space=vmem, size = 0x10000, scoped, tag = 'output window, operand 0']
    %12 = vsyncpa [#allocation3], 0
    %s13 = scalar_lea.sflag [#allocation3], 1
    %14 = vsyncpa %s13, 0
    %15 = vsyncpa [#allocation6], 0
    %s16 = scalar_lea.sflag [#allocation6], 1
    %17 = vsyncpa %s16, 0
    %18 = vsyncpa [#allocation9], 0
    %19 = vsyncpa [#allocation12], 0
    %20 = vsyncpa [#allocation4], 0
    %s21 = scalar_lea.sflag [#allocation4], 1
    %22 = vsyncpa %s21, 0
    loop: start=0, step=1, limit=4
    $region2: #{tpu_custom_call.1} parent=1 // loop_pre_header
      _
    $region3: #{tpu_custom_call.1} parent=1 // loop_header
      %s24 = sphi 0, %s28
      %p25 = scmp.ge.s32.totalorder %s24, 4
      %s31 = sphi 0, %s43
      %s32 = sphi 0, %s39
      %s33 = sphi 0, %s31
      %s34 = sphi 0, %s32
      %s35 = sphi 0, %s33
      %s36 = sphi 0, %s34
      %s48 = sphi 0, %s50
      %s51 = sphi 0, %s48
      %s52 = sphi 0, %s51
      %s68 = sphi 0, %s52
      %s74 = sphi 0, %s76
      %s77 = sphi 0, %s74
      %s78 = sphi 0, %s77
      %s94 = sphi 0, %s78
      %s98 = sphi 0, %s98
      %s100 = sphi 0, %s98
      %s101 = sphi 0, %s100
      %s115 = sphi 0, %s101
      %s119 = sphi 0, %s119
      %s121 = sphi 0, %s119
      %s122 = sphi 0, %s121
      %s136 = sphi 0, %s122
      %s140 = sphi 0, %s140
      %s142 = sphi 0, %s140
      %s143 = sphi 0, %s142
      %s157 = sphi 0, %s143
      %s161 = sphi 0, %s161
      %s163 = sphi 0, %s161
      %s164 = sphi 0, %s163
      %s178 = sphi 0, %s164
      %s182 = sphi 0, %s182
      %s184 = sphi 0, %s182
      %s185 = sphi 0, %s184
      %s199 = sphi 0, %s185
      %s207 = sphi 0, %s209
      %s210 = sphi 0, %s207
      %s211 = sphi 0, %s210
      %s227 = sphi 0, %s211
    $region4: #{tpu_custom_call.1} parent=1 // loop_header_branch
      %27 = sbr.rel (%p25) target = $region8
    $region5: #{tpu_custom_call.1} parent=1 // loop_body
      %s29 = ssub.s32 %s24, 1
      %s30 = ssub.s32 %s24, 2
      %s37 = sadd.s32 1, %s32
      %p38 = scmp.ge.s32.totalorder %s37, 1
      %s39 = scalar_select %p38, 0, %s37
      %s40 = sadd.s32 1, %s31
      %s41 = scalar_select %p38, %s40, %s31
      %p42 = scmp.ge.s32.totalorder %s41, 2
      %s43 = scalar_select %p42, 0, %s41
      %s44 = ssub.s32 %s31, %s43
      %s45 = ssub.s32 %s32, %s39
      %s46 = sor.u32 %s44, %s45
      %p47 = scmp.eq.s32.totalorder %s46, 0
      %s49 = sadd.s32 %s48, 1
      %s50 = scalar_select %p47, %s48, %s49
      %p53 = pneg %p47
      %p54 = scmp.eq.s32.totalorder %s24, 1
      %p55 = por %p53, %p54
      %p56 = scmp.ne.s32.totalorder %s48, %s51
      %p57 = scmp.eq.s32.totalorder %s24, 0
      %p58 = por %p56, %p57
      %p59 = scmp.ne.s32.totalorder %s48, %s51
      %p60 = scmp.eq.s32.totalorder %s29, 1
      %p61 = por %p59, %p60
      %p62 = scmp.ne.s32.totalorder %s51, %s52
      %p63 = scmp.eq.s32.totalorder %s29, 0
      %p64 = por %p62, %p63
      %p65 = scmp.ne.s32.totalorder %s51, %s52
      %p66 = scmp.eq.s32.totalorder %s30, 1
      %p67 = por %p65, %p66
      %p69 = scmp.ne.s32.totalorder %s52, %s68
      %p70 = scmp.eq.s32.totalorder %s30, 0
      %p71 = por %p69, %p70
      %s72 = ssub.s32 %s31, %s43
      %p73 = scmp.eq.s32.totalorder %s72, 0
      %s75 = sadd.s32 %s74, 1
      %s76 = scalar_select %p73, %s74, %s75
      %p79 = pneg %p73
      %p80 = scmp.eq.s32.totalorder %s24, 1
      %p81 = por %p79, %p80
      %p82 = scmp.ne.s32.totalorder %s74, %s77
      %p83 = scmp.eq.s32.totalorder %s24, 0
      %p84 = por %p82, %p83
      %p85 = scmp.ne.s32.totalorder %s74, %s77
      %p86 = scmp.eq.s32.totalorder %s29, 1
      %p87 = por %p85, %p86
      %p88 = scmp.ne.s32.totalorder %s77, %s78
      %p89 = scmp.eq.s32.totalorder %s29, 0
      %p90 = por %p88, %p89
      %p91 = scmp.ne.s32.totalorder %s77, %s78
      %p92 = scmp.eq.s32.totalorder %s30, 1
      %p93 = por %p91, %p92
      %p95 = scmp.ne.s32.totalorder %s78, %s94
      %p96 = scmp.eq.s32.totalorder %s30, 0
      %p97 = por %p95, %p96
      %s99 = sadd.s32 %s98, 1
      %p102 = scmp.eq.s32.totalorder %s24, 1
      %p103 = scmp.ne.s32.totalorder %s98, %s100
      %p104 = scmp.eq.s32.totalorder %s24, 0
      %p105 = por %p103, %p104
      %p106 = scmp.ne.s32.totalorder %s98, %s100
      %p107 = scmp.eq.s32.totalorder %s29, 1
      %p108 = por %p106, %p107
      %p109 = scmp.ne.s32.totalorder %s100, %s101
      %p110 = scmp.eq.s32.totalorder %s29, 0
      %p111 = por %p109, %p110
      %p112 = scmp.ne.s32.totalorder %s100, %s101
      %p113 = scmp.eq.s32.totalorder %s30, 1
      %p114 = por %p112, %p113
      %p116 = scmp.ne.s32.totalorder %s101, %s115
      %p117 = scmp.eq.s32.totalorder %s30, 0
      %p118 = por %p116, %p117
      %s120 = sadd.s32 %s119, 1
      %p123 = scmp.eq.s32.totalorder %s24, 1
      %p124 = scmp.ne.s32.totalorder %s119, %s121
      %p125 = scmp.eq.s32.totalorder %s24, 0
      %p126 = por %p124, %p125
      %p127 = scmp.ne.s32.totalorder %s119, %s121
      %p128 = scmp.eq.s32.totalorder %s29, 1
      %p129 = por %p127, %p128
      %p130 = scmp.ne.s32.totalorder %s121, %s122
      %p131 = scmp.eq.s32.totalorder %s29, 0
      %p132 = por %p130, %p131
      %p133 = scmp.ne.s32.totalorder %s121, %s122
      %p134 = scmp.eq.s32.totalorder %s30, 1
      %p135 = por %p133, %p134
      %p137 = scmp.ne.s32.totalorder %s122, %s136
      %p138 = scmp.eq.s32.totalorder %s30, 0
      %p139 = por %p137, %p138
      %s141 = sadd.s32 %s140, 1
      %p144 = scmp.eq.s32.totalorder %s24, 1
      %p145 = scmp.ne.s32.totalorder %s140, %s142
      %p146 = scmp.eq.s32.totalorder %s24, 0
      %p147 = por %p145, %p146
      %p148 = scmp.ne.s32.totalorder %s140, %s142
      %p149 = scmp.eq.s32.totalorder %s29, 1
      %p150 = por %p148, %p149
      %p151 = scmp.ne.s32.totalorder %s142, %s143
      %p152 = scmp.eq.s32.totalorder %s29, 0
      %p153 = por %p151, %p152
      %p154 = scmp.ne.s32.totalorder %s142, %s143
      %p155 = scmp.eq.s32.totalorder %s30, 1
      %p156 = por %p154, %p155
      %p158 = scmp.ne.s32.totalorder %s143, %s157
      %p159 = scmp.eq.s32.totalorder %s30, 0
      %p160 = por %p158, %p159
      %s162 = sadd.s32 %s161, 1
      %p165 = scmp.eq.s32.totalorder %s24, 1
      %p166 = scmp.ne.s32.totalorder %s161, %s163
      %p167 = scmp.eq.s32.totalorder %s24, 0
      %p168 = por %p166, %p167
      %p169 = scmp.ne.s32.totalorder %s161, %s163
      %p170 = scmp.eq.s32.totalorder %s29, 1
      %p171 = por %p169, %p170
      %p172 = scmp.ne.s32.totalorder %s163, %s164
      %p173 = scmp.eq.s32.totalorder %s29, 0
      %p174 = por %p172, %p173
      %p175 = scmp.ne.s32.totalorder %s163, %s164
      %p176 = scmp.eq.s32.totalorder %s30, 1
      %p177 = por %p175, %p176
      %p179 = scmp.ne.s32.totalorder %s164, %s178
      %p180 = scmp.eq.s32.totalorder %s30, 0
      %p181 = por %p179, %p180
      %s183 = sadd.s32 %s182, 1
      %p186 = scmp.eq.s32.totalorder %s24, 1
      %p187 = scmp.ne.s32.totalorder %s182, %s184
      %p188 = scmp.eq.s32.totalorder %s24, 0
      %p189 = por %p187, %p188
      %p190 = scmp.ne.s32.totalorder %s182, %s184
      %p191 = scmp.eq.s32.totalorder %s29, 1
      %p192 = por %p190, %p191
      %p193 = scmp.ne.s32.totalorder %s184, %s185
      %p194 = scmp.eq.s32.totalorder %s29, 0
      %p195 = por %p193, %p194
      %p196 = scmp.ne.s32.totalorder %s184, %s185
      %p197 = scmp.eq.s32.totalorder %s30, 1
      %p198 = por %p196, %p197
      %p200 = scmp.ne.s32.totalorder %s185, %s199
      %p201 = scmp.eq.s32.totalorder %s30, 0
      %p202 = por %p200, %p201
      %s203 = ssub.s32 %s31, %s43
      %s204 = ssub.s32 %s32, %s39
      %s205 = sor.u32 %s203, %s204
      %p206 = scmp.eq.s32.totalorder %s205, 0
      %s208 = sadd.s32 %s207, 1
      %s209 = scalar_select %p206, %s207, %s208
      %p212 = pneg %p206
      %p213 = scmp.eq.s32.totalorder %s24, 1
      %p214 = por %p212, %p213
      %p215 = scmp.ne.s32.totalorder %s207, %s210
      %p216 = scmp.eq.s32.totalorder %s24, 0
      %p217 = por %p215, %p216
      %p218 = scmp.ne.s32.totalorder %s207, %s210
      %p219 = scmp.eq.s32.totalorder %s29, 1
      %p220 = por %p218, %p219
      %p221 = scmp.ne.s32.totalorder %s210, %s211
      %p222 = scmp.eq.s32.totalorder %s29, 0
      %p223 = por %p221, %p222
      %p224 = scmp.ne.s32.totalorder %s210, %s211
      %p225 = scmp.eq.s32.totalorder %s30, 1
      %p226 = por %p224, %p225
      %p228 = scmp.ne.s32.totalorder %s211, %s227
      %p229 = scmp.eq.s32.totalorder %s30, 0
      %p230 = por %p228, %p229
      %p231 = scmp.le.s32.totalorder 1, %s24
      %p232 = scmp.lt.s32.totalorder %s24, 3
      %p233 = pnand %p231, %p232
      %p234 = pneg %p233
      // Predicated region
      $region9: #{tpu_custom_call.1} parent=5 // pred_check
        _
      $region10: #{tpu_custom_call.1} parent=5 // pred_check_branch
        %236 = sbr.rel (%p233) target = $region12
      $region11: #{tpu_custom_call.1} parent=5 // pred_region
        %s237 = ssub.s32 %s24, 1
        // Predicated region
        $region13: #{tpu_custom_call.1} parent=11 // pred_check
          %p238 = pneg %p111
        $region14: #{tpu_custom_call.1} parent=11 // pred_check_branch
          %240 = sbr.rel (%p238) target = $region16
        $region15: #{tpu_custom_call.1} parent=11 // pred_region
          %s242 = ssub.s32 1024, 1024
          %243 = vsyncadd [#allocation6], %s242
          %s244 = sshll.u32 [#allocation7], 4
          %s245 = int_to_ptr.vmem [resolvable:$true] %s244
          %250 = dma.hbm_to_vmem [thread:$0]  %s2, 1024, %s245, [#allocation6], 128, 128, 8
        $region16: #{tpu_custom_call.1} parent=11 // pred_fallthru
          _
        // Predicated region
        $region17: #{tpu_custom_call.1} parent=11 // pred_check
          %p251 = pneg %p132
        $region18: #{tpu_custom_call.1} parent=11 // pred_check_branch
          %253 = sbr.rel (%p251) target = $region20
        $region19: #{tpu_custom_call.1} parent=11 // pred_region
          %s255 = ssub.s32 1024, 1024
          %256 = vsyncadd [#allocation9], %s255
          %s257 = sshll.u32 [#allocation8], 4
          %s258 = int_to_ptr.vmem [resolvable:$true] %s257
          %263 = dma.hbm_to_vmem [thread:$0]  %s3, 1024, %s258, [#allocation9], 128, 128, 8
        $region20: #{tpu_custom_call.1} parent=11 // pred_fallthru
          _
        // Predicated region
        $region21: #{tpu_custom_call.1} parent=11 // pred_check
          %p264 = pneg %p153
        $region22: #{tpu_custom_call.1} parent=11 // pred_check_branch
          %266 = sbr.rel (%p264) target = $region24
        $region23: #{tpu_custom_call.1} parent=11 // pred_region
          %s268 = ssub.s32 1024, 1024
          %269 = vsyncadd [#allocation9], %s268
          %s270 = sshll.u32 [#allocation10], 4
          %s271 = int_to_ptr.vmem [resolvable:$true] %s270
          %276 = dma.hbm_to_vmem [thread:$0]  %s4, 1024, %s271, [#allocation9], 128, 128, 8
        $region24: #{tpu_custom_call.1} parent=11 // pred_fallthru
          _
        // Predicated region
        $region25: #{tpu_custom_call.1} parent=11 // pred_check
          %p277 = pneg %p174
        $region26: #{tpu_custom_call.1} parent=11 // pred_check_branch
          %279 = sbr.rel (%p277) target = $region28
        $region27: #{tpu_custom_call.1} parent=11 // pred_region
          %s281 = ssub.s32 1024, 1024
          %282 = vsyncadd [#allocation12], %s281
          %s283 = sshll.u32 [#allocation11], 4
          %s284 = int_to_ptr.vmem [resolvable:$true] %s283
          %289 = dma.hbm_to_vmem [thread:$0]  %s5, 1024, %s284, [#allocation12], 128, 128, 8
        $region28: #{tpu_custom_call.1} parent=11 // pred_fallthru
          _
        // Predicated region
        $region29: #{tpu_custom_call.1} parent=11 // pred_check
          %p290 = pneg %p195
        $region30: #{tpu_custom_call.1} parent=11 // pred_check_branch
          %292 = sbr.rel (%p290) target = $region32
        $region31: #{tpu_custom_call.1} parent=11 // pred_region
          _
        $region32: #{tpu_custom_call.1} parent=11 // pred_fallthru
          _
      $region12: #{tpu_custom_call.1} parent=5 // pred_fallthru
        _
      %p293 = scmp.lt.s32.totalorder %s24, 2
      // Predicated region
      $region33: #{tpu_custom_call.1} parent=5 // pred_check
        %p294 = pneg %p293
      $region34: #{tpu_custom_call.1} parent=5 // pred_check_branch
        %296 = sbr.rel (%p294) target = $region36
      $region35: #{tpu_custom_call.1} parent=5 // pred_region
        // Predicated region
        $region37: #{tpu_custom_call.1} parent=35 // pred_check
          %p297 = pneg %p58
        $region38: #{tpu_custom_call.1} parent=35 // pred_check_branch
          %299 = sbr.rel (%p297) target = $region40
        $region39: #{tpu_custom_call.1} parent=35 // pred_region
          %s300 = sand.u32 %s48, 1
          %s301 = scalar_lea.sflag [#allocation3], %s300
          %s302 = sand.u32 %s48, 1
          %s303 = smul.addr %s302, 64
          %s304 = scalar_lea.vmem [#allocation2], %s303
          %s305 = smul.u32 8, %s32
          %s307 = ssub.s32 1024, 1024
          %308 = vsyncadd %s301, %s307
          %s309 = smul.addr %s31, 8
          %s310 = sadd.s32 %s305, %s309
          %s311 = smul.addr %s310, 128
          %s312 = scalar_lea.hbm %s0, %s311
          %s313 = sshll.u32 %s304, 4
          %s314 = int_to_ptr.vmem [resolvable:$true] %s313
          %319 = dma.hbm_to_vmem [thread:$0]  %s312, 1024, %s314, %s301, 128, 128, 8
        $region40: #{tpu_custom_call.1} parent=35 // pred_fallthru
          _
        // Predicated region
        $region41: #{tpu_custom_call.1} parent=35 // pred_check
          %p320 = pneg %p84
        $region42: #{tpu_custom_call.1} parent=35 // pred_check_branch
          %322 = sbr.rel (%p320) target = $region44
        $region43: #{tpu_custom_call.1} parent=35 // pred_region
          %s323 = sand.u32 %s24, 1
          %s324 = scalar_lea.sflag [#allocation6], %s323
          %s325 = sand.u32 %s74, 1
          %s326 = smul.addr %s325, 64
          %s327 = scalar_lea.vmem [#allocation5], %s326
          %s329 = ssub.s32 1024, 1024
          %330 = vsyncadd %s324, %s329
          %s331 = smul.addr %s31, 8
          %s332 = smul.addr %s331, 128
          %s333 = scalar_lea.hbm %s1, %s332
          %s334 = sshll.u32 %s327, 4
          %s335 = int_to_ptr.vmem [resolvable:$true] %s334
          %340 = dma.hbm_to_vmem [thread:$0]  %s333, 1024, %s335, %s324, 128, 128, 8
        $region44: #{tpu_custom_call.1} parent=35 // pred_fallthru
          _
      $region36: #{tpu_custom_call.1} parent=5 // pred_fallthru
        _
      %p341 = scmp.le.s32.totalorder 1, %s24
      %p342 = scmp.lt.s32.totalorder %s24, 3
      %p343 = pnand %p341, %p342
      %p344 = pneg %p343
      // Predicated region
      $region45: #{tpu_custom_call.1} parent=5 // pred_check
        _
      $region46: #{tpu_custom_call.1} parent=5 // pred_check_branch
        %346 = sbr.rel (%p343) target = $region48
      $region47: #{tpu_custom_call.1} parent=5 // pred_region
        %s347 = ssub.s32 %s24, 1
        %s348 = sand.u32 %s51, 1
        %s349 = scalar_lea.sflag [#allocation3], %s348
        %s350 = sand.u32 %s51, 1
        %s351 = smul.addr %s350, 64
        %s352 = scalar_lea.vmem [#allocation2], %s351
        // Predicated region
        $region49: #{tpu_custom_call.1} parent=47 // pred_check
          %p353 = pneg %p64
        $region50: #{tpu_custom_call.1} parent=47 // pred_check_branch
          %355 = sbr.rel (%p353) target = $region52
        $region51: #{tpu_custom_call.1} parent=47 // pred_region
          %356 = dma.done %s349, 1024
        $region52: #{tpu_custom_call.1} parent=47 // pred_fallthru
          _
        %s357 = sand.u32 %s29, 1
        %s358 = scalar_lea.sflag [#allocation6], %s357
        %s359 = sand.u32 %s77, 1
        %s360 = smul.addr %s359, 64
        %s361 = scalar_lea.vmem [#allocation5], %s360
        // Predicated region
        $region53: #{tpu_custom_call.1} parent=47 // pred_check
          %p362 = pneg %p90
        $region54: #{tpu_custom_call.1} parent=47 // pred_check_branch
          %364 = sbr.rel (%p362) target = $region56
        $region55: #{tpu_custom_call.1} parent=47 // pred_region
          %365 = dma.done %s358, 1024
        $region56: #{tpu_custom_call.1} parent=47 // pred_fallthru
          _
        // Predicated region
        $region57: #{tpu_custom_call.1} parent=47 // pred_check
          %p366 = pneg %p111
        $region58: #{tpu_custom_call.1} parent=47 // pred_check_branch
          %368 = sbr.rel (%p366) target = $region60
        $region59: #{tpu_custom_call.1} parent=47 // pred_region
          %369 = dma.done [#allocation6], 1024
        $region60: #{tpu_custom_call.1} parent=47 // pred_fallthru
          _
        // Predicated region
        $region61: #{tpu_custom_call.1} parent=47 // pred_check
          %p370 = pneg %p132
        $region62: #{tpu_custom_call.1} parent=47 // pred_check_branch
          %372 = sbr.rel (%p370) target = $region64
        $region63: #{tpu_custom_call.1} parent=47 // pred_region
          %373 = dma.done [#allocation9], 1024
        $region64: #{tpu_custom_call.1} parent=47 // pred_fallthru
          _
        // Predicated region
        $region65: #{tpu_custom_call.1} parent=47 // pred_check
          %p374 = pneg %p153
        $region66: #{tpu_custom_call.1} parent=47 // pred_check_branch
          %376 = sbr.rel (%p374) target = $region68
        $region67: #{tpu_custom_call.1} parent=47 // pred_region
          %377 = dma.done [#allocation9], 1024
        $region68: #{tpu_custom_call.1} parent=47 // pred_fallthru
          _
        // Predicated region
        $region69: #{tpu_custom_call.1} parent=47 // pred_check
          %p378 = pneg %p174
        $region70: #{tpu_custom_call.1} parent=47 // pred_check_branch
          %380 = sbr.rel (%p378) target = $region72
        $region71: #{tpu_custom_call.1} parent=47 // pred_region
          %381 = dma.done [#allocation12], 1024
        $region72: #{tpu_custom_call.1} parent=47 // pred_fallthru
          _
        %s382 = sand.u32 %s51, 1
        %s383 = scalar_lea.sflag [#allocation3], %s382
        %s384 = sand.u32 %s51, 1
        %s385 = smul.addr %s384, 64
        %s386 = scalar_lea.vmem [#allocation2], %s385
        %p387 = pneg %p64
        %p388 = pneg %p61
        %s389 = sand.u32 %s29, 1
        %s390 = scalar_lea.sflag [#allocation6], %s389
        %s391 = sand.u32 %s77, 1
        %s392 = smul.addr %s391, 64
        %s393 = scalar_lea.vmem [#allocation5], %s392
        %p394 = pneg %p90
        %p395 = pneg %p87
        %p396 = pneg %p111
        %p397 = pneg %p108
        %p398 = pneg %p132
        %p399 = pneg %p129
        %p400 = pneg %p153
        %p401 = pneg %p150
        %p402 = pneg %p174
        %p403 = pneg %p171
        %p404 = pneg %p195
        %p405 = pneg %p192
        %p406 = pneg %p223
        %p407 = pneg %p220
        %s408 = sand.u32 %s210, 1
        %s409 = scalar_lea.sflag [#allocation4], %s408
        %s410 = sand.u32 %s210, 1
        %s411 = smul.addr %s410, 64
        %s412 = scalar_lea.vmem [#allocation13], %s411
        %s413 = smul.u32 8, %s34
        %s414 = smul.u32 8, %s34
        %v415 = vld [vmem:[%s352] sm:$0xff]
        %v416 = vld [vmem:[%s352 + $0x8] sm:$0xff]
        %v417 = vld [vmem:[%s352 + $0x10] sm:$0xff]
        %v418 = vld [vmem:[%s352 + $0x18] sm:$0xff]
        %v419 = vld [vmem:[%s352 + $0x20] sm:$0xff]
        %v420 = vld [vmem:[%s352 + $0x28] sm:$0xff]
        %v421 = vld [vmem:[%s352 + $0x30] sm:$0xff]
        %v422 = vld [vmem:[%s352 + $0x38] sm:$0xff]
        %v423 = vld [vmem:[%s361] sm:$0xff]
        %v424 = vld [vmem:[%s361 + $0x8] sm:$0xff]
        %v425 = vld [vmem:[%s361 + $0x10] sm:$0xff]
        %v426 = vld [vmem:[%s361 + $0x18] sm:$0xff]
        %v427 = vld [vmem:[%s361 + $0x20] sm:$0xff]
        %v428 = vld [vmem:[%s361 + $0x28] sm:$0xff]
        %v429 = vld [vmem:[%s361 + $0x30] sm:$0xff]
        %v430 = vld [vmem:[%s361 + $0x38] sm:$0xff]
        %v431 = vld [vmem:[#allocation7] sm:$0xff]
        %v432 = vld [vmem:[#allocation7 + $0x8] sm:$0xff]
        %v433 = vld [vmem:[#allocation7 + $0x10] sm:$0xff]
        %v434 = vld [vmem:[#allocation7 + $0x18] sm:$0xff]
        %v435 = vld [vmem:[#allocation7 + $0x20] sm:$0xff]
        %v436 = vld [vmem:[#allocation7 + $0x28] sm:$0xff]
        %v437 = vld [vmem:[#allocation7 + $0x30] sm:$0xff]
        %v438 = vld [vmem:[#allocation7 + $0x38] sm:$0xff]
        %vm439 = vcmask 523264
        %v441 = vsel %vm439, %v415, 0
        %v444 = vsel %vm439, %v416, 0
        %v447 = vsel %vm439, %v417, 0
        %v450 = vsel %vm439, %v418, 0
        %v453 = vsel %vm439, %v419, 0
        %v456 = vsel %vm439, %v420, 0
        %v459 = vsel %vm439, %v421, 0
        %v462 = vsel %vm439, %v422, 0
        %464 = vmatprep.subr.mxu0 0.0
        %465 = vmatpush1.msra.mxu0 0.0
        %466 = vmatprep.subr.mxu0 0.0
        %467 = vmatpush1.msra.mxu0 0.0
        %468 = vmatprep.subr.mxu0 0.0
        %469 = vmatpush1.msra.mxu0 0.0
        %470 = vmatprep.subr.mxu0 0.0
        %471 = vmatpush1.msra.mxu0 0.0
        %472 = vmatprep.subr.mxu0 0.0
        %473 = vmatpush1.msra.mxu0 0.0
        %474 = vmatprep.subr.mxu0 0.0
        %475 = vmatpush1.msra.mxu0 0.0
        %476 = vmatprep.subr.mxu0 0.0
        %477 = vmatpush1.msra.mxu0 0.0
        %478 = vmatprep.subr.mxu0 0.0
        %479 = vmatpush1.msra.mxu0 0.0
        %480 = vmatprep.subr.mxu0 0.0
        %481 = vmatpush1.msra.mxu0 %v438
        %482 = vmatprep.subr.mxu0 0.0
        %483 = vmatpush1.msra.mxu0 %v437
        %484 = vmatprep.subr.mxu0 0.0
        %485 = vmatpush1.msra.mxu0 %v436
        %486 = vmatprep.subr.mxu0 0.0
        %487 = vmatpush1.msra.mxu0 %v435
        %488 = vmatprep.subr.mxu0 0.0
        %489 = vmatpush1.msra.mxu0 %v434
        %490 = vmatprep.subr.mxu0 0.0
        %491 = vmatpush1.msra.mxu0 %v433
        %492 = vmatprep.subr.mxu0 0.0
        %493 = vmatpush1.msra.mxu0 %v432
        %494 = vmatprep.subr.mxu0 0.0
        %495 = vmatpush1.msra.mxu0 %v431
        %496 = vmatprep.subr.mxu0 0.0
        %497 = vmatpush2.msra.mxu0 0.0
        %498 = vmatprep.subr.mxu0 0.0
        %499 = vmatpush2.msra.mxu0 0.0
        %500 = vmatprep.subr.mxu0 0.0
        %501 = vmatpush2.msra.mxu0 0.0
        %502 = vmatprep.subr.mxu0 0.0
        %503 = vmatpush2.msra.mxu0 0.0
        %504 = vmatprep.subr.mxu0 0.0
        %505 = vmatpush2.msra.mxu0 0.0
        %506 = vmatprep.subr.mxu0 0.0
        %507 = vmatpush2.msra.mxu0 0.0
        %508 = vmatprep.subr.mxu0 0.0
        %509 = vmatpush2.msra.mxu0 0.0
        %510 = vmatprep.subr.mxu0 0.0
        %511 = vmatpush2.msra.mxu0 0.0
        %512 = vmatprep.subr.mxu0 0.0
        %513 = vmatpush2.msra.mxu0 0.0
        %514 = vmatprep.subr.mxu0 0.0
        %515 = vmatpush2.msra.mxu0 0.0
        %516 = vmatprep.subr.mxu0 0.0
        %517 = vmatpush2.msra.mxu0 0.0
        %518 = vmatprep.subr.mxu0 0.0
        %519 = vmatpush2.msra.mxu0 0.0
        %520 = vmatprep.subr.mxu0 0.0
        %521 = vmatpush2.msra.mxu0 0.0
        %522 = vmatprep.subr.mxu0 0.0
        %523 = vmatpush2.msra.mxu0 0.0
        %524 = vmatprep.subr.mxu0 0.0
        %525 = vmatpush2.msra.mxu0 0.0
        %526 = vmatprep.subr.mxu0 0.0
        %527 = vmatpush2.msra.mxu0 0.0
        %528 = vmatprep.mubr.f32.mxu0 0.0
        %529 = vmatmul.mubr.f32.gmra.mxu0 %v441
        %v530 = vpop.f32.mrf.mxu0
        %v531 = vadd.f32 0.0, %v530
        %v532 = vpop.f32.mrf.mxu0
        %533 = vmatprep.mubr.f32.mxu0 0.0
        %534 = vmatmul.mubr.f32.gmra.mxu0 %v444
        %v535 = vpop.f32.mrf.mxu0
        %v536 = vadd.f32 0.0, %v535
        %v537 = vpop.f32.mrf.mxu0
        %538 = vmatprep.mubr.f32.mxu0 0.0
        %539 = vmatmul.mubr.f32.gmra.mxu0 %v447
        %v540 = vpop.f32.mrf.mxu0
        %v541 = vadd.f32 0.0, %v540
        %v542 = vpop.f32.mrf.mxu0
        %543 = vmatprep.mubr.f32.mxu0 0.0
        %544 = vmatmul.mubr.f32.gmra.mxu0 %v450
        %v545 = vpop.f32.mrf.mxu0
        %v546 = vadd.f32 0.0, %v545
        %v547 = vpop.f32.mrf.mxu0
        %548 = vmatprep.mubr.f32.mxu0 0.0
        %549 = vmatmul.mubr.f32.gmra.mxu0 %v453
        %v550 = vpop.f32.mrf.mxu0
        %v551 = vadd.f32 0.0, %v550
        %v552 = vpop.f32.mrf.mxu0
        %553 = vmatprep.mubr.f32.mxu0 0.0
        %554 = vmatmul.mubr.f32.gmra.mxu0 %v456
        %v555 = vpop.f32.mrf.mxu0
        %v556 = vadd.f32 0.0, %v555
        %v557 = vpop.f32.mrf.mxu0
        %558 = vmatprep.mubr.f32.mxu0 0.0
        %559 = vmatmul.mubr.f32.gmra.mxu0 %v459
        %v560 = vpop.f32.mrf.mxu0
        %v561 = vadd.f32 0.0, %v560
        %v562 = vpop.f32.mrf.mxu0
        %563 = vmatprep.mubr.f32.mxu0 0.0
        %564 = vmatmul.mubr.f32.gmra.mxu0 %v462
        %v565 = vpop.f32.mrf.mxu0
        %v566 = vadd.f32 0.0, %v565
        %v567 = vpop.f32.mrf.mxu0
        %568 = vdwg.mxu0
        %v569 = vmul.f32 %v531, 0.35355338
        %v570 = vmul.f32 %v536, 0.35355338
        %v571 = vmul.f32 %v541, 0.35355338
        %v572 = vmul.f32 %v546, 0.35355338
        %v573 = vmul.f32 %v551, 0.35355338
        %v574 = vmul.f32 %v556, 0.35355338
        %v575 = vmul.f32 %v561, 0.35355338
        %v576 = vmul.f32 %v566, 0.35355338
        %v577 = vld [vmem:[#allocation8] sm:$0xff]
        %v578 = vld [vmem:[#allocation8 + $0x8] sm:$0xff]
        %v579 = vld [vmem:[#allocation8 + $0x10] sm:$0xff]
        %v580 = vld [vmem:[#allocation8 + $0x18] sm:$0xff]
        %v581 = vld [vmem:[#allocation8 + $0x20] sm:$0xff]
        %v582 = vld [vmem:[#allocation8 + $0x28] sm:$0xff]
        %v583 = vld [vmem:[#allocation8 + $0x30] sm:$0xff]
        %v584 = vld [vmem:[#allocation8 + $0x38] sm:$0xff]
        %v586 = vsel %vm439, %v423, 0
        %v589 = vsel %vm439, %v424, 0
        %v592 = vsel %vm439, %v425, 0
        %v595 = vsel %vm439, %v426, 0
        %v598 = vsel %vm439, %v427, 0
        %v601 = vsel %vm439, %v428, 0
        %v604 = vsel %vm439, %v429, 0
        %v607 = vsel %vm439, %v430, 0
        %609 = vmatprep.subr.mxu0 0.0
        %610 = vmatpush1.msra.mxu0 0.0
        %611 = vmatprep.subr.mxu0 0.0
        %612 = vmatpush1.msra.mxu0 0.0
        %613 = vmatprep.subr.mxu0 0.0
        %614 = vmatpush1.msra.mxu0 0.0
        %615 = vmatprep.subr.mxu0 0.0
        %616 = vmatpush1.msra.mxu0 0.0
        %617 = vmatprep.subr.mxu0 0.0
        %618 = vmatpush1.msra.mxu0 0.0
        %619 = vmatprep.subr.mxu0 0.0
        %620 = vmatpush1.msra.mxu0 0.0
        %621 = vmatprep.subr.mxu0 0.0
        %622 = vmatpush1.msra.mxu0 0.0
        %623 = vmatprep.subr.mxu0 0.0
        %624 = vmatpush1.msra.mxu0 0.0
        %625 = vmatprep.subr.mxu0 0.0
        %626 = vmatpush1.msra.mxu0 %v584
        %627 = vmatprep.subr.mxu0 0.0
        %628 = vmatpush1.msra.mxu0 %v583
        %629 = vmatprep.subr.mxu0 0.0
        %630 = vmatpush1.msra.mxu0 %v582
        %631 = vmatprep.subr.mxu0 0.0
        %632 = vmatpush1.msra.mxu0 %v581
        %633 = vmatprep.subr.mxu0 0.0
        %634 = vmatpush1.msra.mxu0 %v580
        %635 = vmatprep.subr.mxu0 0.0
        %636 = vmatpush1.msra.mxu0 %v579
        %637 = vmatprep.subr.mxu0 0.0
        %638 = vmatpush1.msra.mxu0 %v578
        %639 = vmatprep.subr.mxu0 0.0
        %640 = vmatpush1.msra.mxu0 %v577
        %641 = vmatprep.subr.mxu0 0.0
        %642 = vmatpush2.msra.mxu0 0.0
        %643 = vmatprep.subr.mxu0 0.0
        %644 = vmatpush2.msra.mxu0 0.0
        %645 = vmatprep.subr.mxu0 0.0
        %646 = vmatpush2.msra.mxu0 0.0
        %647 = vmatprep.subr.mxu0 0.0
        %648 = vmatpush2.msra.mxu0 0.0
        %649 = vmatprep.subr.mxu0 0.0
        %650 = vmatpush2.msra.mxu0 0.0
        %651 = vmatprep.subr.mxu0 0.0
        %652 = vmatpush2.msra.mxu0 0.0
        %653 = vmatprep.subr.mxu0 0.0
        %654 = vmatpush2.msra.mxu0 0.0
        %655 = vmatprep.subr.mxu0 0.0
        %656 = vmatpush2.msra.mxu0 0.0
        %657 = vmatprep.subr.mxu0 0.0
        %658 = vmatpush2.msra.mxu0 0.0
        %659 = vmatprep.subr.mxu0 0.0
        %660 = vmatpush2.msra.mxu0 0.0
        %661 = vmatprep.subr.mxu0 0.0
        %662 = vmatpush2.msra.mxu0 0.0
        %663 = vmatprep.subr.mxu0 0.0
        %664 = vmatpush2.msra.mxu0 0.0
        %665 = vmatprep.subr.mxu0 0.0
        %666 = vmatpush2.msra.mxu0 0.0
        %667 = vmatprep.subr.mxu0 0.0
        %668 = vmatpush2.msra.mxu0 0.0
        %669 = vmatprep.subr.mxu0 0.0
        %670 = vmatpush2.msra.mxu0 0.0
        %671 = vmatprep.subr.mxu0 0.0
        %672 = vmatpush2.msra.mxu0 0.0
        %673 = vmatprep.mubr.f32.mxu0 0.0
        %674 = vmatmul.mubr.f32.gmra.mxu0 %v586
        %v675 = vpop.f32.mrf.mxu0
        %v676 = vadd.f32 0.0, %v675
        %v677 = vpop.f32.mrf.mxu0
        %678 = vmatprep.mubr.f32.mxu0 0.0
        %679 = vmatmul.mubr.f32.gmra.mxu0 %v589
        %v680 = vpop.f32.mrf.mxu0
        %v681 = vadd.f32 0.0, %v680
        %v682 = vpop.f32.mrf.mxu0
        %683 = vmatprep.mubr.f32.mxu0 0.0
        %684 = vmatmul.mubr.f32.gmra.mxu0 %v592
        %v685 = vpop.f32.mrf.mxu0
        %v686 = vadd.f32 0.0, %v685
        %v687 = vpop.f32.mrf.mxu0
        %688 = vmatprep.mubr.f32.mxu0 0.0
        %689 = vmatmul.mubr.f32.gmra.mxu0 %v595
        %v690 = vpop.f32.mrf.mxu0
        %v691 = vadd.f32 0.0, %v690
        %v692 = vpop.f32.mrf.mxu0
        %693 = vmatprep.mubr.f32.mxu0 0.0
        %694 = vmatmul.mubr.f32.gmra.mxu0 %v598
        %v695 = vpop.f32.mrf.mxu0
        %v696 = vadd.f32 0.0, %v695
        %v697 = vpop.f32.mrf.mxu0
        %698 = vmatprep.mubr.f32.mxu0 0.0
        %699 = vmatmul.mubr.f32.gmra.mxu0 %v601
        %v700 = vpop.f32.mrf.mxu0
        %v701 = vadd.f32 0.0, %v700
        %v702 = vpop.f32.mrf.mxu0
        %703 = vmatprep.mubr.f32.mxu0 0.0
        %704 = vmatmul.mubr.f32.gmra.mxu0 %v604
        %v705 = vpop.f32.mrf.mxu0
        %v706 = vadd.f32 0.0, %v705
        %v707 = vpop.f32.mrf.mxu0
        %708 = vmatprep.mubr.f32.mxu0 0.0
        %709 = vmatmul.mubr.f32.gmra.mxu0 %v607
        %v710 = vpop.f32.mrf.mxu0
        %v711 = vadd.f32 0.0, %v710
        %v712 = vpop.f32.mrf.mxu0
        %713 = vdwg.mxu0
        %v714 = vld [vmem:[#allocation10] sm:$0xff]
        %v715 = vld [vmem:[#allocation10 + $0x8] sm:$0xff]
        %v716 = vld [vmem:[#allocation10 + $0x10] sm:$0xff]
        %v717 = vld [vmem:[#allocation10 + $0x18] sm:$0xff]
        %v718 = vld [vmem:[#allocation10 + $0x20] sm:$0xff]
        %v719 = vld [vmem:[#allocation10 + $0x28] sm:$0xff]
        %v720 = vld [vmem:[#allocation10 + $0x30] sm:$0xff]
        %v721 = vld [vmem:[#allocation10 + $0x38] sm:$0xff]
        %722 = vmatprep.subr.mxu0 0.0
        %723 = vmatpush1.msra.mxu0 0.0
        %724 = vmatprep.subr.mxu0 0.0
        %725 = vmatpush1.msra.mxu0 0.0
        %726 = vmatprep.subr.mxu0 0.0
        %727 = vmatpush1.msra.mxu0 0.0
        %728 = vmatprep.subr.mxu0 0.0
        %729 = vmatpush1.msra.mxu0 0.0
        %730 = vmatprep.subr.mxu0 0.0
        %731 = vmatpush1.msra.mxu0 0.0
        %732 = vmatprep.subr.mxu0 0.0
        %733 = vmatpush1.msra.mxu0 0.0
        %734 = vmatprep.subr.mxu0 0.0
        %735 = vmatpush1.msra.mxu0 0.0
        %736 = vmatprep.subr.mxu0 0.0
        %737 = vmatpush1.msra.mxu0 0.0
        %738 = vmatprep.subr.mxu0 0.0
        %739 = vmatpush1.msra.mxu0 %v721
        %740 = vmatprep.subr.mxu0 0.0
        %741 = vmatpush1.msra.mxu0 %v720
        %742 = vmatprep.subr.mxu0 0.0
        %743 = vmatpush1.msra.mxu0 %v719
        %744 = vmatprep.subr.mxu0 0.0
        %745 = vmatpush1.msra.mxu0 %v718
        %746 = vmatprep.subr.mxu0 0.0
        %747 = vmatpush1.msra.mxu0 %v717
        %748 = vmatprep.subr.mxu0 0.0
        %749 = vmatpush1.msra.mxu0 %v716
        %750 = vmatprep.subr.mxu0 0.0
        %751 = vmatpush1.msra.mxu0 %v715
        %752 = vmatprep.subr.mxu0 0.0
        %753 = vmatpush1.msra.mxu0 %v714
        %754 = vmatprep.subr.mxu0 0.0
        %755 = vmatpush2.msra.mxu0 0.0
        %756 = vmatprep.subr.mxu0 0.0
        %757 = vmatpush2.msra.mxu0 0.0
        %758 = vmatprep.subr.mxu0 0.0
        %759 = vmatpush2.msra.mxu0 0.0
        %760 = vmatprep.subr.mxu0 0.0
        %761 = vmatpush2.msra.mxu0 0.0
        %762 = vmatprep.subr.mxu0 0.0
        %763 = vmatpush2.msra.mxu0 0.0
        %764 = vmatprep.subr.mxu0 0.0
        %765 = vmatpush2.msra.mxu0 0.0
        %766 = vmatprep.subr.mxu0 0.0
        %767 = vmatpush2.msra.mxu0 0.0
        %768 = vmatprep.subr.mxu0 0.0
        %769 = vmatpush2.msra.mxu0 0.0
        %770 = vmatprep.subr.mxu0 0.0
        %771 = vmatpush2.msra.mxu0 0.0
        %772 = vmatprep.subr.mxu0 0.0
        %773 = vmatpush2.msra.mxu0 0.0
        %774 = vmatprep.subr.mxu0 0.0
        %775 = vmatpush2.msra.mxu0 0.0
        %776 = vmatprep.subr.mxu0 0.0
        %777 = vmatpush2.msra.mxu0 0.0
        %778 = vmatprep.subr.mxu0 0.0
        %779 = vmatpush2.msra.mxu0 0.0
        %780 = vmatprep.subr.mxu0 0.0
        %781 = vmatpush2.msra.mxu0 0.0
        %782 = vmatprep.subr.mxu0 0.0
        %783 = vmatpush2.msra.mxu0 0.0
        %784 = vmatprep.subr.mxu0 0.0
        %785 = vmatpush2.msra.mxu0 0.0
        %786 = vmatprep.mubr.f32.mxu0 0.0
        %787 = vmatmul.mubr.f32.gmra.mxu0 %v586
        %v788 = vpop.f32.mrf.mxu0
        %v789 = vadd.f32 0.0, %v788
        %v790 = vpop.f32.mrf.mxu0
        %791 = vmatprep.mubr.f32.mxu0 0.0
        %792 = vmatmul.mubr.f32.gmra.mxu0 %v589
        %v793 = vpop.f32.mrf.mxu0
        %v794 = vadd.f32 0.0, %v793
        %v795 = vpop.f32.mrf.mxu0
        %796 = vmatprep.mubr.f32.mxu0 0.0
        %797 = vmatmul.mubr.f32.gmra.mxu0 %v592
        %v798 = vpop.f32.mrf.mxu0
        %v799 = vadd.f32 0.0, %v798
        %v800 = vpop.f32.mrf.mxu0
        %801 = vmatprep.mubr.f32.mxu0 0.0
        %802 = vmatmul.mubr.f32.gmra.mxu0 %v595
        %v803 = vpop.f32.mrf.mxu0
        %v804 = vadd.f32 0.0, %v803
        %v805 = vpop.f32.mrf.mxu0
        %806 = vmatprep.mubr.f32.mxu0 0.0
        %807 = vmatmul.mubr.f32.gmra.mxu0 %v598
        %v808 = vpop.f32.mrf.mxu0
        %v809 = vadd.f32 0.0, %v808
        %v810 = vpop.f32.mrf.mxu0
        %811 = vmatprep.mubr.f32.mxu0 0.0
        %812 = vmatmul.mubr.f32.gmra.mxu0 %v601
        %v813 = vpop.f32.mrf.mxu0
        %v814 = vadd.f32 0.0, %v813
        %v815 = vpop.f32.mrf.mxu0
        %816 = vmatprep.mubr.f32.mxu0 0.0
        %817 = vmatmul.mubr.f32.gmra.mxu0 %v604
        %v818 = vpop.f32.mrf.mxu0
        %v819 = vadd.f32 0.0, %v818
        %v820 = vpop.f32.mrf.mxu0
        %821 = vmatprep.mubr.f32.mxu0 0.0
        %822 = vmatmul.mubr.f32.gmra.mxu0 %v607
        %v823 = vpop.f32.mrf.mxu0
        %v824 = vadd.f32 0.0, %v823
        %v825 = vpop.f32.mrf.mxu0
        %826 = vdwg.mxu0
        %v827 = vld [vmem:[#allocation11] sm:$0xff]
        %v828 = vld [vmem:[#allocation11 + $0x8] sm:$0xff]
        %v829 = vld [vmem:[#allocation11 + $0x10] sm:$0xff]
        %v830 = vld [vmem:[#allocation11 + $0x18] sm:$0xff]
        %v831 = vld [vmem:[#allocation11 + $0x20] sm:$0xff]
        %v832 = vld [vmem:[#allocation11 + $0x28] sm:$0xff]
        %v833 = vld [vmem:[#allocation11 + $0x30] sm:$0xff]
        %v834 = vld [vmem:[#allocation11 + $0x38] sm:$0xff]
        %vm835 = vcmask 64512
        %v837 = vsel %vm835, %v569, 0
        %v840 = vsel %vm835, %v570, 0
        %v843 = vsel %vm835, %v571, 0
        %v846 = vsel %vm835, %v572, 0
        %v849 = vsel %vm835, %v573, 0
        %v852 = vsel %vm835, %v574, 0
        %v855 = vsel %vm835, %v575, 0
        %v858 = vsel %vm835, %v576, 0
        %v861 = vsel %vm835, %v676, 0
        %v864 = vsel %vm835, %v681, 0
        %v867 = vsel %vm835, %v686, 0
        %v870 = vsel %vm835, %v691, 0
        %v873 = vsel %vm835, %v696, 0
        %v876 = vsel %vm835, %v701, 0
        %v879 = vsel %vm835, %v706, 0
        %v882 = vsel %vm835, %v711, 0
        %884 = vmatprep.subr.mxu0 0.0
        %885 = vmatpush1.xpose.msra.mxu0 0.0
        %886 = vmatprep.subr.mxu0 0.0
        %887 = vmatpush1.xpose.msra.mxu0 0.0
        %888 = vmatprep.subr.mxu0 0.0
        %889 = vmatpush1.xpose.msra.mxu0 0.0
        %890 = vmatprep.subr.mxu0 0.0
        %891 = vmatpush1.xpose.msra.mxu0 0.0
        %892 = vmatprep.subr.mxu0 0.0
        %893 = vmatpush1.xpose.msra.mxu0 0.0
        %894 = vmatprep.subr.mxu0 0.0
        %895 = vmatpush1.xpose.msra.mxu0 0.0
        %896 = vmatprep.subr.mxu0 0.0
        %897 = vmatpush1.xpose.msra.mxu0 0.0
        %898 = vmatprep.subr.mxu0 0.0
        %899 = vmatpush1.xpose.msra.mxu0 0.0
        %900 = vmatprep.subr.mxu0 0.0
        %901 = vmatpush1.xpose.msra.mxu0 %v882
        %902 = vmatprep.subr.mxu0 0.0
        %903 = vmatpush1.xpose.msra.mxu0 %v879
        %904 = vmatprep.subr.mxu0 0.0
        %905 = vmatpush1.xpose.msra.mxu0 %v876
        %906 = vmatprep.subr.mxu0 0.0
        %907 = vmatpush1.xpose.msra.mxu0 %v873
        %908 = vmatprep.subr.mxu0 0.0
        %909 = vmatpush1.xpose.msra.mxu0 %v870
        %910 = vmatprep.subr.mxu0 0.0
        %911 = vmatpush1.xpose.msra.mxu0 %v867
        %912 = vmatprep.subr.mxu0 0.0
        %913 = vmatpush1.xpose.msra.mxu0 %v864
        %914 = vmatprep.subr.mxu0 0.0
        %915 = vmatpush1.xpose.msra.mxu0 %v861
        %916 = vmatprep.subr.mxu0 0.0
        %917 = vmatpush2.xpose.msra.mxu0 0.0
        %918 = vmatprep.subr.mxu0 0.0
        %919 = vmatpush2.xpose.msra.mxu0 0.0
        %920 = vmatprep.subr.mxu0 0.0
        %921 = vmatpush2.xpose.msra.mxu0 0.0
        %922 = vmatprep.subr.mxu0 0.0
        %923 = vmatpush2.xpose.msra.mxu0 0.0
        %924 = vmatprep.subr.mxu0 0.0
        %925 = vmatpush2.xpose.msra.mxu0 0.0
        %926 = vmatprep.subr.mxu0 0.0
        %927 = vmatpush2.xpose.msra.mxu0 0.0
        %928 = vmatprep.subr.mxu0 0.0
        %929 = vmatpush2.xpose.msra.mxu0 0.0
        %930 = vmatprep.subr.mxu0 0.0
        %931 = vmatpush2.xpose.msra.mxu0 0.0
        %932 = vmatprep.subr.mxu0 0.0
        %933 = vmatpush2.xpose.msra.mxu0 0.0
        %934 = vmatprep.subr.mxu0 0.0
        %935 = vmatpush2.xpose.msra.mxu0 0.0
        %936 = vmatprep.subr.mxu0 0.0
        %937 = vmatpush2.xpose.msra.mxu0 0.0
        %938 = vmatprep.subr.mxu0 0.0
        %939 = vmatpush2.xpose.msra.mxu0 0.0
        %940 = vmatprep.subr.mxu0 0.0
        %941 = vmatpush2.xpose.msra.mxu0 0.0
        %942 = vmatprep.subr.mxu0 0.0
        %943 = vmatpush2.xpose.msra.mxu0 0.0
        %944 = vmatprep.subr.mxu0 0.0
        %945 = vmatpush2.xpose.msra.mxu0 0.0
        %946 = vmatprep.subr.mxu0 0.0
        %947 = vmatpush2.xpose.msra.mxu0 0.0
        %948 = vmatprep.mubr.f32.mxu0 0.0
        %949 = vmatmul.mubr.f32.gmra.mxu0 %v837
        %v950 = vpop.f32.mrf.mxu0
        %v951 = vadd.f32 0.0, %v950
        %v952 = vpop.f32.mrf.mxu0
        %953 = vmatprep.mubr.f32.mxu0 0.0
        %954 = vmatmul.mubr.f32.gmra.mxu0 %v840
        %v955 = vpop.f32.mrf.mxu0
        %v956 = vadd.f32 0.0, %v955
        %v957 = vpop.f32.mrf.mxu0
        %958 = vmatprep.mubr.f32.mxu0 0.0
        %959 = vmatmul.mubr.f32.gmra.mxu0 %v843
        %v960 = vpop.f32.mrf.mxu0
        %v961 = vadd.f32 0.0, %v960
        %v962 = vpop.f32.mrf.mxu0
        %963 = vmatprep.mubr.f32.mxu0 0.0
        %964 = vmatmul.mubr.f32.gmra.mxu0 %v846
        %v965 = vpop.f32.mrf.mxu0
        %v966 = vadd.f32 0.0, %v965
        %v967 = vpop.f32.mrf.mxu0
        %968 = vmatprep.mubr.f32.mxu0 0.0
        %969 = vmatmul.mubr.f32.gmra.mxu0 %v849
        %v970 = vpop.f32.mrf.mxu0
        %v971 = vadd.f32 0.0, %v970
        %v972 = vpop.f32.mrf.mxu0
        %973 = vmatprep.mubr.f32.mxu0 0.0
        %974 = vmatmul.mubr.f32.gmra.mxu0 %v852
        %v975 = vpop.f32.mrf.mxu0
        %v976 = vadd.f32 0.0, %v975
        %v977 = vpop.f32.mrf.mxu0
        %978 = vmatprep.mubr.f32.mxu0 0.0
        %979 = vmatmul.mubr.f32.gmra.mxu0 %v855
        %v980 = vpop.f32.mrf.mxu0
        %v981 = vadd.f32 0.0, %v980
        %v982 = vpop.f32.mrf.mxu0
        %983 = vmatprep.mubr.f32.mxu0 0.0
        %984 = vmatmul.mubr.f32.gmra.mxu0 %v858
        %v985 = vpop.f32.mrf.mxu0
        %v986 = vadd.f32 0.0, %v985
        %v987 = vpop.f32.mrf.mxu0
        %988 = vdwg.mxu0
        %v989 = vsel %vm439, %v951, -inf
        %990 = vmax.xlane.f32.xlu0 %v989
        %v991 = vpop.xlane.xlu0 %990
        %v992 = vsel %vm439, %v956, -inf
        %993 = vmax.xlane.f32.xlu0 %v992
        %v994 = vpop.xlane.xlu0 %993
        %v995 = vsel %vm439, %v961, -inf
        %996 = vmax.xlane.f32.xlu0 %v995
        %v997 = vpop.xlane.xlu0 %996
        %v998 = vsel %vm439, %v966, -inf
        %999 = vmax.xlane.f32.xlu0 %v998
        %v1000 = vpop.xlane.xlu0 %999
        %v1001 = vsel %vm439, %v971, -inf
        %1002 = vmax.xlane.f32.xlu0 %v1001
        %v1003 = vpop.xlane.xlu0 %1002
        %v1004 = vsel %vm439, %v976, -inf
        %1005 = vmax.xlane.f32.xlu0 %v1004
        %v1006 = vpop.xlane.xlu0 %1005
        %v1007 = vsel %vm439, %v981, -inf
        %1008 = vmax.xlane.f32.xlu0 %v1007
        %v1009 = vpop.xlane.xlu0 %1008
        %v1010 = vsel %vm439, %v986, -inf
        %1011 = vmax.xlane.f32.xlu0 %v1010
        %v1012 = vpop.xlane.xlu0 %1011
        %v1013 = vsub.f32 %v951, %v991
        %v1014 = vsub.f32 %v956, %v994
        %v1015 = vsub.f32 %v961, %v997
        %v1016 = vsub.f32 %v966, %v1000
        %v1017 = vsub.f32 %v971, %v1003
        %v1018 = vsub.f32 %v976, %v1006
        %v1019 = vsub.f32 %v981, %v1009
        %v1020 = vsub.f32 %v986, %v1012
        %v1021 = vmul.f32 %v1013, 1.442695
        %v1022 = vpow.pop %v1021
        %v1023 = vmul.f32 %v1014, 1.442695
        %v1024 = vpow.pop %v1023
        %v1025 = vmul.f32 %v1015, 1.442695
        %v1026 = vpow.pop %v1025
        %v1027 = vmul.f32 %v1016, 1.442695
        %v1028 = vpow.pop %v1027
        %v1029 = vmul.f32 %v1017, 1.442695
        %v1030 = vpow.pop %v1029
        %v1031 = vmul.f32 %v1018, 1.442695
        %v1032 = vpow.pop %v1031
        %v1033 = vmul.f32 %v1019, 1.442695
        %v1034 = vpow.pop %v1033
        %v1035 = vmul.f32 %v1020, 1.442695
        %v1036 = vpow.pop %v1035
        %v1037 = vsel %vm439, %v1022, 0.0
        %1038 = vadd.xlane.f32.xlu0 %v1037
        %v1039 = vpop.xlane.xlu0 %1038
        %v1040 = vsel %vm439, %v1024, 0.0
        %1041 = vadd.xlane.f32.xlu0 %v1040
        %v1042 = vpop.xlane.xlu0 %1041
        %v1043 = vsel %vm439, %v1026, 0.0
        %1044 = vadd.xlane.f32.xlu0 %v1043
        %v1045 = vpop.xlane.xlu0 %1044
        %v1046 = vsel %vm439, %v1028, 0.0
        %1047 = vadd.xlane.f32.xlu0 %v1046
        %v1048 = vpop.xlane.xlu0 %1047
        %v1049 = vsel %vm439, %v1030, 0.0
        %1050 = vadd.xlane.f32.xlu0 %v1049
        %v1051 = vpop.xlane.xlu0 %1050
        %v1052 = vsel %vm439, %v1032, 0.0
        %1053 = vadd.xlane.f32.xlu0 %v1052
        %v1054 = vpop.xlane.xlu0 %1053
        %v1055 = vsel %vm439, %v1034, 0.0
        %1056 = vadd.xlane.f32.xlu0 %v1055
        %v1057 = vpop.xlane.xlu0 %1056
        %v1058 = vsel %vm439, %v1036, 0.0
        %1059 = vadd.xlane.f32.xlu0 %v1058
        %v1060 = vpop.xlane.xlu0 %1059
        %v1062 = vsel %vm439, %v1022, 0
        %v1065 = vsel %vm439, %v1024, 0
        %v1068 = vsel %vm439, %v1026, 0
        %v1071 = vsel %vm439, %v1028, 0
        %v1074 = vsel %vm439, %v1030, 0
        %v1077 = vsel %vm439, %v1032, 0
        %v1080 = vsel %vm439, %v1034, 0
        %v1083 = vsel %vm439, %v1036, 0
        %1085 = vmatprep.subr.mxu0 0.0
        %1086 = vmatpush1.msra.mxu0 0.0
        %1087 = vmatprep.subr.mxu0 0.0
        %1088 = vmatpush1.msra.mxu0 0.0
        %1089 = vmatprep.subr.mxu0 0.0
        %1090 = vmatpush1.msra.mxu0 0.0
        %1091 = vmatprep.subr.mxu0 0.0
        %1092 = vmatpush1.msra.mxu0 0.0
        %1093 = vmatprep.subr.mxu0 0.0
        %1094 = vmatpush1.msra.mxu0 0.0
        %1095 = vmatprep.subr.mxu0 0.0
        %1096 = vmatpush1.msra.mxu0 0.0
        %1097 = vmatprep.subr.mxu0 0.0
        %1098 = vmatpush1.msra.mxu0 0.0
        %1099 = vmatprep.subr.mxu0 0.0
        %1100 = vmatpush1.msra.mxu0 0.0
        %1101 = vmatprep.subr.mxu0 0.0
        %1102 = vmatpush1.msra.mxu0 %v824
        %1103 = vmatprep.subr.mxu0 0.0
        %1104 = vmatpush1.msra.mxu0 %v819
        %1105 = vmatprep.subr.mxu0 0.0
        %1106 = vmatpush1.msra.mxu0 %v814
        %1107 = vmatprep.subr.mxu0 0.0
        %1108 = vmatpush1.msra.mxu0 %v809
        %1109 = vmatprep.subr.mxu0 0.0
        %1110 = vmatpush1.msra.mxu0 %v804
        %1111 = vmatprep.subr.mxu0 0.0
        %1112 = vmatpush1.msra.mxu0 %v799
        %1113 = vmatprep.subr.mxu0 0.0
        %1114 = vmatpush1.msra.mxu0 %v794
        %1115 = vmatprep.subr.mxu0 0.0
        %1116 = vmatpush1.msra.mxu0 %v789
        %1117 = vmatprep.subr.mxu0 0.0
        %1118 = vmatpush2.msra.mxu0 0.0
        %1119 = vmatprep.subr.mxu0 0.0
        %1120 = vmatpush2.msra.mxu0 0.0
        %1121 = vmatprep.subr.mxu0 0.0
        %1122 = vmatpush2.msra.mxu0 0.0
        %1123 = vmatprep.subr.mxu0 0.0
        %1124 = vmatpush2.msra.mxu0 0.0
        %1125 = vmatprep.subr.mxu0 0.0
        %1126 = vmatpush2.msra.mxu0 0.0
        %1127 = vmatprep.subr.mxu0 0.0
        %1128 = vmatpush2.msra.mxu0 0.0
        %1129 = vmatprep.subr.mxu0 0.0
        %1130 = vmatpush2.msra.mxu0 0.0
        %1131 = vmatprep.subr.mxu0 0.0
        %1132 = vmatpush2.msra.mxu0 0.0
        %1133 = vmatprep.subr.mxu0 0.0
        %1134 = vmatpush2.msra.mxu0 0.0
        %1135 = vmatprep.subr.mxu0 0.0
        %1136 = vmatpush2.msra.mxu0 0.0
        %1137 = vmatprep.subr.mxu0 0.0
        %1138 = vmatpush2.msra.mxu0 0.0
        %1139 = vmatprep.subr.mxu0 0.0
        %1140 = vmatpush2.msra.mxu0 0.0
        %1141 = vmatprep.subr.mxu0 0.0
        %1142 = vmatpush2.msra.mxu0 0.0
        %1143 = vmatprep.subr.mxu0 0.0
        %1144 = vmatpush2.msra.mxu0 0.0
        %1145 = vmatprep.subr.mxu0 0.0
        %1146 = vmatpush2.msra.mxu0 0.0
        %1147 = vmatprep.subr.mxu0 0.0
        %1148 = vmatpush2.msra.mxu0 0.0
        %1149 = vmatprep.mubr.f32.mxu0 0.0
        %1150 = vmatmul.mubr.f32.gmra.mxu0 %v1062
        %v1151 = vpop.f32.mrf.mxu0
        %v1152 = vadd.f32 0.0, %v1151
        %v1153 = vpop.f32.mrf.mxu0
        %1154 = vmatprep.mubr.f32.mxu0 0.0
        %1155 = vmatmul.mubr.f32.gmra.mxu0 %v1065
        %v1156 = vpop.f32.mrf.mxu0
        %v1157 = vadd.f32 0.0, %v1156
        %v1158 = vpop.f32.mrf.mxu0
        %1159 = vmatprep.mubr.f32.mxu0 0.0
        %1160 = vmatmul.mubr.f32.gmra.mxu0 %v1068
        %v1161 = vpop.f32.mrf.mxu0
        %v1162 = vadd.f32 0.0, %v1161
        %v1163 = vpop.f32.mrf.mxu0
        %1164 = vmatprep.mubr.f32.mxu0 0.0
        %1165 = vmatmul.mubr.f32.gmra.mxu0 %v1071
        %v1166 = vpop.f32.mrf.mxu0
        %v1167 = vadd.f32 0.0, %v1166
        %v1168 = vpop.f32.mrf.mxu0
        %1169 = vmatprep.mubr.f32.mxu0 0.0
        %1170 = vmatmul.mubr.f32.gmra.mxu0 %v1074
        %v1171 = vpop.f32.mrf.mxu0
        %v1172 = vadd.f32 0.0, %v1171
        %v1173 = vpop.f32.mrf.mxu0
        %1174 = vmatprep.mubr.f32.mxu0 0.0
        %1175 = vmatmul.mubr.f32.gmra.mxu0 %v1077
        %v1176 = vpop.f32.mrf.mxu0
        %v1177 = vadd.f32 0.0, %v1176
        %v1178 = vpop.f32.mrf.mxu0
        %1179 = vmatprep.mubr.f32.mxu0 0.0
        %1180 = vmatmul.mubr.f32.gmra.mxu0 %v1080
        %v1181 = vpop.f32.mrf.mxu0
        %v1182 = vadd.f32 0.0, %v1181
        %v1183 = vpop.f32.mrf.mxu0
        %1184 = vmatprep.mubr.f32.mxu0 0.0
        %1185 = vmatmul.mubr.f32.gmra.mxu0 %v1083
        %v1186 = vpop.f32.mrf.mxu0
        %v1187 = vadd.f32 0.0, %v1186
        %v1188 = vpop.f32.mrf.mxu0
        %1189 = vdwg.mxu0
        %v1190 = vrcp.pop %v1039
        %v1191 = vrcp.pop %v1042
        %v1192 = vrcp.pop %v1045
        %v1193 = vrcp.pop %v1048
        %v1194 = vrcp.pop %v1051
        %v1195 = vrcp.pop %v1054
        %v1196 = vrcp.pop %v1057
        %v1197 = vrcp.pop %v1060
        %v1198 = vmul.f32 %v1152, %v1190
        %v1199 = vmul.f32 %v1157, %v1191
        %v1200 = vmul.f32 %v1162, %v1192
        %v1201 = vmul.f32 %v1167, %v1193
        %v1202 = vmul.f32 %v1172, %v1194
        %v1203 = vmul.f32 %v1177, %v1195
        %v1204 = vmul.f32 %v1182, %v1196
        %v1205 = vmul.f32 %v1187, %v1197
        %1206 = vrot.lane.b32.xlu0 %v569, 120
        %v1207 = vpop.permute.xlu0 %1206
        %1208 = vrot.lane.b32.xlu0 %v570, 120
        %v1209 = vpop.permute.xlu0 %1208
        %1210 = vrot.lane.b32.xlu0 %v571, 120
        %v1211 = vpop.permute.xlu0 %1210
        %1212 = vrot.lane.b32.xlu0 %v572, 120
        %v1213 = vpop.permute.xlu0 %1212
        %1214 = vrot.lane.b32.xlu0 %v573, 120
        %v1215 = vpop.permute.xlu0 %1214
        %1216 = vrot.lane.b32.xlu0 %v574, 120
        %v1217 = vpop.permute.xlu0 %1216
        %1218 = vrot.lane.b32.xlu0 %v575, 120
        %v1219 = vpop.permute.xlu0 %1218
        %1220 = vrot.lane.b32.xlu0 %v576, 120
        %v1221 = vpop.permute.xlu0 %1220
        %1222 = vrot.lane.b32.xlu0 %v676, 120
        %v1223 = vpop.permute.xlu0 %1222
        %1224 = vrot.lane.b32.xlu0 %v681, 120
        %v1225 = vpop.permute.xlu0 %1224
        %1226 = vrot.lane.b32.xlu0 %v686, 120
        %v1227 = vpop.permute.xlu0 %1226
        %1228 = vrot.lane.b32.xlu0 %v691, 120
        %v1229 = vpop.permute.xlu0 %1228
        %1230 = vrot.lane.b32.xlu0 %v696, 120
        %v1231 = vpop.permute.xlu0 %1230
        %1232 = vrot.lane.b32.xlu0 %v701, 120
        %v1233 = vpop.permute.xlu0 %1232
        %1234 = vrot.lane.b32.xlu0 %v706, 120
        %v1235 = vpop.permute.xlu0 %1234
        %1236 = vrot.lane.b32.xlu0 %v711, 120
        %v1237 = vpop.permute.xlu0 %1236
        %v1238 = vsel %vm835, %v1207, 0
        %v1240 = vsel %vm835, %v1209, 0
        %v1242 = vsel %vm835, %v1211, 0
        %v1244 = vsel %vm835, %v1213, 0
        %v1246 = vsel %vm835, %v1215, 0
        %v1248 = vsel %vm835, %v1217, 0
        %v1250 = vsel %vm835, %v1219, 0
        %v1252 = vsel %vm835, %v1221, 0
        %v1254 = vsel %vm835, %v1223, 0
        %v1256 = vsel %vm835, %v1225, 0
        %v1258 = vsel %vm835, %v1227, 0
        %v1260 = vsel %vm835, %v1229, 0
        %v1262 = vsel %vm835, %v1231, 0
        %v1264 = vsel %vm835, %v1233, 0
        %v1266 = vsel %vm835, %v1235, 0
        %v1268 = vsel %vm835, %v1237, 0
        %1270 = vmatprep.subr.mxu0 0.0
        %1271 = vmatpush1.xpose.msra.mxu0 0.0
        %1272 = vmatprep.subr.mxu0 0.0
        %1273 = vmatpush1.xpose.msra.mxu0 0.0
        %1274 = vmatprep.subr.mxu0 0.0
        %1275 = vmatpush1.xpose.msra.mxu0 0.0
        %1276 = vmatprep.subr.mxu0 0.0
        %1277 = vmatpush1.xpose.msra.mxu0 0.0
        %1278 = vmatprep.subr.mxu0 0.0
        %1279 = vmatpush1.xpose.msra.mxu0 0.0
        %1280 = vmatprep.subr.mxu0 0.0
        %1281 = vmatpush1.xpose.msra.mxu0 0.0
        %1282 = vmatprep.subr.mxu0 0.0
        %1283 = vmatpush1.xpose.msra.mxu0 0.0
        %1284 = vmatprep.subr.mxu0 0.0
        %1285 = vmatpush1.xpose.msra.mxu0 0.0
        %1286 = vmatprep.subr.mxu0 0.0
        %1287 = vmatpush1.xpose.msra.mxu0 %v1268
        %1288 = vmatprep.subr.mxu0 0.0
        %1289 = vmatpush1.xpose.msra.mxu0 %v1266
        %1290 = vmatprep.subr.mxu0 0.0
        %1291 = vmatpush1.xpose.msra.mxu0 %v1264
        %1292 = vmatprep.subr.mxu0 0.0
        %1293 = vmatpush1.xpose.msra.mxu0 %v1262
        %1294 = vmatprep.subr.mxu0 0.0
        %1295 = vmatpush1.xpose.msra.mxu0 %v1260
        %1296 = vmatprep.subr.mxu0 0.0
        %1297 = vmatpush1.xpose.msra.mxu0 %v1258
        %1298 = vmatprep.subr.mxu0 0.0
        %1299 = vmatpush1.xpose.msra.mxu0 %v1256
        %1300 = vmatprep.subr.mxu0 0.0
        %1301 = vmatpush1.xpose.msra.mxu0 %v1254
        %1302 = vmatprep.subr.mxu0 0.0
        %1303 = vmatpush2.xpose.msra.mxu0 0.0
        %1304 = vmatprep.subr.mxu0 0.0
        %1305 = vmatpush2.xpose.msra.mxu0 0.0
        %1306 = vmatprep.subr.mxu0 0.0
        %1307 = vmatpush2.xpose.msra.mxu0 0.0
        %1308 = vmatprep.subr.mxu0 0.0
        %1309 = vmatpush2.xpose.msra.mxu0 0.0
        %1310 = vmatprep.subr.mxu0 0.0
        %1311 = vmatpush2.xpose.msra.mxu0 0.0
        %1312 = vmatprep.subr.mxu0 0.0
        %1313 = vmatpush2.xpose.msra.mxu0 0.0
        %1314 = vmatprep.subr.mxu0 0.0
        %1315 = vmatpush2.xpose.msra.mxu0 0.0
        %1316 = vmatprep.subr.mxu0 0.0
        %1317 = vmatpush2.xpose.msra.mxu0 0.0
        %1318 = vmatprep.subr.mxu0 0.0
        %1319 = vmatpush2.xpose.msra.mxu0 0.0
        %1320 = vmatprep.subr.mxu0 0.0
        %1321 = vmatpush2.xpose.msra.mxu0 0.0
        %1322 = vmatprep.subr.mxu0 0.0
        %1323 = vmatpush2.xpose.msra.mxu0 0.0
        %1324 = vmatprep.subr.mxu0 0.0
        %1325 = vmatpush2.xpose.msra.mxu0 0.0
        %1326 = vmatprep.subr.mxu0 0.0
        %1327 = vmatpush2.xpose.msra.mxu0 0.0
        %1328 = vmatprep.subr.mxu0 0.0
        %1329 = vmatpush2.xpose.msra.mxu0 0.0
        %1330 = vmatprep.subr.mxu0 0.0
        %1331 = vmatpush2.xpose.msra.mxu0 0.0
        %1332 = vmatprep.subr.mxu0 0.0
        %1333 = vmatpush2.xpose.msra.mxu0 0.0
        %1334 = vmatprep.mubr.f32.mxu0 0.0
        %1335 = vmatmul.mubr.f32.gmra.mxu0 %v1238
        %v1336 = vpop.f32.mrf.mxu0
        %v1337 = vadd.f32 0.0, %v1336
        %v1338 = vpop.f32.mrf.mxu0
        %1339 = vmatprep.mubr.f32.mxu0 0.0
        %1340 = vmatmul.mubr.f32.gmra.mxu0 %v1240
        %v1341 = vpop.f32.mrf.mxu0
        %v1342 = vadd.f32 0.0, %v1341
        %v1343 = vpop.f32.mrf.mxu0
        %1344 = vmatprep.mubr.f32.mxu0 0.0
        %1345 = vmatmul.mubr.f32.gmra.mxu0 %v1242
        %v1346 = vpop.f32.mrf.mxu0
        %v1347 = vadd.f32 0.0, %v1346
        %v1348 = vpop.f32.mrf.mxu0
        %1349 = vmatprep.mubr.f32.mxu0 0.0
        %1350 = vmatmul.mubr.f32.gmra.mxu0 %v1244
        %v1351 = vpop.f32.mrf.mxu0
        %v1352 = vadd.f32 0.0, %v1351
        %v1353 = vpop.f32.mrf.mxu0
        %1354 = vmatprep.mubr.f32.mxu0 0.0
        %1355 = vmatmul.mubr.f32.gmra.mxu0 %v1246
        %v1356 = vpop.f32.mrf.mxu0
        %v1357 = vadd.f32 0.0, %v1356
        %v1358 = vpop.f32.mrf.mxu0
        %1359 = vmatprep.mubr.f32.mxu0 0.0
        %1360 = vmatmul.mubr.f32.gmra.mxu0 %v1248
        %v1361 = vpop.f32.mrf.mxu0
        %v1362 = vadd.f32 0.0, %v1361
        %v1363 = vpop.f32.mrf.mxu0
        %1364 = vmatprep.mubr.f32.mxu0 0.0
        %1365 = vmatmul.mubr.f32.gmra.mxu0 %v1250
        %v1366 = vpop.f32.mrf.mxu0
        %v1367 = vadd.f32 0.0, %v1366
        %v1368 = vpop.f32.mrf.mxu0
        %1369 = vmatprep.mubr.f32.mxu0 0.0
        %1370 = vmatmul.mubr.f32.gmra.mxu0 %v1252
        %v1371 = vpop.f32.mrf.mxu0
        %v1372 = vadd.f32 0.0, %v1371
        %v1373 = vpop.f32.mrf.mxu0
        %1374 = vdwg.mxu0
        %v1375 = vsel %vm439, %v1337, -inf
        %1376 = vmax.xlane.f32.xlu0 %v1375
        %v1377 = vpop.xlane.xlu0 %1376
        %v1378 = vsel %vm439, %v1342, -inf
        %1379 = vmax.xlane.f32.xlu0 %v1378
        %v1380 = vpop.xlane.xlu0 %1379
        %v1381 = vsel %vm439, %v1347, -inf
        %1382 = vmax.xlane.f32.xlu0 %v1381
        %v1383 = vpop.xlane.xlu0 %1382
        %v1384 = vsel %vm439, %v1352, -inf
        %1385 = vmax.xlane.f32.xlu0 %v1384
        %v1386 = vpop.xlane.xlu0 %1385
        %v1387 = vsel %vm439, %v1357, -inf
        %1388 = vmax.xlane.f32.xlu0 %v1387
        %v1389 = vpop.xlane.xlu0 %1388
        %v1390 = vsel %vm439, %v1362, -inf
        %1391 = vmax.xlane.f32.xlu0 %v1390
        %v1392 = vpop.xlane.xlu0 %1391
        %v1393 = vsel %vm439, %v1367, -inf
        %1394 = vmax.xlane.f32.xlu0 %v1393
        %v1395 = vpop.xlane.xlu0 %1394
        %v1396 = vsel %vm439, %v1372, -inf
        %1397 = vmax.xlane.f32.xlu0 %v1396
        %v1398 = vpop.xlane.xlu0 %1397
        %v1399 = vsub.f32 %v1337, %v1377
        %v1400 = vsub.f32 %v1342, %v1380
        %v1401 = vsub.f32 %v1347, %v1383
        %v1402 = vsub.f32 %v1352, %v1386
        %v1403 = vsub.f32 %v1357, %v1389
        %v1404 = vsub.f32 %v1362, %v1392
        %v1405 = vsub.f32 %v1367, %v1395
        %v1406 = vsub.f32 %v1372, %v1398
        %v1407 = vmul.f32 %v1399, 1.442695
        %v1408 = vpow.pop %v1407
        %v1409 = vmul.f32 %v1400, 1.442695
        %v1410 = vpow.pop %v1409
        %v1411 = vmul.f32 %v1401, 1.442695
        %v1412 = vpow.pop %v1411
        %v1413 = vmul.f32 %v1402, 1.442695
        %v1414 = vpow.pop %v1413
        %v1415 = vmul.f32 %v1403, 1.442695
        %v1416 = vpow.pop %v1415
        %v1417 = vmul.f32 %v1404, 1.442695
        %v1418 = vpow.pop %v1417
        %v1419 = vmul.f32 %v1405, 1.442695
        %v1420 = vpow.pop %v1419
        %v1421 = vmul.f32 %v1406, 1.442695
        %v1422 = vpow.pop %v1421
        %v1423 = vsel %vm439, %v1408, 0.0
        %1424 = vadd.xlane.f32.xlu0 %v1423
        %v1425 = vpop.xlane.xlu0 %1424
        %v1426 = vsel %vm439, %v1410, 0.0
        %1427 = vadd.xlane.f32.xlu0 %v1426
        %v1428 = vpop.xlane.xlu0 %1427
        %v1429 = vsel %vm439, %v1412, 0.0
        %1430 = vadd.xlane.f32.xlu0 %v1429
        %v1431 = vpop.xlane.xlu0 %1430
        %v1432 = vsel %vm439, %v1414, 0.0
        %1433 = vadd.xlane.f32.xlu0 %v1432
        %v1434 = vpop.xlane.xlu0 %1433
        %v1435 = vsel %vm439, %v1416, 0.0
        %1436 = vadd.xlane.f32.xlu0 %v1435
        %v1437 = vpop.xlane.xlu0 %1436
        %v1438 = vsel %vm439, %v1418, 0.0
        %1439 = vadd.xlane.f32.xlu0 %v1438
        %v1440 = vpop.xlane.xlu0 %1439
        %v1441 = vsel %vm439, %v1420, 0.0
        %1442 = vadd.xlane.f32.xlu0 %v1441
        %v1443 = vpop.xlane.xlu0 %1442
        %v1444 = vsel %vm439, %v1422, 0.0
        %1445 = vadd.xlane.f32.xlu0 %v1444
        %v1446 = vpop.xlane.xlu0 %1445
        %1455 = vrot.lane.b32.xlu0 %v789, 120
        %v1456 = vpop.permute.xlu0 %1455
        %1457 = vrot.lane.b32.xlu0 %v794, 120
        %v1458 = vpop.permute.xlu0 %1457
        %1459 = vrot.lane.b32.xlu0 %v799, 120
        %v1460 = vpop.permute.xlu0 %1459
        %1461 = vrot.lane.b32.xlu0 %v804, 120
        %v1462 = vpop.permute.xlu0 %1461
        %1463 = vrot.lane.b32.xlu0 %v809, 120
        %v1464 = vpop.permute.xlu0 %1463
        %1465 = vrot.lane.b32.xlu0 %v814, 120
        %v1466 = vpop.permute.xlu0 %1465
        %1467 = vrot.lane.b32.xlu0 %v819, 120
        %v1468 = vpop.permute.xlu0 %1467
        %1469 = vrot.lane.b32.xlu0 %v824, 120
        %v1470 = vpop.permute.xlu0 %1469
        %v1480 = vsel %vm439, %v1408, 0
        %v1483 = vsel %vm439, %v1410, 0
        %v1486 = vsel %vm439, %v1412, 0
        %v1489 = vsel %vm439, %v1414, 0
        %v1492 = vsel %vm439, %v1416, 0
        %v1495 = vsel %vm439, %v1418, 0
        %v1498 = vsel %vm439, %v1420, 0
        %v1501 = vsel %vm439, %v1422, 0
        %1503 = vmatprep.subr.mxu0 0.0
        %1504 = vmatpush1.msra.mxu0 0.0
        %1505 = vmatprep.subr.mxu0 0.0
        %1506 = vmatpush1.msra.mxu0 0.0
        %1507 = vmatprep.subr.mxu0 0.0
        %1508 = vmatpush1.msra.mxu0 0.0
        %1509 = vmatprep.subr.mxu0 0.0
        %1510 = vmatpush1.msra.mxu0 0.0
        %1511 = vmatprep.subr.mxu0 0.0
        %1512 = vmatpush1.msra.mxu0 0.0
        %1513 = vmatprep.subr.mxu0 0.0
        %1514 = vmatpush1.msra.mxu0 0.0
        %1515 = vmatprep.subr.mxu0 0.0
        %1516 = vmatpush1.msra.mxu0 0.0
        %1517 = vmatprep.subr.mxu0 0.0
        %1518 = vmatpush1.msra.mxu0 0.0
        %1519 = vmatprep.subr.mxu0 0.0
        %1520 = vmatpush1.msra.mxu0 %v1470
        %1521 = vmatprep.subr.mxu0 0.0
        %1522 = vmatpush1.msra.mxu0 %v1468
        %1523 = vmatprep.subr.mxu0 0.0
        %1524 = vmatpush1.msra.mxu0 %v1466
        %1525 = vmatprep.subr.mxu0 0.0
        %1526 = vmatpush1.msra.mxu0 %v1464
        %1527 = vmatprep.subr.mxu0 0.0
        %1528 = vmatpush1.msra.mxu0 %v1462
        %1529 = vmatprep.subr.mxu0 0.0
        %1530 = vmatpush1.msra.mxu0 %v1460
        %1531 = vmatprep.subr.mxu0 0.0
        %1532 = vmatpush1.msra.mxu0 %v1458
        %1533 = vmatprep.subr.mxu0 0.0
        %1534 = vmatpush1.msra.mxu0 %v1456
        %1535 = vmatprep.subr.mxu0 0.0
        %1536 = vmatpush2.msra.mxu0 0.0
        %1537 = vmatprep.subr.mxu0 0.0
        %1538 = vmatpush2.msra.mxu0 0.0
        %1539 = vmatprep.subr.mxu0 0.0
        %1540 = vmatpush2.msra.mxu0 0.0
        %1541 = vmatprep.subr.mxu0 0.0
        %1542 = vmatpush2.msra.mxu0 0.0
        %1543 = vmatprep.subr.mxu0 0.0
        %1544 = vmatpush2.msra.mxu0 0.0
        %1545 = vmatprep.subr.mxu0 0.0
        %1546 = vmatpush2.msra.mxu0 0.0
        %1547 = vmatprep.subr.mxu0 0.0
        %1548 = vmatpush2.msra.mxu0 0.0
        %1549 = vmatprep.subr.mxu0 0.0
        %1550 = vmatpush2.msra.mxu0 0.0
        %1551 = vmatprep.subr.mxu0 0.0
        %1552 = vmatpush2.msra.mxu0 0.0
        %1553 = vmatprep.subr.mxu0 0.0
        %1554 = vmatpush2.msra.mxu0 0.0
        %1555 = vmatprep.subr.mxu0 0.0
        %1556 = vmatpush2.msra.mxu0 0.0
        %1557 = vmatprep.subr.mxu0 0.0
        %1558 = vmatpush2.msra.mxu0 0.0
        %1559 = vmatprep.subr.mxu0 0.0
        %1560 = vmatpush2.msra.mxu0 0.0
        %1561 = vmatprep.subr.mxu0 0.0
        %1562 = vmatpush2.msra.mxu0 0.0
        %1563 = vmatprep.subr.mxu0 0.0
        %1564 = vmatpush2.msra.mxu0 0.0
        %1565 = vmatprep.subr.mxu0 0.0
        %1566 = vmatpush2.msra.mxu0 0.0
        %1567 = vmatprep.mubr.f32.mxu0 0.0
        %1568 = vmatmul.mubr.f32.gmra.mxu0 %v1480
        %v1569 = vpop.f32.mrf.mxu0
        %v1570 = vadd.f32 0.0, %v1569
        %v1571 = vpop.f32.mrf.mxu0
        %1572 = vmatprep.mubr.f32.mxu0 0.0
        %1573 = vmatmul.mubr.f32.gmra.mxu0 %v1483
        %v1574 = vpop.f32.mrf.mxu0
        %v1575 = vadd.f32 0.0, %v1574
        %v1576 = vpop.f32.mrf.mxu0
        %1577 = vmatprep.mubr.f32.mxu0 0.0
        %1578 = vmatmul.mubr.f32.gmra.mxu0 %v1486
        %v1579 = vpop.f32.mrf.mxu0
        %v1580 = vadd.f32 0.0, %v1579
        %v1581 = vpop.f32.mrf.mxu0
        %1582 = vmatprep.mubr.f32.mxu0 0.0
        %1583 = vmatmul.mubr.f32.gmra.mxu0 %v1489
        %v1584 = vpop.f32.mrf.mxu0
        %v1585 = vadd.f32 0.0, %v1584
        %v1586 = vpop.f32.mrf.mxu0
        %1587 = vmatprep.mubr.f32.mxu0 0.0
        %1588 = vmatmul.mubr.f32.gmra.mxu0 %v1492
        %v1589 = vpop.f32.mrf.mxu0
        %v1590 = vadd.f32 0.0, %v1589
        %v1591 = vpop.f32.mrf.mxu0
        %1592 = vmatprep.mubr.f32.mxu0 0.0
        %1593 = vmatmul.mubr.f32.gmra.mxu0 %v1495
        %v1594 = vpop.f32.mrf.mxu0
        %v1595 = vadd.f32 0.0, %v1594
        %v1596 = vpop.f32.mrf.mxu0
        %1597 = vmatprep.mubr.f32.mxu0 0.0
        %1598 = vmatmul.mubr.f32.gmra.mxu0 %v1498
        %v1599 = vpop.f32.mrf.mxu0
        %v1600 = vadd.f32 0.0, %v1599
        %v1601 = vpop.f32.mrf.mxu0
        %1602 = vmatprep.mubr.f32.mxu0 0.0
        %1603 = vmatmul.mubr.f32.gmra.mxu0 %v1501
        %v1604 = vpop.f32.mrf.mxu0
        %v1605 = vadd.f32 0.0, %v1604
        %v1606 = vpop.f32.mrf.mxu0
        %1607 = vdwg.mxu0
        %v1608 = vrcp.pop %v1425
        %v1609 = vrcp.pop %v1428
        %v1610 = vrcp.pop %v1431
        %v1611 = vrcp.pop %v1434
        %v1612 = vrcp.pop %v1437
        %v1613 = vrcp.pop %v1440
        %v1614 = vrcp.pop %v1443
        %v1615 = vrcp.pop %v1446
        %v1616 = vmul.f32 %v1570, %v1608
        %v1617 = vmul.f32 %v1575, %v1609
        %v1618 = vmul.f32 %v1580, %v1610
        %v1619 = vmul.f32 %v1585, %v1611
        %v1620 = vmul.f32 %v1590, %v1612
        %v1621 = vmul.f32 %v1595, %v1613
        %v1622 = vmul.f32 %v1600, %v1614
        %v1623 = vmul.f32 %v1605, %v1615
        %v1625 = vsel %vm835, %v1616, 0
        %v1628 = vsel %vm835, %v1617, 0
        %v1631 = vsel %vm835, %v1618, 0
        %v1634 = vsel %vm835, %v1619, 0
        %v1637 = vsel %vm835, %v1620, 0
        %v1640 = vsel %vm835, %v1621, 0
        %v1643 = vsel %vm835, %v1622, 0
        %v1646 = vsel %vm835, %v1623, 0
        %1648 = vmatprep.subr.mxu0 0.0
        %1649 = vmatpush1.msra.mxu0 0.0
        %1650 = vmatprep.subr.mxu0 0.0
        %1651 = vmatpush1.msra.mxu0 0.0
        %1652 = vmatprep.subr.mxu0 0.0
        %1653 = vmatpush1.msra.mxu0 0.0
        %1654 = vmatprep.subr.mxu0 0.0
        %1655 = vmatpush1.msra.mxu0 0.0
        %1656 = vmatprep.subr.mxu0 0.0
        %1657 = vmatpush1.msra.mxu0 0.0
        %1658 = vmatprep.subr.mxu0 0.0
        %1659 = vmatpush1.msra.mxu0 0.0
        %1660 = vmatprep.subr.mxu0 0.0
        %1661 = vmatpush1.msra.mxu0 0.0
        %1662 = vmatprep.subr.mxu0 0.0
        %1663 = vmatpush1.msra.mxu0 0.0
        %1664 = vmatprep.subr.mxu0 0.0
        %1665 = vmatpush1.msra.mxu0 0.0
        %1666 = vmatprep.subr.mxu0 0.0
        %1667 = vmatpush1.msra.mxu0 0.0
        %1668 = vmatprep.subr.mxu0 0.0
        %1669 = vmatpush1.msra.mxu0 0.0
        %1670 = vmatprep.subr.mxu0 0.0
        %1671 = vmatpush1.msra.mxu0 0.0
        %1672 = vmatprep.subr.mxu0 0.0
        %1673 = vmatpush1.msra.mxu0 0.0
        %1674 = vmatprep.subr.mxu0 0.0
        %1675 = vmatpush1.msra.mxu0 0.0
        %1676 = vmatprep.subr.mxu0 0.0
        %1677 = vmatpush1.msra.mxu0 0.0
        %1678 = vmatprep.subr.mxu0 0.0
        %1679 = vmatpush1.msra.mxu0 %v828
        %1680 = vmatprep.subr.mxu0 0.0
        %1681 = vmatpush2.msra.mxu0 0.0
        %1682 = vmatprep.subr.mxu0 0.0
        %1683 = vmatpush2.msra.mxu0 0.0
        %1684 = vmatprep.subr.mxu0 0.0
        %1685 = vmatpush2.msra.mxu0 0.0
        %1686 = vmatprep.subr.mxu0 0.0
        %1687 = vmatpush2.msra.mxu0 0.0
        %1688 = vmatprep.subr.mxu0 0.0
        %1689 = vmatpush2.msra.mxu0 0.0
        %1690 = vmatprep.subr.mxu0 0.0
        %1691 = vmatpush2.msra.mxu0 0.0
        %1692 = vmatprep.subr.mxu0 0.0
        %1693 = vmatpush2.msra.mxu0 0.0
        %1694 = vmatprep.subr.mxu0 0.0
        %1695 = vmatpush2.msra.mxu0 0.0
        %1696 = vmatprep.subr.mxu0 0.0
        %1697 = vmatpush2.msra.mxu0 0.0
        %1698 = vmatprep.subr.mxu0 0.0
        %1699 = vmatpush2.msra.mxu0 0.0
        %1700 = vmatprep.subr.mxu0 0.0
        %1701 = vmatpush2.msra.mxu0 0.0
        %1702 = vmatprep.subr.mxu0 0.0
        %1703 = vmatpush2.msra.mxu0 0.0
        %1704 = vmatprep.subr.mxu0 0.0
        %1705 = vmatpush2.msra.mxu0 0.0
        %1706 = vmatprep.subr.mxu0 0.0
        %1707 = vmatpush2.msra.mxu0 0.0
        %1708 = vmatprep.subr.mxu0 0.0
        %1709 = vmatpush2.msra.mxu0 0.0
        %1710 = vmatprep.subr.mxu0 0.0
        %1711 = vmatpush2.msra.mxu0 0.0
        %1712 = vmatprep.mubr.f32.mxu0 0.0
        %1713 = vmatmul.mubr.f32.gmra.mxu0 %v1625
        %v1714 = vpop.f32.mrf.mxu0
        %v1715 = vadd.f32 0.0, %v1714
        %v1716 = vpop.f32.mrf.mxu0
        %1717 = vmatprep.mubr.f32.mxu0 0.0
        %1718 = vmatmul.mubr.f32.gmra.mxu0 %v1628
        %v1719 = vpop.f32.mrf.mxu0
        %v1720 = vadd.f32 0.0, %v1719
        %v1721 = vpop.f32.mrf.mxu0
        %1722 = vmatprep.mubr.f32.mxu0 0.0
        %1723 = vmatmul.mubr.f32.gmra.mxu0 %v1631
        %v1724 = vpop.f32.mrf.mxu0
        %v1725 = vadd.f32 0.0, %v1724
        %v1726 = vpop.f32.mrf.mxu0
        %1727 = vmatprep.mubr.f32.mxu0 0.0
        %1728 = vmatmul.mubr.f32.gmra.mxu0 %v1634
        %v1729 = vpop.f32.mrf.mxu0
        %v1730 = vadd.f32 0.0, %v1729
        %v1731 = vpop.f32.mrf.mxu0
        %1732 = vmatprep.mubr.f32.mxu0 0.0
        %1733 = vmatmul.mubr.f32.gmra.mxu0 %v1637
        %v1734 = vpop.f32.mrf.mxu0
        %v1735 = vadd.f32 0.0, %v1734
        %v1736 = vpop.f32.mrf.mxu0
        %1737 = vmatprep.mubr.f32.mxu0 0.0
        %1738 = vmatmul.mubr.f32.gmra.mxu0 %v1640
        %v1739 = vpop.f32.mrf.mxu0
        %v1740 = vadd.f32 0.0, %v1739
        %v1741 = vpop.f32.mrf.mxu0
        %1742 = vmatprep.mubr.f32.mxu0 0.0
        %1743 = vmatmul.mubr.f32.gmra.mxu0 %v1643
        %v1744 = vpop.f32.mrf.mxu0
        %v1745 = vadd.f32 0.0, %v1744
        %v1746 = vpop.f32.mrf.mxu0
        %1747 = vmatprep.mubr.f32.mxu0 0.0
        %1748 = vmatmul.mubr.f32.gmra.mxu0 %v1646
        %v1749 = vpop.f32.mrf.mxu0
        %v1750 = vadd.f32 0.0, %v1749
        %v1751 = vpop.f32.mrf.mxu0
        %1752 = vdwg.mxu0
        %v1754 = vsel %vm835, %v1198, 0
        %v1757 = vsel %vm835, %v1199, 0
        %v1760 = vsel %vm835, %v1200, 0
        %v1763 = vsel %vm835, %v1201, 0
        %v1766 = vsel %vm835, %v1202, 0
        %v1769 = vsel %vm835, %v1203, 0
        %v1772 = vsel %vm835, %v1204, 0
        %v1775 = vsel %vm835, %v1205, 0
        %1777 = vmatprep.subr.mxu0 0.0
        %1778 = vmatpush1.msra.mxu0 0.0
        %1779 = vmatprep.subr.mxu0 0.0
        %1780 = vmatpush1.msra.mxu0 0.0
        %1781 = vmatprep.subr.mxu0 0.0
        %1782 = vmatpush1.msra.mxu0 0.0
        %1783 = vmatprep.subr.mxu0 0.0
        %1784 = vmatpush1.msra.mxu0 0.0
        %1785 = vmatprep.subr.mxu0 0.0
        %1786 = vmatpush1.msra.mxu0 0.0
        %1787 = vmatprep.subr.mxu0 0.0
        %1788 = vmatpush1.msra.mxu0 0.0
        %1789 = vmatprep.subr.mxu0 0.0
        %1790 = vmatpush1.msra.mxu0 0.0
        %1791 = vmatprep.subr.mxu0 0.0
        %1792 = vmatpush1.msra.mxu0 0.0
        %1793 = vmatprep.subr.mxu0 0.0
        %1794 = vmatpush1.msra.mxu0 0.0
        %1795 = vmatprep.subr.mxu0 0.0
        %1796 = vmatpush1.msra.mxu0 0.0
        %1797 = vmatprep.subr.mxu0 0.0
        %1798 = vmatpush1.msra.mxu0 0.0
        %1799 = vmatprep.subr.mxu0 0.0
        %1800 = vmatpush1.msra.mxu0 0.0
        %1801 = vmatprep.subr.mxu0 0.0
        %1802 = vmatpush1.msra.mxu0 0.0
        %1803 = vmatprep.subr.mxu0 0.0
        %1804 = vmatpush1.msra.mxu0 0.0
        %1805 = vmatprep.subr.mxu0 0.0
        %1806 = vmatpush1.msra.mxu0 0.0
        %1807 = vmatprep.subr.mxu0 0.0
        %1808 = vmatpush1.msra.mxu0 %v827
        %1809 = vmatprep.subr.mxu0 0.0
        %1810 = vmatpush2.msra.mxu0 0.0
        %1811 = vmatprep.subr.mxu0 0.0
        %1812 = vmatpush2.msra.mxu0 0.0
        %1813 = vmatprep.subr.mxu0 0.0
        %1814 = vmatpush2.msra.mxu0 0.0
        %1815 = vmatprep.subr.mxu0 0.0
        %1816 = vmatpush2.msra.mxu0 0.0
        %1817 = vmatprep.subr.mxu0 0.0
        %1818 = vmatpush2.msra.mxu0 0.0
        %1819 = vmatprep.subr.mxu0 0.0
        %1820 = vmatpush2.msra.mxu0 0.0
        %1821 = vmatprep.subr.mxu0 0.0
        %1822 = vmatpush2.msra.mxu0 0.0
        %1823 = vmatprep.subr.mxu0 0.0
        %1824 = vmatpush2.msra.mxu0 0.0
        %1825 = vmatprep.subr.mxu0 0.0
        %1826 = vmatpush2.msra.mxu0 0.0
        %1827 = vmatprep.subr.mxu0 0.0
        %1828 = vmatpush2.msra.mxu0 0.0
        %1829 = vmatprep.subr.mxu0 0.0
        %1830 = vmatpush2.msra.mxu0 0.0
        %1831 = vmatprep.subr.mxu0 0.0
        %1832 = vmatpush2.msra.mxu0 0.0
        %1833 = vmatprep.subr.mxu0 0.0
        %1834 = vmatpush2.msra.mxu0 0.0
        %1835 = vmatprep.subr.mxu0 0.0
        %1836 = vmatpush2.msra.mxu0 0.0
        %1837 = vmatprep.subr.mxu0 0.0
        %1838 = vmatpush2.msra.mxu0 0.0
        %1839 = vmatprep.subr.mxu0 0.0
        %1840 = vmatpush2.msra.mxu0 0.0
        %1841 = vmatprep.mubr.f32.mxu0 0.0
        %1842 = vmatmul.mubr.f32.gmra.mxu0 %v1754
        %v1843 = vpop.f32.mrf.mxu0
        %v1844 = vadd.f32 %v1715, %v1843
        %v1845 = vpop.f32.mrf.mxu0
        %1846 = vmatprep.mubr.f32.mxu0 0.0
        %1847 = vmatmul.mubr.f32.gmra.mxu0 %v1757
        %v1848 = vpop.f32.mrf.mxu0
        %v1849 = vadd.f32 %v1720, %v1848
        %v1850 = vpop.f32.mrf.mxu0
        %1851 = vmatprep.mubr.f32.mxu0 0.0
        %1852 = vmatmul.mubr.f32.gmra.mxu0 %v1760
        %v1853 = vpop.f32.mrf.mxu0
        %v1854 = vadd.f32 %v1725, %v1853
        %v1855 = vpop.f32.mrf.mxu0
        %1856 = vmatprep.mubr.f32.mxu0 0.0
        %1857 = vmatmul.mubr.f32.gmra.mxu0 %v1763
        %v1858 = vpop.f32.mrf.mxu0
        %v1859 = vadd.f32 %v1730, %v1858
        %v1860 = vpop.f32.mrf.mxu0
        %1861 = vmatprep.mubr.f32.mxu0 0.0
        %1862 = vmatmul.mubr.f32.gmra.mxu0 %v1766
        %v1863 = vpop.f32.mrf.mxu0
        %v1864 = vadd.f32 %v1735, %v1863
        %v1865 = vpop.f32.mrf.mxu0
        %1866 = vmatprep.mubr.f32.mxu0 0.0
        %1867 = vmatmul.mubr.f32.gmra.mxu0 %v1769
        %v1868 = vpop.f32.mrf.mxu0
        %v1869 = vadd.f32 %v1740, %v1868
        %v1870 = vpop.f32.mrf.mxu0
        %1871 = vmatprep.mubr.f32.mxu0 0.0
        %1872 = vmatmul.mubr.f32.gmra.mxu0 %v1772
        %v1873 = vpop.f32.mrf.mxu0
        %v1874 = vadd.f32 %v1745, %v1873
        %v1875 = vpop.f32.mrf.mxu0
        %1876 = vmatprep.mubr.f32.mxu0 0.0
        %1877 = vmatmul.mubr.f32.gmra.mxu0 %v1775
        %v1878 = vpop.f32.mrf.mxu0
        %v1879 = vadd.f32 %v1750, %v1878
        %v1880 = vpop.f32.mrf.mxu0
        %1881 = vdwg.mxu0
        %1882 = vrot.lane.b32.xlu0 %v569, 112
        %v1883 = vpop.permute.xlu0 %1882
        %1884 = vrot.lane.b32.xlu0 %v570, 112
        %v1885 = vpop.permute.xlu0 %1884
        %1886 = vrot.lane.b32.xlu0 %v571, 112
        %v1887 = vpop.permute.xlu0 %1886
        %1888 = vrot.lane.b32.xlu0 %v572, 112
        %v1889 = vpop.permute.xlu0 %1888
        %1890 = vrot.lane.b32.xlu0 %v573, 112
        %v1891 = vpop.permute.xlu0 %1890
        %1892 = vrot.lane.b32.xlu0 %v574, 112
        %v1893 = vpop.permute.xlu0 %1892
        %1894 = vrot.lane.b32.xlu0 %v575, 112
        %v1895 = vpop.permute.xlu0 %1894
        %1896 = vrot.lane.b32.xlu0 %v576, 112
        %v1897 = vpop.permute.xlu0 %1896
        %1898 = vrot.lane.b32.xlu0 %v676, 112
        %v1899 = vpop.permute.xlu0 %1898
        %1900 = vrot.lane.b32.xlu0 %v681, 112
        %v1901 = vpop.permute.xlu0 %1900
        %1902 = vrot.lane.b32.xlu0 %v686, 112
        %v1903 = vpop.permute.xlu0 %1902
        %1904 = vrot.lane.b32.xlu0 %v691, 112
        %v1905 = vpop.permute.xlu0 %1904
        %1906 = vrot.lane.b32.xlu0 %v696, 112
        %v1907 = vpop.permute.xlu0 %1906
        %1908 = vrot.lane.b32.xlu0 %v701, 112
        %v1909 = vpop.permute.xlu0 %1908
        %1910 = vrot.lane.b32.xlu0 %v706, 112
        %v1911 = vpop.permute.xlu0 %1910
        %1912 = vrot.lane.b32.xlu0 %v711, 112
        %v1913 = vpop.permute.xlu0 %1912
        %v1914 = vsel %vm835, %v1883, 0
        %v1916 = vsel %vm835, %v1885, 0
        %v1918 = vsel %vm835, %v1887, 0
        %v1920 = vsel %vm835, %v1889, 0
        %v1922 = vsel %vm835, %v1891, 0
        %v1924 = vsel %vm835, %v1893, 0
        %v1926 = vsel %vm835, %v1895, 0
        %v1928 = vsel %vm835, %v1897, 0
        %v1930 = vsel %vm835, %v1899, 0
        %v1932 = vsel %vm835, %v1901, 0
        %v1934 = vsel %vm835, %v1903, 0
        %v1936 = vsel %vm835, %v1905, 0
        %v1938 = vsel %vm835, %v1907, 0
        %v1940 = vsel %vm835, %v1909, 0
        %v1942 = vsel %vm835, %v1911, 0
        %v1944 = vsel %vm835, %v1913, 0
        %1946 = vmatprep.subr.mxu0 0.0
        %1947 = vmatpush1.xpose.msra.mxu0 0.0
        %1948 = vmatprep.subr.mxu0 0.0
        %1949 = vmatpush1.xpose.msra.mxu0 0.0
        %1950 = vmatprep.subr.mxu0 0.0
        %1951 = vmatpush1.xpose.msra.mxu0 0.0
        %1952 = vmatprep.subr.mxu0 0.0
        %1953 = vmatpush1.xpose.msra.mxu0 0.0
        %1954 = vmatprep.subr.mxu0 0.0
        %1955 = vmatpush1.xpose.msra.mxu0 0.0
        %1956 = vmatprep.subr.mxu0 0.0
        %1957 = vmatpush1.xpose.msra.mxu0 0.0
        %1958 = vmatprep.subr.mxu0 0.0
        %1959 = vmatpush1.xpose.msra.mxu0 0.0
        %1960 = vmatprep.subr.mxu0 0.0
        %1961 = vmatpush1.xpose.msra.mxu0 0.0
        %1962 = vmatprep.subr.mxu0 0.0
        %1963 = vmatpush1.xpose.msra.mxu0 %v1944
        %1964 = vmatprep.subr.mxu0 0.0
        %1965 = vmatpush1.xpose.msra.mxu0 %v1942
        %1966 = vmatprep.subr.mxu0 0.0
        %1967 = vmatpush1.xpose.msra.mxu0 %v1940
        %1968 = vmatprep.subr.mxu0 0.0
        %1969 = vmatpush1.xpose.msra.mxu0 %v1938
        %1970 = vmatprep.subr.mxu0 0.0
        %1971 = vmatpush1.xpose.msra.mxu0 %v1936
        %1972 = vmatprep.subr.mxu0 0.0
        %1973 = vmatpush1.xpose.msra.mxu0 %v1934
        %1974 = vmatprep.subr.mxu0 0.0
        %1975 = vmatpush1.xpose.msra.mxu0 %v1932
        %1976 = vmatprep.subr.mxu0 0.0
        %1977 = vmatpush1.xpose.msra.mxu0 %v1930
        %1978 = vmatprep.subr.mxu0 0.0
        %1979 = vmatpush2.xpose.msra.mxu0 0.0
        %1980 = vmatprep.subr.mxu0 0.0
        %1981 = vmatpush2.xpose.msra.mxu0 0.0
        %1982 = vmatprep.subr.mxu0 0.0
        %1983 = vmatpush2.xpose.msra.mxu0 0.0
        %1984 = vmatprep.subr.mxu0 0.0
        %1985 = vmatpush2.xpose.msra.mxu0 0.0
        %1986 = vmatprep.subr.mxu0 0.0
        %1987 = vmatpush2.xpose.msra.mxu0 0.0
        %1988 = vmatprep.subr.mxu0 0.0
        %1989 = vmatpush2.xpose.msra.mxu0 0.0
        %1990 = vmatprep.subr.mxu0 0.0
        %1991 = vmatpush2.xpose.msra.mxu0 0.0
        %1992 = vmatprep.subr.mxu0 0.0
        %1993 = vmatpush2.xpose.msra.mxu0 0.0
        %1994 = vmatprep.subr.mxu0 0.0
        %1995 = vmatpush2.xpose.msra.mxu0 0.0
        %1996 = vmatprep.subr.mxu0 0.0
        %1997 = vmatpush2.xpose.msra.mxu0 0.0
        %1998 = vmatprep.subr.mxu0 0.0
        %1999 = vmatpush2.xpose.msra.mxu0 0.0
        %2000 = vmatprep.subr.mxu0 0.0
        %2001 = vmatpush2.xpose.msra.mxu0 0.0
        %2002 = vmatprep.subr.mxu0 0.0
        %2003 = vmatpush2.xpose.msra.mxu0 0.0
        %2004 = vmatprep.subr.mxu0 0.0
        %2005 = vmatpush2.xpose.msra.mxu0 0.0
        %2006 = vmatprep.subr.mxu0 0.0
        %2007 = vmatpush2.xpose.msra.mxu0 0.0
        %2008 = vmatprep.subr.mxu0 0.0
        %2009 = vmatpush2.xpose.msra.mxu0 0.0
        %2010 = vmatprep.mubr.f32.mxu0 0.0
        %2011 = vmatmul.mubr.f32.gmra.mxu0 %v1914
        %v2012 = vpop.f32.mrf.mxu0
        %v2013 = vadd.f32 0.0, %v2012
        %v2014 = vpop.f32.mrf.mxu0
        %2015 = vmatprep.mubr.f32.mxu0 0.0
        %2016 = vmatmul.mubr.f32.gmra.mxu0 %v1916
        %v2017 = vpop.f32.mrf.mxu0
        %v2018 = vadd.f32 0.0, %v2017
        %v2019 = vpop.f32.mrf.mxu0
        %2020 = vmatprep.mubr.f32.mxu0 0.0
        %2021 = vmatmul.mubr.f32.gmra.mxu0 %v1918
        %v2022 = vpop.f32.mrf.mxu0
        %v2023 = vadd.f32 0.0, %v2022
        %v2024 = vpop.f32.mrf.mxu0
        %2025 = vmatprep.mubr.f32.mxu0 0.0
        %2026 = vmatmul.mubr.f32.gmra.mxu0 %v1920
        %v2027 = vpop.f32.mrf.mxu0
        %v2028 = vadd.f32 0.0, %v2027
        %v2029 = vpop.f32.mrf.mxu0
        %2030 = vmatprep.mubr.f32.mxu0 0.0
        %2031 = vmatmul.mubr.f32.gmra.mxu0 %v1922
        %v2032 = vpop.f32.mrf.mxu0
        %v2033 = vadd.f32 0.0, %v2032
        %v2034 = vpop.f32.mrf.mxu0
        %2035 = vmatprep.mubr.f32.mxu0 0.0
        %2036 = vmatmul.mubr.f32.gmra.mxu0 %v1924
        %v2037 = vpop.f32.mrf.mxu0
        %v2038 = vadd.f32 0.0, %v2037
        %v2039 = vpop.f32.mrf.mxu0
        %2040 = vmatprep.mubr.f32.mxu0 0.0
        %2041 = vmatmul.mubr.f32.gmra.mxu0 %v1926
        %v2042 = vpop.f32.mrf.mxu0
        %v2043 = vadd.f32 0.0, %v2042
        %v2044 = vpop.f32.mrf.mxu0
        %2045 = vmatprep.mubr.f32.mxu0 0.0
        %2046 = vmatmul.mubr.f32.gmra.mxu0 %v1928
        %v2047 = vpop.f32.mrf.mxu0
        %v2048 = vadd.f32 0.0, %v2047
        %v2049 = vpop.f32.mrf.mxu0
        %2050 = vdwg.mxu0
        %v2051 = vsel %vm439, %v2013, -inf
        %2052 = vmax.xlane.f32.xlu0 %v2051
        %v2053 = vpop.xlane.xlu0 %2052
        %v2054 = vsel %vm439, %v2018, -inf
        %2055 = vmax.xlane.f32.xlu0 %v2054
        %v2056 = vpop.xlane.xlu0 %2055
        %v2057 = vsel %vm439, %v2023, -inf
        %2058 = vmax.xlane.f32.xlu0 %v2057
        %v2059 = vpop.xlane.xlu0 %2058
        %v2060 = vsel %vm439, %v2028, -inf
        %2061 = vmax.xlane.f32.xlu0 %v2060
        %v2062 = vpop.xlane.xlu0 %2061
        %v2063 = vsel %vm439, %v2033, -inf
        %2064 = vmax.xlane.f32.xlu0 %v2063
        %v2065 = vpop.xlane.xlu0 %2064
        %v2066 = vsel %vm439, %v2038, -inf
        %2067 = vmax.xlane.f32.xlu0 %v2066
        %v2068 = vpop.xlane.xlu0 %2067
        %v2069 = vsel %vm439, %v2043, -inf
        %2070 = vmax.xlane.f32.xlu0 %v2069
        %v2071 = vpop.xlane.xlu0 %2070
        %v2072 = vsel %vm439, %v2048, -inf
        %2073 = vmax.xlane.f32.xlu0 %v2072
        %v2074 = vpop.xlane.xlu0 %2073
        %v2075 = vsub.f32 %v2013, %v2053
        %v2076 = vsub.f32 %v2018, %v2056
        %v2077 = vsub.f32 %v2023, %v2059
        %v2078 = vsub.f32 %v2028, %v2062
        %v2079 = vsub.f32 %v2033, %v2065
        %v2080 = vsub.f32 %v2038, %v2068
        %v2081 = vsub.f32 %v2043, %v2071
        %v2082 = vsub.f32 %v2048, %v2074
        %v2083 = vmul.f32 %v2075, 1.442695
        %v2084 = vpow.pop %v2083
        %v2085 = vmul.f32 %v2076, 1.442695
        %v2086 = vpow.pop %v2085
        %v2087 = vmul.f32 %v2077, 1.442695
        %v2088 = vpow.pop %v2087
        %v2089 = vmul.f32 %v2078, 1.442695
        %v2090 = vpow.pop %v2089
        %v2091 = vmul.f32 %v2079, 1.442695
        %v2092 = vpow.pop %v2091
        %v2093 = vmul.f32 %v2080, 1.442695
        %v2094 = vpow.pop %v2093
        %v2095 = vmul.f32 %v2081, 1.442695
        %v2096 = vpow.pop %v2095
        %v2097 = vmul.f32 %v2082, 1.442695
        %v2098 = vpow.pop %v2097
        %v2099 = vsel %vm439, %v2084, 0.0
        %2100 = vadd.xlane.f32.xlu0 %v2099
        %v2101 = vpop.xlane.xlu0 %2100
        %v2102 = vsel %vm439, %v2086, 0.0
        %2103 = vadd.xlane.f32.xlu0 %v2102
        %v2104 = vpop.xlane.xlu0 %2103
        %v2105 = vsel %vm439, %v2088, 0.0
        %2106 = vadd.xlane.f32.xlu0 %v2105
        %v2107 = vpop.xlane.xlu0 %2106
        %v2108 = vsel %vm439, %v2090, 0.0
        %2109 = vadd.xlane.f32.xlu0 %v2108
        %v2110 = vpop.xlane.xlu0 %2109
        %v2111 = vsel %vm439, %v2092, 0.0
        %2112 = vadd.xlane.f32.xlu0 %v2111
        %v2113 = vpop.xlane.xlu0 %2112
        %v2114 = vsel %vm439, %v2094, 0.0
        %2115 = vadd.xlane.f32.xlu0 %v2114
        %v2116 = vpop.xlane.xlu0 %2115
        %v2117 = vsel %vm439, %v2096, 0.0
        %2118 = vadd.xlane.f32.xlu0 %v2117
        %v2119 = vpop.xlane.xlu0 %2118
        %v2120 = vsel %vm439, %v2098, 0.0
        %2121 = vadd.xlane.f32.xlu0 %v2120
        %v2122 = vpop.xlane.xlu0 %2121
        %2123 = vrot.lane.b32.xlu0 %v789, 112
        %v2124 = vpop.permute.xlu0 %2123
        %2125 = vrot.lane.b32.xlu0 %v794, 112
        %v2126 = vpop.permute.xlu0 %2125
        %2127 = vrot.lane.b32.xlu0 %v799, 112
        %v2128 = vpop.permute.xlu0 %2127
        %2129 = vrot.lane.b32.xlu0 %v804, 112
        %v2130 = vpop.permute.xlu0 %2129
        %2131 = vrot.lane.b32.xlu0 %v809, 112
        %v2132 = vpop.permute.xlu0 %2131
        %2133 = vrot.lane.b32.xlu0 %v814, 112
        %v2134 = vpop.permute.xlu0 %2133
        %2135 = vrot.lane.b32.xlu0 %v819, 112
        %v2136 = vpop.permute.xlu0 %2135
        %2137 = vrot.lane.b32.xlu0 %v824, 112
        %v2138 = vpop.permute.xlu0 %2137
        %v2148 = vsel %vm439, %v2084, 0
        %v2151 = vsel %vm439, %v2086, 0
        %v2154 = vsel %vm439, %v2088, 0
        %v2157 = vsel %vm439, %v2090, 0
        %v2160 = vsel %vm439, %v2092, 0
        %v2163 = vsel %vm439, %v2094, 0
        %v2166 = vsel %vm439, %v2096, 0
        %v2169 = vsel %vm439, %v2098, 0
        %2171 = vmatprep.subr.mxu0 0.0
        %2172 = vmatpush1.msra.mxu0 0.0
        %2173 = vmatprep.subr.mxu0 0.0
        %2174 = vmatpush1.msra.mxu0 0.0
        %2175 = vmatprep.subr.mxu0 0.0
        %2176 = vmatpush1.msra.mxu0 0.0
        %2177 = vmatprep.subr.mxu0 0.0
        %2178 = vmatpush1.msra.mxu0 0.0
        %2179 = vmatprep.subr.mxu0 0.0
        %2180 = vmatpush1.msra.mxu0 0.0
        %2181 = vmatprep.subr.mxu0 0.0
        %2182 = vmatpush1.msra.mxu0 0.0
        %2183 = vmatprep.subr.mxu0 0.0
        %2184 = vmatpush1.msra.mxu0 0.0
        %2185 = vmatprep.subr.mxu0 0.0
        %2186 = vmatpush1.msra.mxu0 0.0
        %2187 = vmatprep.subr.mxu0 0.0
        %2188 = vmatpush1.msra.mxu0 %v2138
        %2189 = vmatprep.subr.mxu0 0.0
        %2190 = vmatpush1.msra.mxu0 %v2136
        %2191 = vmatprep.subr.mxu0 0.0
        %2192 = vmatpush1.msra.mxu0 %v2134
        %2193 = vmatprep.subr.mxu0 0.0
        %2194 = vmatpush1.msra.mxu0 %v2132
        %2195 = vmatprep.subr.mxu0 0.0
        %2196 = vmatpush1.msra.mxu0 %v2130
        %2197 = vmatprep.subr.mxu0 0.0
        %2198 = vmatpush1.msra.mxu0 %v2128
        %2199 = vmatprep.subr.mxu0 0.0
        %2200 = vmatpush1.msra.mxu0 %v2126
        %2201 = vmatprep.subr.mxu0 0.0
        %2202 = vmatpush1.msra.mxu0 %v2124
        %2203 = vmatprep.subr.mxu0 0.0
        %2204 = vmatpush2.msra.mxu0 0.0
        %2205 = vmatprep.subr.mxu0 0.0
        %2206 = vmatpush2.msra.mxu0 0.0
        %2207 = vmatprep.subr.mxu0 0.0
        %2208 = vmatpush2.msra.mxu0 0.0
        %2209 = vmatprep.subr.mxu0 0.0
        %2210 = vmatpush2.msra.mxu0 0.0
        %2211 = vmatprep.subr.mxu0 0.0
        %2212 = vmatpush2.msra.mxu0 0.0
        %2213 = vmatprep.subr.mxu0 0.0
        %2214 = vmatpush2.msra.mxu0 0.0
        %2215 = vmatprep.subr.mxu0 0.0
        %2216 = vmatpush2.msra.mxu0 0.0
        %2217 = vmatprep.subr.mxu0 0.0
        %2218 = vmatpush2.msra.mxu0 0.0
        %2219 = vmatprep.subr.mxu0 0.0
        %2220 = vmatpush2.msra.mxu0 0.0
        %2221 = vmatprep.subr.mxu0 0.0
        %2222 = vmatpush2.msra.mxu0 0.0
        %2223 = vmatprep.subr.mxu0 0.0
        %2224 = vmatpush2.msra.mxu0 0.0
        %2225 = vmatprep.subr.mxu0 0.0
        %2226 = vmatpush2.msra.mxu0 0.0
        %2227 = vmatprep.subr.mxu0 0.0
        %2228 = vmatpush2.msra.mxu0 0.0
        %2229 = vmatprep.subr.mxu0 0.0
        %2230 = vmatpush2.msra.mxu0 0.0
        %2231 = vmatprep.subr.mxu0 0.0
        %2232 = vmatpush2.msra.mxu0 0.0
        %2233 = vmatprep.subr.mxu0 0.0
        %2234 = vmatpush2.msra.mxu0 0.0
        %2235 = vmatprep.mubr.f32.mxu0 0.0
        %2236 = vmatmul.mubr.f32.gmra.mxu0 %v2148
        %v2237 = vpop.f32.mrf.mxu0
        %v2238 = vadd.f32 0.0, %v2237
        %v2239 = vpop.f32.mrf.mxu0
        %2240 = vmatprep.mubr.f32.mxu0 0.0
        %2241 = vmatmul.mubr.f32.gmra.mxu0 %v2151
        %v2242 = vpop.f32.mrf.mxu0
        %v2243 = vadd.f32 0.0, %v2242
        %v2244 = vpop.f32.mrf.mxu0
        %2245 = vmatprep.mubr.f32.mxu0 0.0
        %2246 = vmatmul.mubr.f32.gmra.mxu0 %v2154
        %v2247 = vpop.f32.mrf.mxu0
        %v2248 = vadd.f32 0.0, %v2247
        %v2249 = vpop.f32.mrf.mxu0
        %2250 = vmatprep.mubr.f32.mxu0 0.0
        %2251 = vmatmul.mubr.f32.gmra.mxu0 %v2157
        %v2252 = vpop.f32.mrf.mxu0
        %v2253 = vadd.f32 0.0, %v2252
        %v2254 = vpop.f32.mrf.mxu0
        %2255 = vmatprep.mubr.f32.mxu0 0.0
        %2256 = vmatmul.mubr.f32.gmra.mxu0 %v2160
        %v2257 = vpop.f32.mrf.mxu0
        %v2258 = vadd.f32 0.0, %v2257
        %v2259 = vpop.f32.mrf.mxu0
        %2260 = vmatprep.mubr.f32.mxu0 0.0
        %2261 = vmatmul.mubr.f32.gmra.mxu0 %v2163
        %v2262 = vpop.f32.mrf.mxu0
        %v2263 = vadd.f32 0.0, %v2262
        %v2264 = vpop.f32.mrf.mxu0
        %2265 = vmatprep.mubr.f32.mxu0 0.0
        %2266 = vmatmul.mubr.f32.gmra.mxu0 %v2166
        %v2267 = vpop.f32.mrf.mxu0
        %v2268 = vadd.f32 0.0, %v2267
        %v2269 = vpop.f32.mrf.mxu0
        %2270 = vmatprep.mubr.f32.mxu0 0.0
        %2271 = vmatmul.mubr.f32.gmra.mxu0 %v2169
        %v2272 = vpop.f32.mrf.mxu0
        %v2273 = vadd.f32 0.0, %v2272
        %v2274 = vpop.f32.mrf.mxu0
        %2275 = vdwg.mxu0
        %v2276 = vrcp.pop %v2101
        %v2277 = vrcp.pop %v2104
        %v2278 = vrcp.pop %v2107
        %v2279 = vrcp.pop %v2110
        %v2280 = vrcp.pop %v2113
        %v2281 = vrcp.pop %v2116
        %v2282 = vrcp.pop %v2119
        %v2283 = vrcp.pop %v2122
        %v2284 = vmul.f32 %v2238, %v2276
        %v2285 = vmul.f32 %v2243, %v2277
        %v2286 = vmul.f32 %v2248, %v2278
        %v2287 = vmul.f32 %v2253, %v2279
        %v2288 = vmul.f32 %v2258, %v2280
        %v2289 = vmul.f32 %v2263, %v2281
        %v2290 = vmul.f32 %v2268, %v2282
        %v2291 = vmul.f32 %v2273, %v2283
        %v2293 = vsel %vm835, %v2284, 0
        %v2296 = vsel %vm835, %v2285, 0
        %v2299 = vsel %vm835, %v2286, 0
        %v2302 = vsel %vm835, %v2287, 0
        %v2305 = vsel %vm835, %v2288, 0
        %v2308 = vsel %vm835, %v2289, 0
        %v2311 = vsel %vm835, %v2290, 0
        %v2314 = vsel %vm835, %v2291, 0
        %2316 = vmatprep.subr.mxu0 0.0
        %2317 = vmatpush1.msra.mxu0 0.0
        %2318 = vmatprep.subr.mxu0 0.0
        %2319 = vmatpush1.msra.mxu0 0.0
        %2320 = vmatprep.subr.mxu0 0.0
        %2321 = vmatpush1.msra.mxu0 0.0
        %2322 = vmatprep.subr.mxu0 0.0
        %2323 = vmatpush1.msra.mxu0 0.0
        %2324 = vmatprep.subr.mxu0 0.0
        %2325 = vmatpush1.msra.mxu0 0.0
        %2326 = vmatprep.subr.mxu0 0.0
        %2327 = vmatpush1.msra.mxu0 0.0
        %2328 = vmatprep.subr.mxu0 0.0
        %2329 = vmatpush1.msra.mxu0 0.0
        %2330 = vmatprep.subr.mxu0 0.0
        %2331 = vmatpush1.msra.mxu0 0.0
        %2332 = vmatprep.subr.mxu0 0.0
        %2333 = vmatpush1.msra.mxu0 0.0
        %2334 = vmatprep.subr.mxu0 0.0
        %2335 = vmatpush1.msra.mxu0 0.0
        %2336 = vmatprep.subr.mxu0 0.0
        %2337 = vmatpush1.msra.mxu0 0.0
        %2338 = vmatprep.subr.mxu0 0.0
        %2339 = vmatpush1.msra.mxu0 0.0
        %2340 = vmatprep.subr.mxu0 0.0
        %2341 = vmatpush1.msra.mxu0 0.0
        %2342 = vmatprep.subr.mxu0 0.0
        %2343 = vmatpush1.msra.mxu0 0.0
        %2344 = vmatprep.subr.mxu0 0.0
        %2345 = vmatpush1.msra.mxu0 0.0
        %2346 = vmatprep.subr.mxu0 0.0
        %2347 = vmatpush1.msra.mxu0 %v829
        %2348 = vmatprep.subr.mxu0 0.0
        %2349 = vmatpush2.msra.mxu0 0.0
        %2350 = vmatprep.subr.mxu0 0.0
        %2351 = vmatpush2.msra.mxu0 0.0
        %2352 = vmatprep.subr.mxu0 0.0
        %2353 = vmatpush2.msra.mxu0 0.0
        %2354 = vmatprep.subr.mxu0 0.0
        %2355 = vmatpush2.msra.mxu0 0.0
        %2356 = vmatprep.subr.mxu0 0.0
        %2357 = vmatpush2.msra.mxu0 0.0
        %2358 = vmatprep.subr.mxu0 0.0
        %2359 = vmatpush2.msra.mxu0 0.0
        %2360 = vmatprep.subr.mxu0 0.0
        %2361 = vmatpush2.msra.mxu0 0.0
        %2362 = vmatprep.subr.mxu0 0.0
        %2363 = vmatpush2.msra.mxu0 0.0
        %2364 = vmatprep.subr.mxu0 0.0
        %2365 = vmatpush2.msra.mxu0 0.0
        %2366 = vmatprep.subr.mxu0 0.0
        %2367 = vmatpush2.msra.mxu0 0.0
        %2368 = vmatprep.subr.mxu0 0.0
        %2369 = vmatpush2.msra.mxu0 0.0
        %2370 = vmatprep.subr.mxu0 0.0
        %2371 = vmatpush2.msra.mxu0 0.0
        %2372 = vmatprep.subr.mxu0 0.0
        %2373 = vmatpush2.msra.mxu0 0.0
        %2374 = vmatprep.subr.mxu0 0.0
        %2375 = vmatpush2.msra.mxu0 0.0
        %2376 = vmatprep.subr.mxu0 0.0
        %2377 = vmatpush2.msra.mxu0 0.0
        %2378 = vmatprep.subr.mxu0 0.0
        %2379 = vmatpush2.msra.mxu0 0.0
        %2380 = vmatprep.mubr.f32.mxu0 0.0
        %2381 = vmatmul.mubr.f32.gmra.mxu0 %v2293
        %v2382 = vpop.f32.mrf.mxu0
        %v2383 = vadd.f32 0.0, %v2382
        %v2384 = vpop.f32.mrf.mxu0
        %2385 = vmatprep.mubr.f32.mxu0 0.0
        %2386 = vmatmul.mubr.f32.gmra.mxu0 %v2296
        %v2387 = vpop.f32.mrf.mxu0
        %v2388 = vadd.f32 0.0, %v2387
        %v2389 = vpop.f32.mrf.mxu0
        %2390 = vmatprep.mubr.f32.mxu0 0.0
        %2391 = vmatmul.mubr.f32.gmra.mxu0 %v2299
        %v2392 = vpop.f32.mrf.mxu0
        %v2393 = vadd.f32 0.0, %v2392
        %v2394 = vpop.f32.mrf.mxu0
        %2395 = vmatprep.mubr.f32.mxu0 0.0
        %2396 = vmatmul.mubr.f32.gmra.mxu0 %v2302
        %v2397 = vpop.f32.mrf.mxu0
        %v2398 = vadd.f32 0.0, %v2397
        %v2399 = vpop.f32.mrf.mxu0
        %2400 = vmatprep.mubr.f32.mxu0 0.0
        %2401 = vmatmul.mubr.f32.gmra.mxu0 %v2305
        %v2402 = vpop.f32.mrf.mxu0
        %v2403 = vadd.f32 0.0, %v2402
        %v2404 = vpop.f32.mrf.mxu0
        %2405 = vmatprep.mubr.f32.mxu0 0.0
        %2406 = vmatmul.mubr.f32.gmra.mxu0 %v2308
        %v2407 = vpop.f32.mrf.mxu0
        %v2408 = vadd.f32 0.0, %v2407
        %v2409 = vpop.f32.mrf.mxu0
        %2410 = vmatprep.mubr.f32.mxu0 0.0
        %2411 = vmatmul.mubr.f32.gmra.mxu0 %v2311
        %v2412 = vpop.f32.mrf.mxu0
        %v2413 = vadd.f32 0.0, %v2412
        %v2414 = vpop.f32.mrf.mxu0
        %2415 = vmatprep.mubr.f32.mxu0 0.0
        %2416 = vmatmul.mubr.f32.gmra.mxu0 %v2314
        %v2417 = vpop.f32.mrf.mxu0
        %v2418 = vadd.f32 0.0, %v2417
        %v2419 = vpop.f32.mrf.mxu0
        %2420 = vdwg.mxu0
        %v2421 = vadd.f32 %v1844, %v2383
        %v2422 = vadd.f32 %v1849, %v2388
        %v2423 = vadd.f32 %v1854, %v2393
        %v2424 = vadd.f32 %v1859, %v2398
        %v2425 = vadd.f32 %v1864, %v2403
        %v2426 = vadd.f32 %v1869, %v2408
        %v2427 = vadd.f32 %v1874, %v2413
        %v2428 = vadd.f32 %v1879, %v2418
        %2429 = vrot.lane.b32.xlu0 %v569, 104
        %v2430 = vpop.permute.xlu0 %2429
        %2431 = vrot.lane.b32.xlu0 %v570, 104
        %v2432 = vpop.permute.xlu0 %2431
        %2433 = vrot.lane.b32.xlu0 %v571, 104
        %v2434 = vpop.permute.xlu0 %2433
        %2435 = vrot.lane.b32.xlu0 %v572, 104
        %v2436 = vpop.permute.xlu0 %2435
        %2437 = vrot.lane.b32.xlu0 %v573, 104
        %v2438 = vpop.permute.xlu0 %2437
        %2439 = vrot.lane.b32.xlu0 %v574, 104
        %v2440 = vpop.permute.xlu0 %2439
        %2441 = vrot.lane.b32.xlu0 %v575, 104
        %v2442 = vpop.permute.xlu0 %2441
        %2443 = vrot.lane.b32.xlu0 %v576, 104
        %v2444 = vpop.permute.xlu0 %2443
        %2445 = vrot.lane.b32.xlu0 %v676, 104
        %v2446 = vpop.permute.xlu0 %2445
        %2447 = vrot.lane.b32.xlu0 %v681, 104
        %v2448 = vpop.permute.xlu0 %2447
        %2449 = vrot.lane.b32.xlu0 %v686, 104
        %v2450 = vpop.permute.xlu0 %2449
        %2451 = vrot.lane.b32.xlu0 %v691, 104
        %v2452 = vpop.permute.xlu0 %2451
        %2453 = vrot.lane.b32.xlu0 %v696, 104
        %v2454 = vpop.permute.xlu0 %2453
        %2455 = vrot.lane.b32.xlu0 %v701, 104
        %v2456 = vpop.permute.xlu0 %2455
        %2457 = vrot.lane.b32.xlu0 %v706, 104
        %v2458 = vpop.permute.xlu0 %2457
        %2459 = vrot.lane.b32.xlu0 %v711, 104
        %v2460 = vpop.permute.xlu0 %2459
        %v2461 = vsel %vm835, %v2430, 0
        %v2463 = vsel %vm835, %v2432, 0
        %v2465 = vsel %vm835, %v2434, 0
        %v2467 = vsel %vm835, %v2436, 0
        %v2469 = vsel %vm835, %v2438, 0
        %v2471 = vsel %vm835, %v2440, 0
        %v2473 = vsel %vm835, %v2442, 0
        %v2475 = vsel %vm835, %v2444, 0
        %v2477 = vsel %vm835, %v2446, 0
        %v2479 = vsel %vm835, %v2448, 0
        %v2481 = vsel %vm835, %v2450, 0
        %v2483 = vsel %vm835, %v2452, 0
        %v2485 = vsel %vm835, %v2454, 0
        %v2487 = vsel %vm835, %v2456, 0
        %v2489 = vsel %vm835, %v2458, 0
        %v2491 = vsel %vm835, %v2460, 0
        %2493 = vmatprep.subr.mxu0 0.0
        %2494 = vmatpush1.xpose.msra.mxu0 0.0
        %2495 = vmatprep.subr.mxu0 0.0
        %2496 = vmatpush1.xpose.msra.mxu0 0.0
        %2497 = vmatprep.subr.mxu0 0.0
        %2498 = vmatpush1.xpose.msra.mxu0 0.0
        %2499 = vmatprep.subr.mxu0 0.0
        %2500 = vmatpush1.xpose.msra.mxu0 0.0
        %2501 = vmatprep.subr.mxu0 0.0
        %2502 = vmatpush1.xpose.msra.mxu0 0.0
        %2503 = vmatprep.subr.mxu0 0.0
        %2504 = vmatpush1.xpose.msra.mxu0 0.0
        %2505 = vmatprep.subr.mxu0 0.0
        %2506 = vmatpush1.xpose.msra.mxu0 0.0
        %2507 = vmatprep.subr.mxu0 0.0
        %2508 = vmatpush1.xpose.msra.mxu0 0.0
        %2509 = vmatprep.subr.mxu0 0.0
        %2510 = vmatpush1.xpose.msra.mxu0 %v2491
        %2511 = vmatprep.subr.mxu0 0.0
        %2512 = vmatpush1.xpose.msra.mxu0 %v2489
        %2513 = vmatprep.subr.mxu0 0.0
        %2514 = vmatpush1.xpose.msra.mxu0 %v2487
        %2515 = vmatprep.subr.mxu0 0.0
        %2516 = vmatpush1.xpose.msra.mxu0 %v2485
        %2517 = vmatprep.subr.mxu0 0.0
        %2518 = vmatpush1.xpose.msra.mxu0 %v2483
        %2519 = vmatprep.subr.mxu0 0.0
        %2520 = vmatpush1.xpose.msra.mxu0 %v2481
        %2521 = vmatprep.subr.mxu0 0.0
        %2522 = vmatpush1.xpose.msra.mxu0 %v2479
        %2523 = vmatprep.subr.mxu0 0.0
        %2524 = vmatpush1.xpose.msra.mxu0 %v2477
        %2525 = vmatprep.subr.mxu0 0.0
        %2526 = vmatpush2.xpose.msra.mxu0 0.0
        %2527 = vmatprep.subr.mxu0 0.0
        %2528 = vmatpush2.xpose.msra.mxu0 0.0
        %2529 = vmatprep.subr.mxu0 0.0
        %2530 = vmatpush2.xpose.msra.mxu0 0.0
        %2531 = vmatprep.subr.mxu0 0.0
        %2532 = vmatpush2.xpose.msra.mxu0 0.0
        %2533 = vmatprep.subr.mxu0 0.0
        %2534 = vmatpush2.xpose.msra.mxu0 0.0
        %2535 = vmatprep.subr.mxu0 0.0
        %2536 = vmatpush2.xpose.msra.mxu0 0.0
        %2537 = vmatprep.subr.mxu0 0.0
        %2538 = vmatpush2.xpose.msra.mxu0 0.0
        %2539 = vmatprep.subr.mxu0 0.0
        %2540 = vmatpush2.xpose.msra.mxu0 0.0
        %2541 = vmatprep.subr.mxu0 0.0
        %2542 = vmatpush2.xpose.msra.mxu0 0.0
        %2543 = vmatprep.subr.mxu0 0.0
        %2544 = vmatpush2.xpose.msra.mxu0 0.0
        %2545 = vmatprep.subr.mxu0 0.0
        %2546 = vmatpush2.xpose.msra.mxu0 0.0
        %2547 = vmatprep.subr.mxu0 0.0
        %2548 = vmatpush2.xpose.msra.mxu0 0.0
        %2549 = vmatprep.subr.mxu0 0.0
        %2550 = vmatpush2.xpose.msra.mxu0 0.0
        %2551 = vmatprep.subr.mxu0 0.0
        %2552 = vmatpush2.xpose.msra.mxu0 0.0
        %2553 = vmatprep.subr.mxu0 0.0
        %2554 = vmatpush2.xpose.msra.mxu0 0.0
        %2555 = vmatprep.subr.mxu0 0.0
        %2556 = vmatpush2.xpose.msra.mxu0 0.0
        %2557 = vmatprep.mubr.f32.mxu0 0.0
        %2558 = vmatmul.mubr.f32.gmra.mxu0 %v2461
        %v2559 = vpop.f32.mrf.mxu0
        %v2560 = vadd.f32 0.0, %v2559
        %v2561 = vpop.f32.mrf.mxu0
        %2562 = vmatprep.mubr.f32.mxu0 0.0
        %2563 = vmatmul.mubr.f32.gmra.mxu0 %v2463
        %v2564 = vpop.f32.mrf.mxu0
        %v2565 = vadd.f32 0.0, %v2564
        %v2566 = vpop.f32.mrf.mxu0
        %2567 = vmatprep.mubr.f32.mxu0 0.0
        %2568 = vmatmul.mubr.f32.gmra.mxu0 %v2465
        %v2569 = vpop.f32.mrf.mxu0
        %v2570 = vadd.f32 0.0, %v2569
        %v2571 = vpop.f32.mrf.mxu0
        %2572 = vmatprep.mubr.f32.mxu0 0.0
        %2573 = vmatmul.mubr.f32.gmra.mxu0 %v2467
        %v2574 = vpop.f32.mrf.mxu0
        %v2575 = vadd.f32 0.0, %v2574
        %v2576 = vpop.f32.mrf.mxu0
        %2577 = vmatprep.mubr.f32.mxu0 0.0
        %2578 = vmatmul.mubr.f32.gmra.mxu0 %v2469
        %v2579 = vpop.f32.mrf.mxu0
        %v2580 = vadd.f32 0.0, %v2579
        %v2581 = vpop.f32.mrf.mxu0
        %2582 = vmatprep.mubr.f32.mxu0 0.0
        %2583 = vmatmul.mubr.f32.gmra.mxu0 %v2471
        %v2584 = vpop.f32.mrf.mxu0
        %v2585 = vadd.f32 0.0, %v2584
        %v2586 = vpop.f32.mrf.mxu0
        %2587 = vmatprep.mubr.f32.mxu0 0.0
        %2588 = vmatmul.mubr.f32.gmra.mxu0 %v2473
        %v2589 = vpop.f32.mrf.mxu0
        %v2590 = vadd.f32 0.0, %v2589
        %v2591 = vpop.f32.mrf.mxu0
        %2592 = vmatprep.mubr.f32.mxu0 0.0
        %2593 = vmatmul.mubr.f32.gmra.mxu0 %v2475
        %v2594 = vpop.f32.mrf.mxu0
        %v2595 = vadd.f32 0.0, %v2594
        %v2596 = vpop.f32.mrf.mxu0
        %2597 = vdwg.mxu0
        %v2598 = vsel %vm439, %v2560, -inf
        %2599 = vmax.xlane.f32.xlu0 %v2598
        %v2600 = vpop.xlane.xlu0 %2599
        %v2601 = vsel %vm439, %v2565, -inf
        %2602 = vmax.xlane.f32.xlu0 %v2601
        %v2603 = vpop.xlane.xlu0 %2602
        %v2604 = vsel %vm439, %v2570, -inf
        %2605 = vmax.xlane.f32.xlu0 %v2604
        %v2606 = vpop.xlane.xlu0 %2605
        %v2607 = vsel %vm439, %v2575, -inf
        %2608 = vmax.xlane.f32.xlu0 %v2607
        %v2609 = vpop.xlane.xlu0 %2608
        %v2610 = vsel %vm439, %v2580, -inf
        %2611 = vmax.xlane.f32.xlu0 %v2610
        %v2612 = vpop.xlane.xlu0 %2611
        %v2613 = vsel %vm439, %v2585, -inf
        %2614 = vmax.xlane.f32.xlu0 %v2613
        %v2615 = vpop.xlane.xlu0 %2614
        %v2616 = vsel %vm439, %v2590, -inf
        %2617 = vmax.xlane.f32.xlu0 %v2616
        %v2618 = vpop.xlane.xlu0 %2617
        %v2619 = vsel %vm439, %v2595, -inf
        %2620 = vmax.xlane.f32.xlu0 %v2619
        %v2621 = vpop.xlane.xlu0 %2620
        %v2622 = vsub.f32 %v2560, %v2600
        %v2623 = vsub.f32 %v2565, %v2603
        %v2624 = vsub.f32 %v2570, %v2606
        %v2625 = vsub.f32 %v2575, %v2609
        %v2626 = vsub.f32 %v2580, %v2612
        %v2627 = vsub.f32 %v2585, %v2615
        %v2628 = vsub.f32 %v2590, %v2618
        %v2629 = vsub.f32 %v2595, %v2621
        %v2630 = vmul.f32 %v2622, 1.442695
        %v2631 = vpow.pop %v2630
        %v2632 = vmul.f32 %v2623, 1.442695
        %v2633 = vpow.pop %v2632
        %v2634 = vmul.f32 %v2624, 1.442695
        %v2635 = vpow.pop %v2634
        %v2636 = vmul.f32 %v2625, 1.442695
        %v2637 = vpow.pop %v2636
        %v2638 = vmul.f32 %v2626, 1.442695
        %v2639 = vpow.pop %v2638
        %v2640 = vmul.f32 %v2627, 1.442695
        %v2641 = vpow.pop %v2640
        %v2642 = vmul.f32 %v2628, 1.442695
        %v2643 = vpow.pop %v2642
        %v2644 = vmul.f32 %v2629, 1.442695
        %v2645 = vpow.pop %v2644
        %v2646 = vsel %vm439, %v2631, 0.0
        %2647 = vadd.xlane.f32.xlu0 %v2646
        %v2648 = vpop.xlane.xlu0 %2647
        %v2649 = vsel %vm439, %v2633, 0.0
        %2650 = vadd.xlane.f32.xlu0 %v2649
        %v2651 = vpop.xlane.xlu0 %2650
        %v2652 = vsel %vm439, %v2635, 0.0
        %2653 = vadd.xlane.f32.xlu0 %v2652
        %v2654 = vpop.xlane.xlu0 %2653
        %v2655 = vsel %vm439, %v2637, 0.0
        %2656 = vadd.xlane.f32.xlu0 %v2655
        %v2657 = vpop.xlane.xlu0 %2656
        %v2658 = vsel %vm439, %v2639, 0.0
        %2659 = vadd.xlane.f32.xlu0 %v2658
        %v2660 = vpop.xlane.xlu0 %2659
        %v2661 = vsel %vm439, %v2641, 0.0
        %2662 = vadd.xlane.f32.xlu0 %v2661
        %v2663 = vpop.xlane.xlu0 %2662
        %v2664 = vsel %vm439, %v2643, 0.0
        %2665 = vadd.xlane.f32.xlu0 %v2664
        %v2666 = vpop.xlane.xlu0 %2665
        %v2667 = vsel %vm439, %v2645, 0.0
        %2668 = vadd.xlane.f32.xlu0 %v2667
        %v2669 = vpop.xlane.xlu0 %2668
        %2670 = vrot.lane.b32.xlu0 %v789, 104
        %v2671 = vpop.permute.xlu0 %2670
        %2672 = vrot.lane.b32.xlu0 %v794, 104
        %v2673 = vpop.permute.xlu0 %2672
        %2674 = vrot.lane.b32.xlu0 %v799, 104
        %v2675 = vpop.permute.xlu0 %2674
        %2676 = vrot.lane.b32.xlu0 %v804, 104
        %v2677 = vpop.permute.xlu0 %2676
        %2678 = vrot.lane.b32.xlu0 %v809, 104
        %v2679 = vpop.permute.xlu0 %2678
        %2680 = vrot.lane.b32.xlu0 %v814, 104
        %v2681 = vpop.permute.xlu0 %2680
        %2682 = vrot.lane.b32.xlu0 %v819, 104
        %v2683 = vpop.permute.xlu0 %2682
        %2684 = vrot.lane.b32.xlu0 %v824, 104
        %v2685 = vpop.permute.xlu0 %2684
        %v2695 = vsel %vm439, %v2631, 0
        %v2698 = vsel %vm439, %v2633, 0
        %v2701 = vsel %vm439, %v2635, 0
        %v2704 = vsel %vm439, %v2637, 0
        %v2707 = vsel %vm439, %v2639, 0
        %v2710 = vsel %vm439, %v2641, 0
        %v2713 = vsel %vm439, %v2643, 0
        %v2716 = vsel %vm439, %v2645, 0
        %2718 = vmatprep.subr.mxu0 0.0
        %2719 = vmatpush1.msra.mxu0 0.0
        %2720 = vmatprep.subr.mxu0 0.0
        %2721 = vmatpush1.msra.mxu0 0.0
        %2722 = vmatprep.subr.mxu0 0.0
        %2723 = vmatpush1.msra.mxu0 0.0
        %2724 = vmatprep.subr.mxu0 0.0
        %2725 = vmatpush1.msra.mxu0 0.0
        %2726 = vmatprep.subr.mxu0 0.0
        %2727 = vmatpush1.msra.mxu0 0.0
        %2728 = vmatprep.subr.mxu0 0.0
        %2729 = vmatpush1.msra.mxu0 0.0
        %2730 = vmatprep.subr.mxu0 0.0
        %2731 = vmatpush1.msra.mxu0 0.0
        %2732 = vmatprep.subr.mxu0 0.0
        %2733 = vmatpush1.msra.mxu0 0.0
        %2734 = vmatprep.subr.mxu0 0.0
        %2735 = vmatpush1.msra.mxu0 %v2685
        %2736 = vmatprep.subr.mxu0 0.0
        %2737 = vmatpush1.msra.mxu0 %v2683
        %2738 = vmatprep.subr.mxu0 0.0
        %2739 = vmatpush1.msra.mxu0 %v2681
        %2740 = vmatprep.subr.mxu0 0.0
        %2741 = vmatpush1.msra.mxu0 %v2679
        %2742 = vmatprep.subr.mxu0 0.0
        %2743 = vmatpush1.msra.mxu0 %v2677
        %2744 = vmatprep.subr.mxu0 0.0
        %2745 = vmatpush1.msra.mxu0 %v2675
        %2746 = vmatprep.subr.mxu0 0.0
        %2747 = vmatpush1.msra.mxu0 %v2673
        %2748 = vmatprep.subr.mxu0 0.0
        %2749 = vmatpush1.msra.mxu0 %v2671
        %2750 = vmatprep.subr.mxu0 0.0
        %2751 = vmatpush2.msra.mxu0 0.0
        %2752 = vmatprep.subr.mxu0 0.0
        %2753 = vmatpush2.msra.mxu0 0.0
        %2754 = vmatprep.subr.mxu0 0.0
        %2755 = vmatpush2.msra.mxu0 0.0
        %2756 = vmatprep.subr.mxu0 0.0
        %2757 = vmatpush2.msra.mxu0 0.0
        %2758 = vmatprep.subr.mxu0 0.0
        %2759 = vmatpush2.msra.mxu0 0.0
        %2760 = vmatprep.subr.mxu0 0.0
        %2761 = vmatpush2.msra.mxu0 0.0
        %2762 = vmatprep.subr.mxu0 0.0
        %2763 = vmatpush2.msra.mxu0 0.0
        %2764 = vmatprep.subr.mxu0 0.0
        %2765 = vmatpush2.msra.mxu0 0.0
        %2766 = vmatprep.subr.mxu0 0.0
        %2767 = vmatpush2.msra.mxu0 0.0
        %2768 = vmatprep.subr.mxu0 0.0
        %2769 = vmatpush2.msra.mxu0 0.0
        %2770 = vmatprep.subr.mxu0 0.0
        %2771 = vmatpush2.msra.mxu0 0.0
        %2772 = vmatprep.subr.mxu0 0.0
        %2773 = vmatpush2.msra.mxu0 0.0
        %2774 = vmatprep.subr.mxu0 0.0
        %2775 = vmatpush2.msra.mxu0 0.0
        %2776 = vmatprep.subr.mxu0 0.0
        %2777 = vmatpush2.msra.mxu0 0.0
        %2778 = vmatprep.subr.mxu0 0.0
        %2779 = vmatpush2.msra.mxu0 0.0
        %2780 = vmatprep.subr.mxu0 0.0
        %2781 = vmatpush2.msra.mxu0 0.0
        %2782 = vmatprep.mubr.f32.mxu0 0.0
        %2783 = vmatmul.mubr.f32.gmra.mxu0 %v2695
        %v2784 = vpop.f32.mrf.mxu0
        %v2785 = vadd.f32 0.0, %v2784
        %v2786 = vpop.f32.mrf.mxu0
        %2787 = vmatprep.mubr.f32.mxu0 0.0
        %2788 = vmatmul.mubr.f32.gmra.mxu0 %v2698
        %v2789 = vpop.f32.mrf.mxu0
        %v2790 = vadd.f32 0.0, %v2789
        %v2791 = vpop.f32.mrf.mxu0
        %2792 = vmatprep.mubr.f32.mxu0 0.0
        %2793 = vmatmul.mubr.f32.gmra.mxu0 %v2701
        %v2794 = vpop.f32.mrf.mxu0
        %v2795 = vadd.f32 0.0, %v2794
        %v2796 = vpop.f32.mrf.mxu0
        %2797 = vmatprep.mubr.f32.mxu0 0.0
        %2798 = vmatmul.mubr.f32.gmra.mxu0 %v2704
        %v2799 = vpop.f32.mrf.mxu0
        %v2800 = vadd.f32 0.0, %v2799
        %v2801 = vpop.f32.mrf.mxu0
        %2802 = vmatprep.mubr.f32.mxu0 0.0
        %2803 = vmatmul.mubr.f32.gmra.mxu0 %v2707
        %v2804 = vpop.f32.mrf.mxu0
        %v2805 = vadd.f32 0.0, %v2804
        %v2806 = vpop.f32.mrf.mxu0
        %2807 = vmatprep.mubr.f32.mxu0 0.0
        %2808 = vmatmul.mubr.f32.gmra.mxu0 %v2710
        %v2809 = vpop.f32.mrf.mxu0
        %v2810 = vadd.f32 0.0, %v2809
        %v2811 = vpop.f32.mrf.mxu0
        %2812 = vmatprep.mubr.f32.mxu0 0.0
        %2813 = vmatmul.mubr.f32.gmra.mxu0 %v2713
        %v2814 = vpop.f32.mrf.mxu0
        %v2815 = vadd.f32 0.0, %v2814
        %v2816 = vpop.f32.mrf.mxu0
        %2817 = vmatprep.mubr.f32.mxu0 0.0
        %2818 = vmatmul.mubr.f32.gmra.mxu0 %v2716
        %v2819 = vpop.f32.mrf.mxu0
        %v2820 = vadd.f32 0.0, %v2819
        %v2821 = vpop.f32.mrf.mxu0
        %2822 = vdwg.mxu0
        %v2823 = vrcp.pop %v2648
        %v2824 = vrcp.pop %v2651
        %v2825 = vrcp.pop %v2654
        %v2826 = vrcp.pop %v2657
        %v2827 = vrcp.pop %v2660
        %v2828 = vrcp.pop %v2663
        %v2829 = vrcp.pop %v2666
        %v2830 = vrcp.pop %v2669
        %v2831 = vmul.f32 %v2785, %v2823
        %v2832 = vmul.f32 %v2790, %v2824
        %v2833 = vmul.f32 %v2795, %v2825
        %v2834 = vmul.f32 %v2800, %v2826
        %v2835 = vmul.f32 %v2805, %v2827
        %v2836 = vmul.f32 %v2810, %v2828
        %v2837 = vmul.f32 %v2815, %v2829
        %v2838 = vmul.f32 %v2820, %v2830
        %v2840 = vsel %vm835, %v2831, 0
        %v2843 = vsel %vm835, %v2832, 0
        %v2846 = vsel %vm835, %v2833, 0
        %v2849 = vsel %vm835, %v2834, 0
        %v2852 = vsel %vm835, %v2835, 0
        %v2855 = vsel %vm835, %v2836, 0
        %v2858 = vsel %vm835, %v2837, 0
        %v2861 = vsel %vm835, %v2838, 0
        %2863 = vmatprep.subr.mxu0 0.0
        %2864 = vmatpush1.msra.mxu0 0.0
        %2865 = vmatprep.subr.mxu0 0.0
        %2866 = vmatpush1.msra.mxu0 0.0
        %2867 = vmatprep.subr.mxu0 0.0
        %2868 = vmatpush1.msra.mxu0 0.0
        %2869 = vmatprep.subr.mxu0 0.0
        %2870 = vmatpush1.msra.mxu0 0.0
        %2871 = vmatprep.subr.mxu0 0.0
        %2872 = vmatpush1.msra.mxu0 0.0
        %2873 = vmatprep.subr.mxu0 0.0
        %2874 = vmatpush1.msra.mxu0 0.0
        %2875 = vmatprep.subr.mxu0 0.0
        %2876 = vmatpush1.msra.mxu0 0.0
        %2877 = vmatprep.subr.mxu0 0.0
        %2878 = vmatpush1.msra.mxu0 0.0
        %2879 = vmatprep.subr.mxu0 0.0
        %2880 = vmatpush1.msra.mxu0 0.0
        %2881 = vmatprep.subr.mxu0 0.0
        %2882 = vmatpush1.msra.mxu0 0.0
        %2883 = vmatprep.subr.mxu0 0.0
        %2884 = vmatpush1.msra.mxu0 0.0
        %2885 = vmatprep.subr.mxu0 0.0
        %2886 = vmatpush1.msra.mxu0 0.0
        %2887 = vmatprep.subr.mxu0 0.0
        %2888 = vmatpush1.msra.mxu0 0.0
        %2889 = vmatprep.subr.mxu0 0.0
        %2890 = vmatpush1.msra.mxu0 0.0
        %2891 = vmatprep.subr.mxu0 0.0
        %2892 = vmatpush1.msra.mxu0 0.0
        %2893 = vmatprep.subr.mxu0 0.0
        %2894 = vmatpush1.msra.mxu0 %v830
        %2895 = vmatprep.subr.mxu0 0.0
        %2896 = vmatpush2.msra.mxu0 0.0
        %2897 = vmatprep.subr.mxu0 0.0
        %2898 = vmatpush2.msra.mxu0 0.0
        %2899 = vmatprep.subr.mxu0 0.0
        %2900 = vmatpush2.msra.mxu0 0.0
        %2901 = vmatprep.subr.mxu0 0.0
        %2902 = vmatpush2.msra.mxu0 0.0
        %2903 = vmatprep.subr.mxu0 0.0
        %2904 = vmatpush2.msra.mxu0 0.0
        %2905 = vmatprep.subr.mxu0 0.0
        %2906 = vmatpush2.msra.mxu0 0.0
        %2907 = vmatprep.subr.mxu0 0.0
        %2908 = vmatpush2.msra.mxu0 0.0
        %2909 = vmatprep.subr.mxu0 0.0
        %2910 = vmatpush2.msra.mxu0 0.0
        %2911 = vmatprep.subr.mxu0 0.0
        %2912 = vmatpush2.msra.mxu0 0.0
        %2913 = vmatprep.subr.mxu0 0.0
        %2914 = vmatpush2.msra.mxu0 0.0
        %2915 = vmatprep.subr.mxu0 0.0
        %2916 = vmatpush2.msra.mxu0 0.0
        %2917 = vmatprep.subr.mxu0 0.0
        %2918 = vmatpush2.msra.mxu0 0.0
        %2919 = vmatprep.subr.mxu0 0.0
        %2920 = vmatpush2.msra.mxu0 0.0
        %2921 = vmatprep.subr.mxu0 0.0
        %2922 = vmatpush2.msra.mxu0 0.0
        %2923 = vmatprep.subr.mxu0 0.0
        %2924 = vmatpush2.msra.mxu0 0.0
        %2925 = vmatprep.subr.mxu0 0.0
        %2926 = vmatpush2.msra.mxu0 0.0
        %2927 = vmatprep.mubr.f32.mxu0 0.0
        %2928 = vmatmul.mubr.f32.gmra.mxu0 %v2840
        %v2929 = vpop.f32.mrf.mxu0
        %v2930 = vadd.f32 0.0, %v2929
        %v2931 = vpop.f32.mrf.mxu0
        %2932 = vmatprep.mubr.f32.mxu0 0.0
        %2933 = vmatmul.mubr.f32.gmra.mxu0 %v2843
        %v2934 = vpop.f32.mrf.mxu0
        %v2935 = vadd.f32 0.0, %v2934
        %v2936 = vpop.f32.mrf.mxu0
        %2937 = vmatprep.mubr.f32.mxu0 0.0
        %2938 = vmatmul.mubr.f32.gmra.mxu0 %v2846
        %v2939 = vpop.f32.mrf.mxu0
        %v2940 = vadd.f32 0.0, %v2939
        %v2941 = vpop.f32.mrf.mxu0
        %2942 = vmatprep.mubr.f32.mxu0 0.0
        %2943 = vmatmul.mubr.f32.gmra.mxu0 %v2849
        %v2944 = vpop.f32.mrf.mxu0
        %v2945 = vadd.f32 0.0, %v2944
        %v2946 = vpop.f32.mrf.mxu0
        %2947 = vmatprep.mubr.f32.mxu0 0.0
        %2948 = vmatmul.mubr.f32.gmra.mxu0 %v2852
        %v2949 = vpop.f32.mrf.mxu0
        %v2950 = vadd.f32 0.0, %v2949
        %v2951 = vpop.f32.mrf.mxu0
        %2952 = vmatprep.mubr.f32.mxu0 0.0
        %2953 = vmatmul.mubr.f32.gmra.mxu0 %v2855
        %v2954 = vpop.f32.mrf.mxu0
        %v2955 = vadd.f32 0.0, %v2954
        %v2956 = vpop.f32.mrf.mxu0
        %2957 = vmatprep.mubr.f32.mxu0 0.0
        %2958 = vmatmul.mubr.f32.gmra.mxu0 %v2858
        %v2959 = vpop.f32.mrf.mxu0
        %v2960 = vadd.f32 0.0, %v2959
        %v2961 = vpop.f32.mrf.mxu0
        %2962 = vmatprep.mubr.f32.mxu0 0.0
        %2963 = vmatmul.mubr.f32.gmra.mxu0 %v2861
        %v2964 = vpop.f32.mrf.mxu0
        %v2965 = vadd.f32 0.0, %v2964
        %v2966 = vpop.f32.mrf.mxu0
        %2967 = vdwg.mxu0
        %v2968 = vadd.f32 %v2421, %v2930
        %v2969 = vadd.f32 %v2422, %v2935
        %v2970 = vadd.f32 %v2423, %v2940
        %v2971 = vadd.f32 %v2424, %v2945
        %v2972 = vadd.f32 %v2425, %v2950
        %v2973 = vadd.f32 %v2426, %v2955
        %v2974 = vadd.f32 %v2427, %v2960
        %v2975 = vadd.f32 %v2428, %v2965
        %2976 = vrot.lane.b32.xlu0 %v569, 96
        %v2977 = vpop.permute.xlu0 %2976
        %2978 = vrot.lane.b32.xlu0 %v570, 96
        %v2979 = vpop.permute.xlu0 %2978
        %2980 = vrot.lane.b32.xlu0 %v571, 96
        %v2981 = vpop.permute.xlu0 %2980
        %2982 = vrot.lane.b32.xlu0 %v572, 96
        %v2983 = vpop.permute.xlu0 %2982
        %2984 = vrot.lane.b32.xlu0 %v573, 96
        %v2985 = vpop.permute.xlu0 %2984
        %2986 = vrot.lane.b32.xlu0 %v574, 96
        %v2987 = vpop.permute.xlu0 %2986
        %2988 = vrot.lane.b32.xlu0 %v575, 96
        %v2989 = vpop.permute.xlu0 %2988
        %2990 = vrot.lane.b32.xlu0 %v576, 96
        %v2991 = vpop.permute.xlu0 %2990
        %2992 = vrot.lane.b32.xlu0 %v676, 96
        %v2993 = vpop.permute.xlu0 %2992
        %2994 = vrot.lane.b32.xlu0 %v681, 96
        %v2995 = vpop.permute.xlu0 %2994
        %2996 = vrot.lane.b32.xlu0 %v686, 96
        %v2997 = vpop.permute.xlu0 %2996
        %2998 = vrot.lane.b32.xlu0 %v691, 96
        %v2999 = vpop.permute.xlu0 %2998
        %3000 = vrot.lane.b32.xlu0 %v696, 96
        %v3001 = vpop.permute.xlu0 %3000
        %3002 = vrot.lane.b32.xlu0 %v701, 96
        %v3003 = vpop.permute.xlu0 %3002
        %3004 = vrot.lane.b32.xlu0 %v706, 96
        %v3005 = vpop.permute.xlu0 %3004
        %3006 = vrot.lane.b32.xlu0 %v711, 96
        %v3007 = vpop.permute.xlu0 %3006
        %v3008 = vsel %vm835, %v2977, 0
        %v3010 = vsel %vm835, %v2979, 0
        %v3012 = vsel %vm835, %v2981, 0
        %v3014 = vsel %vm835, %v2983, 0
        %v3016 = vsel %vm835, %v2985, 0
        %v3018 = vsel %vm835, %v2987, 0
        %v3020 = vsel %vm835, %v2989, 0
        %v3022 = vsel %vm835, %v2991, 0
        %v3024 = vsel %vm835, %v2993, 0
        %v3026 = vsel %vm835, %v2995, 0
        %v3028 = vsel %vm835, %v2997, 0
        %v3030 = vsel %vm835, %v2999, 0
        %v3032 = vsel %vm835, %v3001, 0
        %v3034 = vsel %vm835, %v3003, 0
        %v3036 = vsel %vm835, %v3005, 0
        %v3038 = vsel %vm835, %v3007, 0
        %3040 = vmatprep.subr.mxu0 0.0
        %3041 = vmatpush1.xpose.msra.mxu0 0.0
        %3042 = vmatprep.subr.mxu0 0.0
        %3043 = vmatpush1.xpose.msra.mxu0 0.0
        %3044 = vmatprep.subr.mxu0 0.0
        %3045 = vmatpush1.xpose.msra.mxu0 0.0
        %3046 = vmatprep.subr.mxu0 0.0
        %3047 = vmatpush1.xpose.msra.mxu0 0.0
        %3048 = vmatprep.subr.mxu0 0.0
        %3049 = vmatpush1.xpose.msra.mxu0 0.0
        %3050 = vmatprep.subr.mxu0 0.0
        %3051 = vmatpush1.xpose.msra.mxu0 0.0
        %3052 = vmatprep.subr.mxu0 0.0
        %3053 = vmatpush1.xpose.msra.mxu0 0.0
        %3054 = vmatprep.subr.mxu0 0.0
        %3055 = vmatpush1.xpose.msra.mxu0 0.0
        %3056 = vmatprep.subr.mxu0 0.0
        %3057 = vmatpush1.xpose.msra.mxu0 %v3038
        %3058 = vmatprep.subr.mxu0 0.0
        %3059 = vmatpush1.xpose.msra.mxu0 %v3036
        %3060 = vmatprep.subr.mxu0 0.0
        %3061 = vmatpush1.xpose.msra.mxu0 %v3034
        %3062 = vmatprep.subr.mxu0 0.0
        %3063 = vmatpush1.xpose.msra.mxu0 %v3032
        %3064 = vmatprep.subr.mxu0 0.0
        %3065 = vmatpush1.xpose.msra.mxu0 %v3030
        %3066 = vmatprep.subr.mxu0 0.0
        %3067 = vmatpush1.xpose.msra.mxu0 %v3028
        %3068 = vmatprep.subr.mxu0 0.0
        %3069 = vmatpush1.xpose.msra.mxu0 %v3026
        %3070 = vmatprep.subr.mxu0 0.0
        %3071 = vmatpush1.xpose.msra.mxu0 %v3024
        %3072 = vmatprep.subr.mxu0 0.0
        %3073 = vmatpush2.xpose.msra.mxu0 0.0
        %3074 = vmatprep.subr.mxu0 0.0
        %3075 = vmatpush2.xpose.msra.mxu0 0.0
        %3076 = vmatprep.subr.mxu0 0.0
        %3077 = vmatpush2.xpose.msra.mxu0 0.0
        %3078 = vmatprep.subr.mxu0 0.0
        %3079 = vmatpush2.xpose.msra.mxu0 0.0
        %3080 = vmatprep.subr.mxu0 0.0
        %3081 = vmatpush2.xpose.msra.mxu0 0.0
        %3082 = vmatprep.subr.mxu0 0.0
        %3083 = vmatpush2.xpose.msra.mxu0 0.0
        %3084 = vmatprep.subr.mxu0 0.0
        %3085 = vmatpush2.xpose.msra.mxu0 0.0
        %3086 = vmatprep.subr.mxu0 0.0
        %3087 = vmatpush2.xpose.msra.mxu0 0.0
        %3088 = vmatprep.subr.mxu0 0.0
        %3089 = vmatpush2.xpose.msra.mxu0 0.0
        %3090 = vmatprep.subr.mxu0 0.0
        %3091 = vmatpush2.xpose.msra.mxu0 0.0
        %3092 = vmatprep.subr.mxu0 0.0
        %3093 = vmatpush2.xpose.msra.mxu0 0.0
        %3094 = vmatprep.subr.mxu0 0.0
        %3095 = vmatpush2.xpose.msra.mxu0 0.0
        %3096 = vmatprep.subr.mxu0 0.0
        %3097 = vmatpush2.xpose.msra.mxu0 0.0
        %3098 = vmatprep.subr.mxu0 0.0
        %3099 = vmatpush2.xpose.msra.mxu0 0.0
        %3100 = vmatprep.subr.mxu0 0.0
        %3101 = vmatpush2.xpose.msra.mxu0 0.0
        %3102 = vmatprep.subr.mxu0 0.0
        %3103 = vmatpush2.xpose.msra.mxu0 0.0
        %3104 = vmatprep.mubr.f32.mxu0 0.0
        %3105 = vmatmul.mubr.f32.gmra.mxu0 %v3008
        %v3106 = vpop.f32.mrf.mxu0
        %v3107 = vadd.f32 0.0, %v3106
        %v3108 = vpop.f32.mrf.mxu0
        %3109 = vmatprep.mubr.f32.mxu0 0.0
        %3110 = vmatmul.mubr.f32.gmra.mxu0 %v3010
        %v3111 = vpop.f32.mrf.mxu0
        %v3112 = vadd.f32 0.0, %v3111
        %v3113 = vpop.f32.mrf.mxu0
        %3114 = vmatprep.mubr.f32.mxu0 0.0
        %3115 = vmatmul.mubr.f32.gmra.mxu0 %v3012
        %v3116 = vpop.f32.mrf.mxu0
        %v3117 = vadd.f32 0.0, %v3116
        %v3118 = vpop.f32.mrf.mxu0
        %3119 = vmatprep.mubr.f32.mxu0 0.0
        %3120 = vmatmul.mubr.f32.gmra.mxu0 %v3014
        %v3121 = vpop.f32.mrf.mxu0
        %v3122 = vadd.f32 0.0, %v3121
        %v3123 = vpop.f32.mrf.mxu0
        %3124 = vmatprep.mubr.f32.mxu0 0.0
        %3125 = vmatmul.mubr.f32.gmra.mxu0 %v3016
        %v3126 = vpop.f32.mrf.mxu0
        %v3127 = vadd.f32 0.0, %v3126
        %v3128 = vpop.f32.mrf.mxu0
        %3129 = vmatprep.mubr.f32.mxu0 0.0
        %3130 = vmatmul.mubr.f32.gmra.mxu0 %v3018
        %v3131 = vpop.f32.mrf.mxu0
        %v3132 = vadd.f32 0.0, %v3131
        %v3133 = vpop.f32.mrf.mxu0
        %3134 = vmatprep.mubr.f32.mxu0 0.0
        %3135 = vmatmul.mubr.f32.gmra.mxu0 %v3020
        %v3136 = vpop.f32.mrf.mxu0
        %v3137 = vadd.f32 0.0, %v3136
        %v3138 = vpop.f32.mrf.mxu0
        %3139 = vmatprep.mubr.f32.mxu0 0.0
        %3140 = vmatmul.mubr.f32.gmra.mxu0 %v3022
        %v3141 = vpop.f32.mrf.mxu0
        %v3142 = vadd.f32 0.0, %v3141
        %v3143 = vpop.f32.mrf.mxu0
        %3144 = vdwg.mxu0
        %v3145 = vsel %vm439, %v3107, -inf
        %3146 = vmax.xlane.f32.xlu0 %v3145
        %v3147 = vpop.xlane.xlu0 %3146
        %v3148 = vsel %vm439, %v3112, -inf
        %3149 = vmax.xlane.f32.xlu0 %v3148
        %v3150 = vpop.xlane.xlu0 %3149
        %v3151 = vsel %vm439, %v3117, -inf
        %3152 = vmax.xlane.f32.xlu0 %v3151
        %v3153 = vpop.xlane.xlu0 %3152
        %v3154 = vsel %vm439, %v3122, -inf
        %3155 = vmax.xlane.f32.xlu0 %v3154
        %v3156 = vpop.xlane.xlu0 %3155
        %v3157 = vsel %vm439, %v3127, -inf
        %3158 = vmax.xlane.f32.xlu0 %v3157
        %v3159 = vpop.xlane.xlu0 %3158
        %v3160 = vsel %vm439, %v3132, -inf
        %3161 = vmax.xlane.f32.xlu0 %v3160
        %v3162 = vpop.xlane.xlu0 %3161
        %v3163 = vsel %vm439, %v3137, -inf
        %3164 = vmax.xlane.f32.xlu0 %v3163
        %v3165 = vpop.xlane.xlu0 %3164
        %v3166 = vsel %vm439, %v3142, -inf
        %3167 = vmax.xlane.f32.xlu0 %v3166
        %v3168 = vpop.xlane.xlu0 %3167
        %v3169 = vsub.f32 %v3107, %v3147
        %v3170 = vsub.f32 %v3112, %v3150
        %v3171 = vsub.f32 %v3117, %v3153
        %v3172 = vsub.f32 %v3122, %v3156
        %v3173 = vsub.f32 %v3127, %v3159
        %v3174 = vsub.f32 %v3132, %v3162
        %v3175 = vsub.f32 %v3137, %v3165
        %v3176 = vsub.f32 %v3142, %v3168
        %v3177 = vmul.f32 %v3169, 1.442695
        %v3178 = vpow.pop %v3177
        %v3179 = vmul.f32 %v3170, 1.442695
        %v3180 = vpow.pop %v3179
        %v3181 = vmul.f32 %v3171, 1.442695
        %v3182 = vpow.pop %v3181
        %v3183 = vmul.f32 %v3172, 1.442695
        %v3184 = vpow.pop %v3183
        %v3185 = vmul.f32 %v3173, 1.442695
        %v3186 = vpow.pop %v3185
        %v3187 = vmul.f32 %v3174, 1.442695
        %v3188 = vpow.pop %v3187
        %v3189 = vmul.f32 %v3175, 1.442695
        %v3190 = vpow.pop %v3189
        %v3191 = vmul.f32 %v3176, 1.442695
        %v3192 = vpow.pop %v3191
        %v3193 = vsel %vm439, %v3178, 0.0
        %3194 = vadd.xlane.f32.xlu0 %v3193
        %v3195 = vpop.xlane.xlu0 %3194
        %v3196 = vsel %vm439, %v3180, 0.0
        %3197 = vadd.xlane.f32.xlu0 %v3196
        %v3198 = vpop.xlane.xlu0 %3197
        %v3199 = vsel %vm439, %v3182, 0.0
        %3200 = vadd.xlane.f32.xlu0 %v3199
        %v3201 = vpop.xlane.xlu0 %3200
        %v3202 = vsel %vm439, %v3184, 0.0
        %3203 = vadd.xlane.f32.xlu0 %v3202
        %v3204 = vpop.xlane.xlu0 %3203
        %v3205 = vsel %vm439, %v3186, 0.0
        %3206 = vadd.xlane.f32.xlu0 %v3205
        %v3207 = vpop.xlane.xlu0 %3206
        %v3208 = vsel %vm439, %v3188, 0.0
        %3209 = vadd.xlane.f32.xlu0 %v3208
        %v3210 = vpop.xlane.xlu0 %3209
        %v3211 = vsel %vm439, %v3190, 0.0
        %3212 = vadd.xlane.f32.xlu0 %v3211
        %v3213 = vpop.xlane.xlu0 %3212
        %v3214 = vsel %vm439, %v3192, 0.0
        %3215 = vadd.xlane.f32.xlu0 %v3214
        %v3216 = vpop.xlane.xlu0 %3215
        %3217 = vrot.lane.b32.xlu0 %v789, 96
        %v3218 = vpop.permute.xlu0 %3217
        %3219 = vrot.lane.b32.xlu0 %v794, 96
        %v3220 = vpop.permute.xlu0 %3219
        %3221 = vrot.lane.b32.xlu0 %v799, 96
        %v3222 = vpop.permute.xlu0 %3221
        %3223 = vrot.lane.b32.xlu0 %v804, 96
        %v3224 = vpop.permute.xlu0 %3223
        %3225 = vrot.lane.b32.xlu0 %v809, 96
        %v3226 = vpop.permute.xlu0 %3225
        %3227 = vrot.lane.b32.xlu0 %v814, 96
        %v3228 = vpop.permute.xlu0 %3227
        %3229 = vrot.lane.b32.xlu0 %v819, 96
        %v3230 = vpop.permute.xlu0 %3229
        %3231 = vrot.lane.b32.xlu0 %v824, 96
        %v3232 = vpop.permute.xlu0 %3231
        %v3242 = vsel %vm439, %v3178, 0
        %v3245 = vsel %vm439, %v3180, 0
        %v3248 = vsel %vm439, %v3182, 0
        %v3251 = vsel %vm439, %v3184, 0
        %v3254 = vsel %vm439, %v3186, 0
        %v3257 = vsel %vm439, %v3188, 0
        %v3260 = vsel %vm439, %v3190, 0
        %v3263 = vsel %vm439, %v3192, 0
        %3265 = vmatprep.subr.mxu0 0.0
        %3266 = vmatpush1.msra.mxu0 0.0
        %3267 = vmatprep.subr.mxu0 0.0
        %3268 = vmatpush1.msra.mxu0 0.0
        %3269 = vmatprep.subr.mxu0 0.0
        %3270 = vmatpush1.msra.mxu0 0.0
        %3271 = vmatprep.subr.mxu0 0.0
        %3272 = vmatpush1.msra.mxu0 0.0
        %3273 = vmatprep.subr.mxu0 0.0
        %3274 = vmatpush1.msra.mxu0 0.0
        %3275 = vmatprep.subr.mxu0 0.0
        %3276 = vmatpush1.msra.mxu0 0.0
        %3277 = vmatprep.subr.mxu0 0.0
        %3278 = vmatpush1.msra.mxu0 0.0
        %3279 = vmatprep.subr.mxu0 0.0
        %3280 = vmatpush1.msra.mxu0 0.0
        %3281 = vmatprep.subr.mxu0 0.0
        %3282 = vmatpush1.msra.mxu0 %v3232
        %3283 = vmatprep.subr.mxu0 0.0
        %3284 = vmatpush1.msra.mxu0 %v3230
        %3285 = vmatprep.subr.mxu0 0.0
        %3286 = vmatpush1.msra.mxu0 %v3228
        %3287 = vmatprep.subr.mxu0 0.0
        %3288 = vmatpush1.msra.mxu0 %v3226
        %3289 = vmatprep.subr.mxu0 0.0
        %3290 = vmatpush1.msra.mxu0 %v3224
        %3291 = vmatprep.subr.mxu0 0.0
        %3292 = vmatpush1.msra.mxu0 %v3222
        %3293 = vmatprep.subr.mxu0 0.0
        %3294 = vmatpush1.msra.mxu0 %v3220
        %3295 = vmatprep.subr.mxu0 0.0
        %3296 = vmatpush1.msra.mxu0 %v3218
        %3297 = vmatprep.subr.mxu0 0.0
        %3298 = vmatpush2.msra.mxu0 0.0
        %3299 = vmatprep.subr.mxu0 0.0
        %3300 = vmatpush2.msra.mxu0 0.0
        %3301 = vmatprep.subr.mxu0 0.0
        %3302 = vmatpush2.msra.mxu0 0.0
        %3303 = vmatprep.subr.mxu0 0.0
        %3304 = vmatpush2.msra.mxu0 0.0
        %3305 = vmatprep.subr.mxu0 0.0
        %3306 = vmatpush2.msra.mxu0 0.0
        %3307 = vmatprep.subr.mxu0 0.0
        %3308 = vmatpush2.msra.mxu0 0.0
        %3309 = vmatprep.subr.mxu0 0.0
        %3310 = vmatpush2.msra.mxu0 0.0
        %3311 = vmatprep.subr.mxu0 0.0
        %3312 = vmatpush2.msra.mxu0 0.0
        %3313 = vmatprep.subr.mxu0 0.0
        %3314 = vmatpush2.msra.mxu0 0.0
        %3315 = vmatprep.subr.mxu0 0.0
        %3316 = vmatpush2.msra.mxu0 0.0
        %3317 = vmatprep.subr.mxu0 0.0
        %3318 = vmatpush2.msra.mxu0 0.0
        %3319 = vmatprep.subr.mxu0 0.0
        %3320 = vmatpush2.msra.mxu0 0.0
        %3321 = vmatprep.subr.mxu0 0.0
        %3322 = vmatpush2.msra.mxu0 0.0
        %3323 = vmatprep.subr.mxu0 0.0
        %3324 = vmatpush2.msra.mxu0 0.0
        %3325 = vmatprep.subr.mxu0 0.0
        %3326 = vmatpush2.msra.mxu0 0.0
        %3327 = vmatprep.subr.mxu0 0.0
        %3328 = vmatpush2.msra.mxu0 0.0
        %3329 = vmatprep.mubr.f32.mxu0 0.0
        %3330 = vmatmul.mubr.f32.gmra.mxu0 %v3242
        %v3331 = vpop.f32.mrf.mxu0
        %v3332 = vadd.f32 0.0, %v3331
        %v3333 = vpop.f32.mrf.mxu0
        %3334 = vmatprep.mubr.f32.mxu0 0.0
        %3335 = vmatmul.mubr.f32.gmra.mxu0 %v3245
        %v3336 = vpop.f32.mrf.mxu0
        %v3337 = vadd.f32 0.0, %v3336
        %v3338 = vpop.f32.mrf.mxu0
        %3339 = vmatprep.mubr.f32.mxu0 0.0
        %3340 = vmatmul.mubr.f32.gmra.mxu0 %v3248
        %v3341 = vpop.f32.mrf.mxu0
        %v3342 = vadd.f32 0.0, %v3341
        %v3343 = vpop.f32.mrf.mxu0
        %3344 = vmatprep.mubr.f32.mxu0 0.0
        %3345 = vmatmul.mubr.f32.gmra.mxu0 %v3251
        %v3346 = vpop.f32.mrf.mxu0
        %v3347 = vadd.f32 0.0, %v3346
        %v3348 = vpop.f32.mrf.mxu0
        %3349 = vmatprep.mubr.f32.mxu0 0.0
        %3350 = vmatmul.mubr.f32.gmra.mxu0 %v3254
        %v3351 = vpop.f32.mrf.mxu0
        %v3352 = vadd.f32 0.0, %v3351
        %v3353 = vpop.f32.mrf.mxu0
        %3354 = vmatprep.mubr.f32.mxu0 0.0
        %3355 = vmatmul.mubr.f32.gmra.mxu0 %v3257
        %v3356 = vpop.f32.mrf.mxu0
        %v3357 = vadd.f32 0.0, %v3356
        %v3358 = vpop.f32.mrf.mxu0
        %3359 = vmatprep.mubr.f32.mxu0 0.0
        %3360 = vmatmul.mubr.f32.gmra.mxu0 %v3260
        %v3361 = vpop.f32.mrf.mxu0
        %v3362 = vadd.f32 0.0, %v3361
        %v3363 = vpop.f32.mrf.mxu0
        %3364 = vmatprep.mubr.f32.mxu0 0.0
        %3365 = vmatmul.mubr.f32.gmra.mxu0 %v3263
        %v3366 = vpop.f32.mrf.mxu0
        %v3367 = vadd.f32 0.0, %v3366
        %v3368 = vpop.f32.mrf.mxu0
        %3369 = vdwg.mxu0
        %v3370 = vrcp.pop %v3195
        %v3371 = vrcp.pop %v3198
        %v3372 = vrcp.pop %v3201
        %v3373 = vrcp.pop %v3204
        %v3374 = vrcp.pop %v3207
        %v3375 = vrcp.pop %v3210
        %v3376 = vrcp.pop %v3213
        %v3377 = vrcp.pop %v3216
        %v3378 = vmul.f32 %v3332, %v3370
        %v3379 = vmul.f32 %v3337, %v3371
        %v3380 = vmul.f32 %v3342, %v3372
        %v3381 = vmul.f32 %v3347, %v3373
        %v3382 = vmul.f32 %v3352, %v3374
        %v3383 = vmul.f32 %v3357, %v3375
        %v3384 = vmul.f32 %v3362, %v3376
        %v3385 = vmul.f32 %v3367, %v3377
        %v3387 = vsel %vm835, %v3378, 0
        %v3390 = vsel %vm835, %v3379, 0
        %v3393 = vsel %vm835, %v3380, 0
        %v3396 = vsel %vm835, %v3381, 0
        %v3399 = vsel %vm835, %v3382, 0
        %v3402 = vsel %vm835, %v3383, 0
        %v3405 = vsel %vm835, %v3384, 0
        %v3408 = vsel %vm835, %v3385, 0
        %3410 = vmatprep.subr.mxu0 0.0
        %3411 = vmatpush1.msra.mxu0 0.0
        %3412 = vmatprep.subr.mxu0 0.0
        %3413 = vmatpush1.msra.mxu0 0.0
        %3414 = vmatprep.subr.mxu0 0.0
        %3415 = vmatpush1.msra.mxu0 0.0
        %3416 = vmatprep.subr.mxu0 0.0
        %3417 = vmatpush1.msra.mxu0 0.0
        %3418 = vmatprep.subr.mxu0 0.0
        %3419 = vmatpush1.msra.mxu0 0.0
        %3420 = vmatprep.subr.mxu0 0.0
        %3421 = vmatpush1.msra.mxu0 0.0
        %3422 = vmatprep.subr.mxu0 0.0
        %3423 = vmatpush1.msra.mxu0 0.0
        %3424 = vmatprep.subr.mxu0 0.0
        %3425 = vmatpush1.msra.mxu0 0.0
        %3426 = vmatprep.subr.mxu0 0.0
        %3427 = vmatpush1.msra.mxu0 0.0
        %3428 = vmatprep.subr.mxu0 0.0
        %3429 = vmatpush1.msra.mxu0 0.0
        %3430 = vmatprep.subr.mxu0 0.0
        %3431 = vmatpush1.msra.mxu0 0.0
        %3432 = vmatprep.subr.mxu0 0.0
        %3433 = vmatpush1.msra.mxu0 0.0
        %3434 = vmatprep.subr.mxu0 0.0
        %3435 = vmatpush1.msra.mxu0 0.0
        %3436 = vmatprep.subr.mxu0 0.0
        %3437 = vmatpush1.msra.mxu0 0.0
        %3438 = vmatprep.subr.mxu0 0.0
        %3439 = vmatpush1.msra.mxu0 0.0
        %3440 = vmatprep.subr.mxu0 0.0
        %3441 = vmatpush1.msra.mxu0 %v831
        %3442 = vmatprep.subr.mxu0 0.0
        %3443 = vmatpush2.msra.mxu0 0.0
        %3444 = vmatprep.subr.mxu0 0.0
        %3445 = vmatpush2.msra.mxu0 0.0
        %3446 = vmatprep.subr.mxu0 0.0
        %3447 = vmatpush2.msra.mxu0 0.0
        %3448 = vmatprep.subr.mxu0 0.0
        %3449 = vmatpush2.msra.mxu0 0.0
        %3450 = vmatprep.subr.mxu0 0.0
        %3451 = vmatpush2.msra.mxu0 0.0
        %3452 = vmatprep.subr.mxu0 0.0
        %3453 = vmatpush2.msra.mxu0 0.0
        %3454 = vmatprep.subr.mxu0 0.0
        %3455 = vmatpush2.msra.mxu0 0.0
        %3456 = vmatprep.subr.mxu0 0.0
        %3457 = vmatpush2.msra.mxu0 0.0
        %3458 = vmatprep.subr.mxu0 0.0
        %3459 = vmatpush2.msra.mxu0 0.0
        %3460 = vmatprep.subr.mxu0 0.0
        %3461 = vmatpush2.msra.mxu0 0.0
        %3462 = vmatprep.subr.mxu0 0.0
        %3463 = vmatpush2.msra.mxu0 0.0
        %3464 = vmatprep.subr.mxu0 0.0
        %3465 = vmatpush2.msra.mxu0 0.0
        %3466 = vmatprep.subr.mxu0 0.0
        %3467 = vmatpush2.msra.mxu0 0.0
        %3468 = vmatprep.subr.mxu0 0.0
        %3469 = vmatpush2.msra.mxu0 0.0
        %3470 = vmatprep.subr.mxu0 0.0
        %3471 = vmatpush2.msra.mxu0 0.0
        %3472 = vmatprep.subr.mxu0 0.0
        %3473 = vmatpush2.msra.mxu0 0.0
        %3474 = vmatprep.mubr.f32.mxu0 0.0
        %3475 = vmatmul.mubr.f32.gmra.mxu0 %v3387
        %v3476 = vpop.f32.mrf.mxu0
        %v3477 = vadd.f32 0.0, %v3476
        %v3478 = vpop.f32.mrf.mxu0
        %3479 = vmatprep.mubr.f32.mxu0 0.0
        %3480 = vmatmul.mubr.f32.gmra.mxu0 %v3390
        %v3481 = vpop.f32.mrf.mxu0
        %v3482 = vadd.f32 0.0, %v3481
        %v3483 = vpop.f32.mrf.mxu0
        %3484 = vmatprep.mubr.f32.mxu0 0.0
        %3485 = vmatmul.mubr.f32.gmra.mxu0 %v3393
        %v3486 = vpop.f32.mrf.mxu0
        %v3487 = vadd.f32 0.0, %v3486
        %v3488 = vpop.f32.mrf.mxu0
        %3489 = vmatprep.mubr.f32.mxu0 0.0
        %3490 = vmatmul.mubr.f32.gmra.mxu0 %v3396
        %v3491 = vpop.f32.mrf.mxu0
        %v3492 = vadd.f32 0.0, %v3491
        %v3493 = vpop.f32.mrf.mxu0
        %3494 = vmatprep.mubr.f32.mxu0 0.0
        %3495 = vmatmul.mubr.f32.gmra.mxu0 %v3399
        %v3496 = vpop.f32.mrf.mxu0
        %v3497 = vadd.f32 0.0, %v3496
        %v3498 = vpop.f32.mrf.mxu0
        %3499 = vmatprep.mubr.f32.mxu0 0.0
        %3500 = vmatmul.mubr.f32.gmra.mxu0 %v3402
        %v3501 = vpop.f32.mrf.mxu0
        %v3502 = vadd.f32 0.0, %v3501
        %v3503 = vpop.f32.mrf.mxu0
        %3504 = vmatprep.mubr.f32.mxu0 0.0
        %3505 = vmatmul.mubr.f32.gmra.mxu0 %v3405
        %v3506 = vpop.f32.mrf.mxu0
        %v3507 = vadd.f32 0.0, %v3506
        %v3508 = vpop.f32.mrf.mxu0
        %3509 = vmatprep.mubr.f32.mxu0 0.0
        %3510 = vmatmul.mubr.f32.gmra.mxu0 %v3408
        %v3511 = vpop.f32.mrf.mxu0
        %v3512 = vadd.f32 0.0, %v3511
        %v3513 = vpop.f32.mrf.mxu0
        %3514 = vdwg.mxu0
        %v3515 = vadd.f32 %v2968, %v3477
        %v3516 = vadd.f32 %v2969, %v3482
        %v3517 = vadd.f32 %v2970, %v3487
        %v3518 = vadd.f32 %v2971, %v3492
        %v3519 = vadd.f32 %v2972, %v3497
        %v3520 = vadd.f32 %v2973, %v3502
        %v3521 = vadd.f32 %v2974, %v3507
        %v3522 = vadd.f32 %v2975, %v3512
        %3523 = vrot.lane.b32.xlu0 %v569, 88
        %v3524 = vpop.permute.xlu0 %3523
        %3525 = vrot.lane.b32.xlu0 %v570, 88
        %v3526 = vpop.permute.xlu0 %3525
        %3527 = vrot.lane.b32.xlu0 %v571, 88
        %v3528 = vpop.permute.xlu0 %3527
        %3529 = vrot.lane.b32.xlu0 %v572, 88
        %v3530 = vpop.permute.xlu0 %3529
        %3531 = vrot.lane.b32.xlu0 %v573, 88
        %v3532 = vpop.permute.xlu0 %3531
        %3533 = vrot.lane.b32.xlu0 %v574, 88
        %v3534 = vpop.permute.xlu0 %3533
        %3535 = vrot.lane.b32.xlu0 %v575, 88
        %v3536 = vpop.permute.xlu0 %3535
        %3537 = vrot.lane.b32.xlu0 %v576, 88
        %v3538 = vpop.permute.xlu0 %3537
        %3539 = vrot.lane.b32.xlu0 %v676, 88
        %v3540 = vpop.permute.xlu0 %3539
        %3541 = vrot.lane.b32.xlu0 %v681, 88
        %v3542 = vpop.permute.xlu0 %3541
        %3543 = vrot.lane.b32.xlu0 %v686, 88
        %v3544 = vpop.permute.xlu0 %3543
        %3545 = vrot.lane.b32.xlu0 %v691, 88
        %v3546 = vpop.permute.xlu0 %3545
        %3547 = vrot.lane.b32.xlu0 %v696, 88
        %v3548 = vpop.permute.xlu0 %3547
        %3549 = vrot.lane.b32.xlu0 %v701, 88
        %v3550 = vpop.permute.xlu0 %3549
        %3551 = vrot.lane.b32.xlu0 %v706, 88
        %v3552 = vpop.permute.xlu0 %3551
        %3553 = vrot.lane.b32.xlu0 %v711, 88
        %v3554 = vpop.permute.xlu0 %3553
        %v3555 = vsel %vm835, %v3524, 0
        %v3557 = vsel %vm835, %v3526, 0
        %v3559 = vsel %vm835, %v3528, 0
        %v3561 = vsel %vm835, %v3530, 0
        %v3563 = vsel %vm835, %v3532, 0
        %v3565 = vsel %vm835, %v3534, 0
        %v3567 = vsel %vm835, %v3536, 0
        %v3569 = vsel %vm835, %v3538, 0
        %v3571 = vsel %vm835, %v3540, 0
        %v3573 = vsel %vm835, %v3542, 0
        %v3575 = vsel %vm835, %v3544, 0
        %v3577 = vsel %vm835, %v3546, 0
        %v3579 = vsel %vm835, %v3548, 0
        %v3581 = vsel %vm835, %v3550, 0
        %v3583 = vsel %vm835, %v3552, 0
        %v3585 = vsel %vm835, %v3554, 0
        %3587 = vmatprep.subr.mxu0 0.0
        %3588 = vmatpush1.xpose.msra.mxu0 0.0
        %3589 = vmatprep.subr.mxu0 0.0
        %3590 = vmatpush1.xpose.msra.mxu0 0.0
        %3591 = vmatprep.subr.mxu0 0.0
        %3592 = vmatpush1.xpose.msra.mxu0 0.0
        %3593 = vmatprep.subr.mxu0 0.0
        %3594 = vmatpush1.xpose.msra.mxu0 0.0
        %3595 = vmatprep.subr.mxu0 0.0
        %3596 = vmatpush1.xpose.msra.mxu0 0.0
        %3597 = vmatprep.subr.mxu0 0.0
        %3598 = vmatpush1.xpose.msra.mxu0 0.0
        %3599 = vmatprep.subr.mxu0 0.0
        %3600 = vmatpush1.xpose.msra.mxu0 0.0
        %3601 = vmatprep.subr.mxu0 0.0
        %3602 = vmatpush1.xpose.msra.mxu0 0.0
        %3603 = vmatprep.subr.mxu0 0.0
        %3604 = vmatpush1.xpose.msra.mxu0 %v3585
        %3605 = vmatprep.subr.mxu0 0.0
        %3606 = vmatpush1.xpose.msra.mxu0 %v3583
        %3607 = vmatprep.subr.mxu0 0.0
        %3608 = vmatpush1.xpose.msra.mxu0 %v3581
        %3609 = vmatprep.subr.mxu0 0.0
        %3610 = vmatpush1.xpose.msra.mxu0 %v3579
        %3611 = vmatprep.subr.mxu0 0.0
        %3612 = vmatpush1.xpose.msra.mxu0 %v3577
        %3613 = vmatprep.subr.mxu0 0.0
        %3614 = vmatpush1.xpose.msra.mxu0 %v3575
        %3615 = vmatprep.subr.mxu0 0.0
        %3616 = vmatpush1.xpose.msra.mxu0 %v3573
        %3617 = vmatprep.subr.mxu0 0.0
        %3618 = vmatpush1.xpose.msra.mxu0 %v3571
        %3619 = vmatprep.subr.mxu0 0.0
        %3620 = vmatpush2.xpose.msra.mxu0 0.0
        %3621 = vmatprep.subr.mxu0 0.0
        %3622 = vmatpush2.xpose.msra.mxu0 0.0
        %3623 = vmatprep.subr.mxu0 0.0
        %3624 = vmatpush2.xpose.msra.mxu0 0.0
        %3625 = vmatprep.subr.mxu0 0.0
        %3626 = vmatpush2.xpose.msra.mxu0 0.0
        %3627 = vmatprep.subr.mxu0 0.0
        %3628 = vmatpush2.xpose.msra.mxu0 0.0
        %3629 = vmatprep.subr.mxu0 0.0
        %3630 = vmatpush2.xpose.msra.mxu0 0.0
        %3631 = vmatprep.subr.mxu0 0.0
        %3632 = vmatpush2.xpose.msra.mxu0 0.0
        %3633 = vmatprep.subr.mxu0 0.0
        %3634 = vmatpush2.xpose.msra.mxu0 0.0
        %3635 = vmatprep.subr.mxu0 0.0
        %3636 = vmatpush2.xpose.msra.mxu0 0.0
        %3637 = vmatprep.subr.mxu0 0.0
        %3638 = vmatpush2.xpose.msra.mxu0 0.0
        %3639 = vmatprep.subr.mxu0 0.0
        %3640 = vmatpush2.xpose.msra.mxu0 0.0
        %3641 = vmatprep.subr.mxu0 0.0
        %3642 = vmatpush2.xpose.msra.mxu0 0.0
        %3643 = vmatprep.subr.mxu0 0.0
        %3644 = vmatpush2.xpose.msra.mxu0 0.0
        %3645 = vmatprep.subr.mxu0 0.0
        %3646 = vmatpush2.xpose.msra.mxu0 0.0
        %3647 = vmatprep.subr.mxu0 0.0
        %3648 = vmatpush2.xpose.msra.mxu0 0.0
        %3649 = vmatprep.subr.mxu0 0.0
        %3650 = vmatpush2.xpose.msra.mxu0 0.0
        %3651 = vmatprep.mubr.f32.mxu0 0.0
        %3652 = vmatmul.mubr.f32.gmra.mxu0 %v3555
        %v3653 = vpop.f32.mrf.mxu0
        %v3654 = vadd.f32 0.0, %v3653
        %v3655 = vpop.f32.mrf.mxu0
        %3656 = vmatprep.mubr.f32.mxu0 0.0
        %3657 = vmatmul.mubr.f32.gmra.mxu0 %v3557
        %v3658 = vpop.f32.mrf.mxu0
        %v3659 = vadd.f32 0.0, %v3658
        %v3660 = vpop.f32.mrf.mxu0
        %3661 = vmatprep.mubr.f32.mxu0 0.0
        %3662 = vmatmul.mubr.f32.gmra.mxu0 %v3559
        %v3663 = vpop.f32.mrf.mxu0
        %v3664 = vadd.f32 0.0, %v3663
        %v3665 = vpop.f32.mrf.mxu0
        %3666 = vmatprep.mubr.f32.mxu0 0.0
        %3667 = vmatmul.mubr.f32.gmra.mxu0 %v3561
        %v3668 = vpop.f32.mrf.mxu0
        %v3669 = vadd.f32 0.0, %v3668
        %v3670 = vpop.f32.mrf.mxu0
        %3671 = vmatprep.mubr.f32.mxu0 0.0
        %3672 = vmatmul.mubr.f32.gmra.mxu0 %v3563
        %v3673 = vpop.f32.mrf.mxu0
        %v3674 = vadd.f32 0.0, %v3673
        %v3675 = vpop.f32.mrf.mxu0
        %3676 = vmatprep.mubr.f32.mxu0 0.0
        %3677 = vmatmul.mubr.f32.gmra.mxu0 %v3565
        %v3678 = vpop.f32.mrf.mxu0
        %v3679 = vadd.f32 0.0, %v3678
        %v3680 = vpop.f32.mrf.mxu0
        %3681 = vmatprep.mubr.f32.mxu0 0.0
        %3682 = vmatmul.mubr.f32.gmra.mxu0 %v3567
        %v3683 = vpop.f32.mrf.mxu0
        %v3684 = vadd.f32 0.0, %v3683
        %v3685 = vpop.f32.mrf.mxu0
        %3686 = vmatprep.mubr.f32.mxu0 0.0
        %3687 = vmatmul.mubr.f32.gmra.mxu0 %v3569
        %v3688 = vpop.f32.mrf.mxu0
        %v3689 = vadd.f32 0.0, %v3688
        %v3690 = vpop.f32.mrf.mxu0
        %3691 = vdwg.mxu0
        %v3692 = vsel %vm439, %v3654, -inf
        %3693 = vmax.xlane.f32.xlu0 %v3692
        %v3694 = vpop.xlane.xlu0 %3693
        %v3695 = vsel %vm439, %v3659, -inf
        %3696 = vmax.xlane.f32.xlu0 %v3695
        %v3697 = vpop.xlane.xlu0 %3696
        %v3698 = vsel %vm439, %v3664, -inf
        %3699 = vmax.xlane.f32.xlu0 %v3698
        %v3700 = vpop.xlane.xlu0 %3699
        %v3701 = vsel %vm439, %v3669, -inf
        %3702 = vmax.xlane.f32.xlu0 %v3701
        %v3703 = vpop.xlane.xlu0 %3702
        %v3704 = vsel %vm439, %v3674, -inf
        %3705 = vmax.xlane.f32.xlu0 %v3704
        %v3706 = vpop.xlane.xlu0 %3705
        %v3707 = vsel %vm439, %v3679, -inf
        %3708 = vmax.xlane.f32.xlu0 %v3707
        %v3709 = vpop.xlane.xlu0 %3708
        %v3710 = vsel %vm439, %v3684, -inf
        %3711 = vmax.xlane.f32.xlu0 %v3710
        %v3712 = vpop.xlane.xlu0 %3711
        %v3713 = vsel %vm439, %v3689, -inf
        %3714 = vmax.xlane.f32.xlu0 %v3713
        %v3715 = vpop.xlane.xlu0 %3714
        %v3716 = vsub.f32 %v3654, %v3694
        %v3717 = vsub.f32 %v3659, %v3697
        %v3718 = vsub.f32 %v3664, %v3700
        %v3719 = vsub.f32 %v3669, %v3703
        %v3720 = vsub.f32 %v3674, %v3706
        %v3721 = vsub.f32 %v3679, %v3709
        %v3722 = vsub.f32 %v3684, %v3712
        %v3723 = vsub.f32 %v3689, %v3715
        %v3724 = vmul.f32 %v3716, 1.442695
        %v3725 = vpow.pop %v3724
        %v3726 = vmul.f32 %v3717, 1.442695
        %v3727 = vpow.pop %v3726
        %v3728 = vmul.f32 %v3718, 1.442695
        %v3729 = vpow.pop %v3728
        %v3730 = vmul.f32 %v3719, 1.442695
        %v3731 = vpow.pop %v3730
        %v3732 = vmul.f32 %v3720, 1.442695
        %v3733 = vpow.pop %v3732
        %v3734 = vmul.f32 %v3721, 1.442695
        %v3735 = vpow.pop %v3734
        %v3736 = vmul.f32 %v3722, 1.442695
        %v3737 = vpow.pop %v3736
        %v3738 = vmul.f32 %v3723, 1.442695
        %v3739 = vpow.pop %v3738
        %v3740 = vsel %vm439, %v3725, 0.0
        %3741 = vadd.xlane.f32.xlu0 %v3740
        %v3742 = vpop.xlane.xlu0 %3741
        %v3743 = vsel %vm439, %v3727, 0.0
        %3744 = vadd.xlane.f32.xlu0 %v3743
        %v3745 = vpop.xlane.xlu0 %3744
        %v3746 = vsel %vm439, %v3729, 0.0
        %3747 = vadd.xlane.f32.xlu0 %v3746
        %v3748 = vpop.xlane.xlu0 %3747
        %v3749 = vsel %vm439, %v3731, 0.0
        %3750 = vadd.xlane.f32.xlu0 %v3749
        %v3751 = vpop.xlane.xlu0 %3750
        %v3752 = vsel %vm439, %v3733, 0.0
        %3753 = vadd.xlane.f32.xlu0 %v3752
        %v3754 = vpop.xlane.xlu0 %3753
        %v3755 = vsel %vm439, %v3735, 0.0
        %3756 = vadd.xlane.f32.xlu0 %v3755
        %v3757 = vpop.xlane.xlu0 %3756
        %v3758 = vsel %vm439, %v3737, 0.0
        %3759 = vadd.xlane.f32.xlu0 %v3758
        %v3760 = vpop.xlane.xlu0 %3759
        %v3761 = vsel %vm439, %v3739, 0.0
        %3762 = vadd.xlane.f32.xlu0 %v3761
        %v3763 = vpop.xlane.xlu0 %3762
        %3764 = vrot.lane.b32.xlu0 %v789, 88
        %v3765 = vpop.permute.xlu0 %3764
        %3766 = vrot.lane.b32.xlu0 %v794, 88
        %v3767 = vpop.permute.xlu0 %3766
        %3768 = vrot.lane.b32.xlu0 %v799, 88
        %v3769 = vpop.permute.xlu0 %3768
        %3770 = vrot.lane.b32.xlu0 %v804, 88
        %v3771 = vpop.permute.xlu0 %3770
        %3772 = vrot.lane.b32.xlu0 %v809, 88
        %v3773 = vpop.permute.xlu0 %3772
        %3774 = vrot.lane.b32.xlu0 %v814, 88
        %v3775 = vpop.permute.xlu0 %3774
        %3776 = vrot.lane.b32.xlu0 %v819, 88
        %v3777 = vpop.permute.xlu0 %3776
        %3778 = vrot.lane.b32.xlu0 %v824, 88
        %v3779 = vpop.permute.xlu0 %3778
        %v3789 = vsel %vm439, %v3725, 0
        %v3792 = vsel %vm439, %v3727, 0
        %v3795 = vsel %vm439, %v3729, 0
        %v3798 = vsel %vm439, %v3731, 0
        %v3801 = vsel %vm439, %v3733, 0
        %v3804 = vsel %vm439, %v3735, 0
        %v3807 = vsel %vm439, %v3737, 0
        %v3810 = vsel %vm439, %v3739, 0
        %3812 = vmatprep.subr.mxu0 0.0
        %3813 = vmatpush1.msra.mxu0 0.0
        %3814 = vmatprep.subr.mxu0 0.0
        %3815 = vmatpush1.msra.mxu0 0.0
        %3816 = vmatprep.subr.mxu0 0.0
        %3817 = vmatpush1.msra.mxu0 0.0
        %3818 = vmatprep.subr.mxu0 0.0
        %3819 = vmatpush1.msra.mxu0 0.0
        %3820 = vmatprep.subr.mxu0 0.0
        %3821 = vmatpush1.msra.mxu0 0.0
        %3822 = vmatprep.subr.mxu0 0.0
        %3823 = vmatpush1.msra.mxu0 0.0
        %3824 = vmatprep.subr.mxu0 0.0
        %3825 = vmatpush1.msra.mxu0 0.0
        %3826 = vmatprep.subr.mxu0 0.0
        %3827 = vmatpush1.msra.mxu0 0.0
        %3828 = vmatprep.subr.mxu0 0.0
        %3829 = vmatpush1.msra.mxu0 %v3779
        %3830 = vmatprep.subr.mxu0 0.0
        %3831 = vmatpush1.msra.mxu0 %v3777
        %3832 = vmatprep.subr.mxu0 0.0
        %3833 = vmatpush1.msra.mxu0 %v3775
        %3834 = vmatprep.subr.mxu0 0.0
        %3835 = vmatpush1.msra.mxu0 %v3773
        %3836 = vmatprep.subr.mxu0 0.0
        %3837 = vmatpush1.msra.mxu0 %v3771
        %3838 = vmatprep.subr.mxu0 0.0
        %3839 = vmatpush1.msra.mxu0 %v3769
        %3840 = vmatprep.subr.mxu0 0.0
        %3841 = vmatpush1.msra.mxu0 %v3767
        %3842 = vmatprep.subr.mxu0 0.0
        %3843 = vmatpush1.msra.mxu0 %v3765
        %3844 = vmatprep.subr.mxu0 0.0
        %3845 = vmatpush2.msra.mxu0 0.0
        %3846 = vmatprep.subr.mxu0 0.0
        %3847 = vmatpush2.msra.mxu0 0.0
        %3848 = vmatprep.subr.mxu0 0.0
        %3849 = vmatpush2.msra.mxu0 0.0
        %3850 = vmatprep.subr.mxu0 0.0
        %3851 = vmatpush2.msra.mxu0 0.0
        %3852 = vmatprep.subr.mxu0 0.0
        %3853 = vmatpush2.msra.mxu0 0.0
        %3854 = vmatprep.subr.mxu0 0.0
        %3855 = vmatpush2.msra.mxu0 0.0
        %3856 = vmatprep.subr.mxu0 0.0
        %3857 = vmatpush2.msra.mxu0 0.0
        %3858 = vmatprep.subr.mxu0 0.0
        %3859 = vmatpush2.msra.mxu0 0.0
        %3860 = vmatprep.subr.mxu0 0.0
        %3861 = vmatpush2.msra.mxu0 0.0
        %3862 = vmatprep.subr.mxu0 0.0
        %3863 = vmatpush2.msra.mxu0 0.0
        %3864 = vmatprep.subr.mxu0 0.0
        %3865 = vmatpush2.msra.mxu0 0.0
        %3866 = vmatprep.subr.mxu0 0.0
        %3867 = vmatpush2.msra.mxu0 0.0
        %3868 = vmatprep.subr.mxu0 0.0
        %3869 = vmatpush2.msra.mxu0 0.0
        %3870 = vmatprep.subr.mxu0 0.0
        %3871 = vmatpush2.msra.mxu0 0.0
        %3872 = vmatprep.subr.mxu0 0.0
        %3873 = vmatpush2.msra.mxu0 0.0
        %3874 = vmatprep.subr.mxu0 0.0
        %3875 = vmatpush2.msra.mxu0 0.0
        %3876 = vmatprep.mubr.f32.mxu0 0.0
        %3877 = vmatmul.mubr.f32.gmra.mxu0 %v3789
        %v3878 = vpop.f32.mrf.mxu0
        %v3879 = vadd.f32 0.0, %v3878
        %v3880 = vpop.f32.mrf.mxu0
        %3881 = vmatprep.mubr.f32.mxu0 0.0
        %3882 = vmatmul.mubr.f32.gmra.mxu0 %v3792
        %v3883 = vpop.f32.mrf.mxu0
        %v3884 = vadd.f32 0.0, %v3883
        %v3885 = vpop.f32.mrf.mxu0
        %3886 = vmatprep.mubr.f32.mxu0 0.0
        %3887 = vmatmul.mubr.f32.gmra.mxu0 %v3795
        %v3888 = vpop.f32.mrf.mxu0
        %v3889 = vadd.f32 0.0, %v3888
        %v3890 = vpop.f32.mrf.mxu0
        %3891 = vmatprep.mubr.f32.mxu0 0.0
        %3892 = vmatmul.mubr.f32.gmra.mxu0 %v3798
        %v3893 = vpop.f32.mrf.mxu0
        %v3894 = vadd.f32 0.0, %v3893
        %v3895 = vpop.f32.mrf.mxu0
        %3896 = vmatprep.mubr.f32.mxu0 0.0
        %3897 = vmatmul.mubr.f32.gmra.mxu0 %v3801
        %v3898 = vpop.f32.mrf.mxu0
        %v3899 = vadd.f32 0.0, %v3898
        %v3900 = vpop.f32.mrf.mxu0
        %3901 = vmatprep.mubr.f32.mxu0 0.0
        %3902 = vmatmul.mubr.f32.gmra.mxu0 %v3804
        %v3903 = vpop.f32.mrf.mxu0
        %v3904 = vadd.f32 0.0, %v3903
        %v3905 = vpop.f32.mrf.mxu0
        %3906 = vmatprep.mubr.f32.mxu0 0.0
        %3907 = vmatmul.mubr.f32.gmra.mxu0 %v3807
        %v3908 = vpop.f32.mrf.mxu0
        %v3909 = vadd.f32 0.0, %v3908
        %v3910 = vpop.f32.mrf.mxu0
        %3911 = vmatprep.mubr.f32.mxu0 0.0
        %3912 = vmatmul.mubr.f32.gmra.mxu0 %v3810
        %v3913 = vpop.f32.mrf.mxu0
        %v3914 = vadd.f32 0.0, %v3913
        %v3915 = vpop.f32.mrf.mxu0
        %3916 = vdwg.mxu0
        %v3917 = vrcp.pop %v3742
        %v3918 = vrcp.pop %v3745
        %v3919 = vrcp.pop %v3748
        %v3920 = vrcp.pop %v3751
        %v3921 = vrcp.pop %v3754
        %v3922 = vrcp.pop %v3757
        %v3923 = vrcp.pop %v3760
        %v3924 = vrcp.pop %v3763
        %v3925 = vmul.f32 %v3879, %v3917
        %v3926 = vmul.f32 %v3884, %v3918
        %v3927 = vmul.f32 %v3889, %v3919
        %v3928 = vmul.f32 %v3894, %v3920
        %v3929 = vmul.f32 %v3899, %v3921
        %v3930 = vmul.f32 %v3904, %v3922
        %v3931 = vmul.f32 %v3909, %v3923
        %v3932 = vmul.f32 %v3914, %v3924
        %v3934 = vsel %vm835, %v3925, 0
        %v3937 = vsel %vm835, %v3926, 0
        %v3940 = vsel %vm835, %v3927, 0
        %v3943 = vsel %vm835, %v3928, 0
        %v3946 = vsel %vm835, %v3929, 0
        %v3949 = vsel %vm835, %v3930, 0
        %v3952 = vsel %vm835, %v3931, 0
        %v3955 = vsel %vm835, %v3932, 0
        %3957 = vmatprep.subr.mxu0 0.0
        %3958 = vmatpush1.msra.mxu0 0.0
        %3959 = vmatprep.subr.mxu0 0.0
        %3960 = vmatpush1.msra.mxu0 0.0
        %3961 = vmatprep.subr.mxu0 0.0
        %3962 = vmatpush1.msra.mxu0 0.0
        %3963 = vmatprep.subr.mxu0 0.0
        %3964 = vmatpush1.msra.mxu0 0.0
        %3965 = vmatprep.subr.mxu0 0.0
        %3966 = vmatpush1.msra.mxu0 0.0
        %3967 = vmatprep.subr.mxu0 0.0
        %3968 = vmatpush1.msra.mxu0 0.0
        %3969 = vmatprep.subr.mxu0 0.0
        %3970 = vmatpush1.msra.mxu0 0.0
        %3971 = vmatprep.subr.mxu0 0.0
        %3972 = vmatpush1.msra.mxu0 0.0
        %3973 = vmatprep.subr.mxu0 0.0
        %3974 = vmatpush1.msra.mxu0 0.0
        %3975 = vmatprep.subr.mxu0 0.0
        %3976 = vmatpush1.msra.mxu0 0.0
        %3977 = vmatprep.subr.mxu0 0.0
        %3978 = vmatpush1.msra.mxu0 0.0
        %3979 = vmatprep.subr.mxu0 0.0
        %3980 = vmatpush1.msra.mxu0 0.0
        %3981 = vmatprep.subr.mxu0 0.0
        %3982 = vmatpush1.msra.mxu0 0.0
        %3983 = vmatprep.subr.mxu0 0.0
        %3984 = vmatpush1.msra.mxu0 0.0
        %3985 = vmatprep.subr.mxu0 0.0
        %3986 = vmatpush1.msra.mxu0 0.0
        %3987 = vmatprep.subr.mxu0 0.0
        %3988 = vmatpush1.msra.mxu0 %v832
        %3989 = vmatprep.subr.mxu0 0.0
        %3990 = vmatpush2.msra.mxu0 0.0
        %3991 = vmatprep.subr.mxu0 0.0
        %3992 = vmatpush2.msra.mxu0 0.0
        %3993 = vmatprep.subr.mxu0 0.0
        %3994 = vmatpush2.msra.mxu0 0.0
        %3995 = vmatprep.subr.mxu0 0.0
        %3996 = vmatpush2.msra.mxu0 0.0
        %3997 = vmatprep.subr.mxu0 0.0
        %3998 = vmatpush2.msra.mxu0 0.0
        %3999 = vmatprep.subr.mxu0 0.0
        %4000 = vmatpush2.msra.mxu0 0.0
        %4001 = vmatprep.subr.mxu0 0.0
        %4002 = vmatpush2.msra.mxu0 0.0
        %4003 = vmatprep.subr.mxu0 0.0
        %4004 = vmatpush2.msra.mxu0 0.0
        %4005 = vmatprep.subr.mxu0 0.0
        %4006 = vmatpush2.msra.mxu0 0.0
        %4007 = vmatprep.subr.mxu0 0.0
        %4008 = vmatpush2.msra.mxu0 0.0
        %4009 = vmatprep.subr.mxu0 0.0
        %4010 = vmatpush2.msra.mxu0 0.0
        %4011 = vmatprep.subr.mxu0 0.0
        %4012 = vmatpush2.msra.mxu0 0.0
        %4013 = vmatprep.subr.mxu0 0.0
        %4014 = vmatpush2.msra.mxu0 0.0
        %4015 = vmatprep.subr.mxu0 0.0
        %4016 = vmatpush2.msra.mxu0 0.0
        %4017 = vmatprep.subr.mxu0 0.0
        %4018 = vmatpush2.msra.mxu0 0.0
        %4019 = vmatprep.subr.mxu0 0.0
        %4020 = vmatpush2.msra.mxu0 0.0
        %4021 = vmatprep.mubr.f32.mxu0 0.0
        %4022 = vmatmul.mubr.f32.gmra.mxu0 %v3934
        %v4023 = vpop.f32.mrf.mxu0
        %v4024 = vadd.f32 0.0, %v4023
        %v4025 = vpop.f32.mrf.mxu0
        %4026 = vmatprep.mubr.f32.mxu0 0.0
        %4027 = vmatmul.mubr.f32.gmra.mxu0 %v3937
        %v4028 = vpop.f32.mrf.mxu0
        %v4029 = vadd.f32 0.0, %v4028
        %v4030 = vpop.f32.mrf.mxu0
        %4031 = vmatprep.mubr.f32.mxu0 0.0
        %4032 = vmatmul.mubr.f32.gmra.mxu0 %v3940
        %v4033 = vpop.f32.mrf.mxu0
        %v4034 = vadd.f32 0.0, %v4033
        %v4035 = vpop.f32.mrf.mxu0
        %4036 = vmatprep.mubr.f32.mxu0 0.0
        %4037 = vmatmul.mubr.f32.gmra.mxu0 %v3943
        %v4038 = vpop.f32.mrf.mxu0
        %v4039 = vadd.f32 0.0, %v4038
        %v4040 = vpop.f32.mrf.mxu0
        %4041 = vmatprep.mubr.f32.mxu0 0.0
        %4042 = vmatmul.mubr.f32.gmra.mxu0 %v3946
        %v4043 = vpop.f32.mrf.mxu0
        %v4044 = vadd.f32 0.0, %v4043
        %v4045 = vpop.f32.mrf.mxu0
        %4046 = vmatprep.mubr.f32.mxu0 0.0
        %4047 = vmatmul.mubr.f32.gmra.mxu0 %v3949
        %v4048 = vpop.f32.mrf.mxu0
        %v4049 = vadd.f32 0.0, %v4048
        %v4050 = vpop.f32.mrf.mxu0
        %4051 = vmatprep.mubr.f32.mxu0 0.0
        %4052 = vmatmul.mubr.f32.gmra.mxu0 %v3952
        %v4053 = vpop.f32.mrf.mxu0
        %v4054 = vadd.f32 0.0, %v4053
        %v4055 = vpop.f32.mrf.mxu0
        %4056 = vmatprep.mubr.f32.mxu0 0.0
        %4057 = vmatmul.mubr.f32.gmra.mxu0 %v3955
        %v4058 = vpop.f32.mrf.mxu0
        %v4059 = vadd.f32 0.0, %v4058
        %v4060 = vpop.f32.mrf.mxu0
        %4061 = vdwg.mxu0
        %v4062 = vadd.f32 %v3515, %v4024
        %v4063 = vadd.f32 %v3516, %v4029
        %v4064 = vadd.f32 %v3517, %v4034
        %v4065 = vadd.f32 %v3518, %v4039
        %v4066 = vadd.f32 %v3519, %v4044
        %v4067 = vadd.f32 %v3520, %v4049
        %v4068 = vadd.f32 %v3521, %v4054
        %v4069 = vadd.f32 %v3522, %v4059
        %4070 = vrot.lane.b32.xlu0 %v569, 80
        %v4071 = vpop.permute.xlu0 %4070
        %4072 = vrot.lane.b32.xlu0 %v570, 80
        %v4073 = vpop.permute.xlu0 %4072
        %4074 = vrot.lane.b32.xlu0 %v571, 80
        %v4075 = vpop.permute.xlu0 %4074
        %4076 = vrot.lane.b32.xlu0 %v572, 80
        %v4077 = vpop.permute.xlu0 %4076
        %4078 = vrot.lane.b32.xlu0 %v573, 80
        %v4079 = vpop.permute.xlu0 %4078
        %4080 = vrot.lane.b32.xlu0 %v574, 80
        %v4081 = vpop.permute.xlu0 %4080
        %4082 = vrot.lane.b32.xlu0 %v575, 80
        %v4083 = vpop.permute.xlu0 %4082
        %4084 = vrot.lane.b32.xlu0 %v576, 80
        %v4085 = vpop.permute.xlu0 %4084
        %4086 = vrot.lane.b32.xlu0 %v676, 80
        %v4087 = vpop.permute.xlu0 %4086
        %4088 = vrot.lane.b32.xlu0 %v681, 80
        %v4089 = vpop.permute.xlu0 %4088
        %4090 = vrot.lane.b32.xlu0 %v686, 80
        %v4091 = vpop.permute.xlu0 %4090
        %4092 = vrot.lane.b32.xlu0 %v691, 80
        %v4093 = vpop.permute.xlu0 %4092
        %4094 = vrot.lane.b32.xlu0 %v696, 80
        %v4095 = vpop.permute.xlu0 %4094
        %4096 = vrot.lane.b32.xlu0 %v701, 80
        %v4097 = vpop.permute.xlu0 %4096
        %4098 = vrot.lane.b32.xlu0 %v706, 80
        %v4099 = vpop.permute.xlu0 %4098
        %4100 = vrot.lane.b32.xlu0 %v711, 80
        %v4101 = vpop.permute.xlu0 %4100
        %v4102 = vsel %vm835, %v4071, 0
        %v4104 = vsel %vm835, %v4073, 0
        %v4106 = vsel %vm835, %v4075, 0
        %v4108 = vsel %vm835, %v4077, 0
        %v4110 = vsel %vm835, %v4079, 0
        %v4112 = vsel %vm835, %v4081, 0
        %v4114 = vsel %vm835, %v4083, 0
        %v4116 = vsel %vm835, %v4085, 0
        %v4118 = vsel %vm835, %v4087, 0
        %v4120 = vsel %vm835, %v4089, 0
        %v4122 = vsel %vm835, %v4091, 0
        %v4124 = vsel %vm835, %v4093, 0
        %v4126 = vsel %vm835, %v4095, 0
        %v4128 = vsel %vm835, %v4097, 0
        %v4130 = vsel %vm835, %v4099, 0
        %v4132 = vsel %vm835, %v4101, 0
        %4134 = vmatprep.subr.mxu0 0.0
        %4135 = vmatpush1.xpose.msra.mxu0 0.0
        %4136 = vmatprep.subr.mxu0 0.0
        %4137 = vmatpush1.xpose.msra.mxu0 0.0
        %4138 = vmatprep.subr.mxu0 0.0
        %4139 = vmatpush1.xpose.msra.mxu0 0.0
        %4140 = vmatprep.subr.mxu0 0.0
        %4141 = vmatpush1.xpose.msra.mxu0 0.0
        %4142 = vmatprep.subr.mxu0 0.0
        %4143 = vmatpush1.xpose.msra.mxu0 0.0
        %4144 = vmatprep.subr.mxu0 0.0
        %4145 = vmatpush1.xpose.msra.mxu0 0.0
        %4146 = vmatprep.subr.mxu0 0.0
        %4147 = vmatpush1.xpose.msra.mxu0 0.0
        %4148 = vmatprep.subr.mxu0 0.0
        %4149 = vmatpush1.xpose.msra.mxu0 0.0
        %4150 = vmatprep.subr.mxu0 0.0
        %4151 = vmatpush1.xpose.msra.mxu0 %v4132
        %4152 = vmatprep.subr.mxu0 0.0
        %4153 = vmatpush1.xpose.msra.mxu0 %v4130
        %4154 = vmatprep.subr.mxu0 0.0
        %4155 = vmatpush1.xpose.msra.mxu0 %v4128
        %4156 = vmatprep.subr.mxu0 0.0
        %4157 = vmatpush1.xpose.msra.mxu0 %v4126
        %4158 = vmatprep.subr.mxu0 0.0
        %4159 = vmatpush1.xpose.msra.mxu0 %v4124
        %4160 = vmatprep.subr.mxu0 0.0
        %4161 = vmatpush1.xpose.msra.mxu0 %v4122
        %4162 = vmatprep.subr.mxu0 0.0
        %4163 = vmatpush1.xpose.msra.mxu0 %v4120
        %4164 = vmatprep.subr.mxu0 0.0
        %4165 = vmatpush1.xpose.msra.mxu0 %v4118
        %4166 = vmatprep.subr.mxu0 0.0
        %4167 = vmatpush2.xpose.msra.mxu0 0.0
        %4168 = vmatprep.subr.mxu0 0.0
        %4169 = vmatpush2.xpose.msra.mxu0 0.0
        %4170 = vmatprep.subr.mxu0 0.0
        %4171 = vmatpush2.xpose.msra.mxu0 0.0
        %4172 = vmatprep.subr.mxu0 0.0
        %4173 = vmatpush2.xpose.msra.mxu0 0.0
        %4174 = vmatprep.subr.mxu0 0.0
        %4175 = vmatpush2.xpose.msra.mxu0 0.0
        %4176 = vmatprep.subr.mxu0 0.0
        %4177 = vmatpush2.xpose.msra.mxu0 0.0
        %4178 = vmatprep.subr.mxu0 0.0
        %4179 = vmatpush2.xpose.msra.mxu0 0.0
        %4180 = vmatprep.subr.mxu0 0.0
        %4181 = vmatpush2.xpose.msra.mxu0 0.0
        %4182 = vmatprep.subr.mxu0 0.0
        %4183 = vmatpush2.xpose.msra.mxu0 0.0
        %4184 = vmatprep.subr.mxu0 0.0
        %4185 = vmatpush2.xpose.msra.mxu0 0.0
        %4186 = vmatprep.subr.mxu0 0.0
        %4187 = vmatpush2.xpose.msra.mxu0 0.0
        %4188 = vmatprep.subr.mxu0 0.0
        %4189 = vmatpush2.xpose.msra.mxu0 0.0
        %4190 = vmatprep.subr.mxu0 0.0
        %4191 = vmatpush2.xpose.msra.mxu0 0.0
        %4192 = vmatprep.subr.mxu0 0.0
        %4193 = vmatpush2.xpose.msra.mxu0 0.0
        %4194 = vmatprep.subr.mxu0 0.0
        %4195 = vmatpush2.xpose.msra.mxu0 0.0
        %4196 = vmatprep.subr.mxu0 0.0
        %4197 = vmatpush2.xpose.msra.mxu0 0.0
        %4198 = vmatprep.mubr.f32.mxu0 0.0
        %4199 = vmatmul.mubr.f32.gmra.mxu0 %v4102
        %v4200 = vpop.f32.mrf.mxu0
        %v4201 = vadd.f32 0.0, %v4200
        %v4202 = vpop.f32.mrf.mxu0
        %4203 = vmatprep.mubr.f32.mxu0 0.0
        %4204 = vmatmul.mubr.f32.gmra.mxu0 %v4104
        %v4205 = vpop.f32.mrf.mxu0
        %v4206 = vadd.f32 0.0, %v4205
        %v4207 = vpop.f32.mrf.mxu0
        %4208 = vmatprep.mubr.f32.mxu0 0.0
        %4209 = vmatmul.mubr.f32.gmra.mxu0 %v4106
        %v4210 = vpop.f32.mrf.mxu0
        %v4211 = vadd.f32 0.0, %v4210
        %v4212 = vpop.f32.mrf.mxu0
        %4213 = vmatprep.mubr.f32.mxu0 0.0
        %4214 = vmatmul.mubr.f32.gmra.mxu0 %v4108
        %v4215 = vpop.f32.mrf.mxu0
        %v4216 = vadd.f32 0.0, %v4215
        %v4217 = vpop.f32.mrf.mxu0
        %4218 = vmatprep.mubr.f32.mxu0 0.0
        %4219 = vmatmul.mubr.f32.gmra.mxu0 %v4110
        %v4220 = vpop.f32.mrf.mxu0
        %v4221 = vadd.f32 0.0, %v4220
        %v4222 = vpop.f32.mrf.mxu0
        %4223 = vmatprep.mubr.f32.mxu0 0.0
        %4224 = vmatmul.mubr.f32.gmra.mxu0 %v4112
        %v4225 = vpop.f32.mrf.mxu0
        %v4226 = vadd.f32 0.0, %v4225
        %v4227 = vpop.f32.mrf.mxu0
        %4228 = vmatprep.mubr.f32.mxu0 0.0
        %4229 = vmatmul.mubr.f32.gmra.mxu0 %v4114
        %v4230 = vpop.f32.mrf.mxu0
        %v4231 = vadd.f32 0.0, %v4230
        %v4232 = vpop.f32.mrf.mxu0
        %4233 = vmatprep.mubr.f32.mxu0 0.0
        %4234 = vmatmul.mubr.f32.gmra.mxu0 %v4116
        %v4235 = vpop.f32.mrf.mxu0
        %v4236 = vadd.f32 0.0, %v4235
        %v4237 = vpop.f32.mrf.mxu0
        %4238 = vdwg.mxu0
        %v4239 = vsel %vm439, %v4201, -inf
        %4240 = vmax.xlane.f32.xlu0 %v4239
        %v4241 = vpop.xlane.xlu0 %4240
        %v4242 = vsel %vm439, %v4206, -inf
        %4243 = vmax.xlane.f32.xlu0 %v4242
        %v4244 = vpop.xlane.xlu0 %4243
        %v4245 = vsel %vm439, %v4211, -inf
        %4246 = vmax.xlane.f32.xlu0 %v4245
        %v4247 = vpop.xlane.xlu0 %4246
        %v4248 = vsel %vm439, %v4216, -inf
        %4249 = vmax.xlane.f32.xlu0 %v4248
        %v4250 = vpop.xlane.xlu0 %4249
        %v4251 = vsel %vm439, %v4221, -inf
        %4252 = vmax.xlane.f32.xlu0 %v4251
        %v4253 = vpop.xlane.xlu0 %4252
        %v4254 = vsel %vm439, %v4226, -inf
        %4255 = vmax.xlane.f32.xlu0 %v4254
        %v4256 = vpop.xlane.xlu0 %4255
        %v4257 = vsel %vm439, %v4231, -inf
        %4258 = vmax.xlane.f32.xlu0 %v4257
        %v4259 = vpop.xlane.xlu0 %4258
        %v4260 = vsel %vm439, %v4236, -inf
        %4261 = vmax.xlane.f32.xlu0 %v4260
        %v4262 = vpop.xlane.xlu0 %4261
        %v4263 = vsub.f32 %v4201, %v4241
        %v4264 = vsub.f32 %v4206, %v4244
        %v4265 = vsub.f32 %v4211, %v4247
        %v4266 = vsub.f32 %v4216, %v4250
        %v4267 = vsub.f32 %v4221, %v4253
        %v4268 = vsub.f32 %v4226, %v4256
        %v4269 = vsub.f32 %v4231, %v4259
        %v4270 = vsub.f32 %v4236, %v4262
        %v4271 = vmul.f32 %v4263, 1.442695
        %v4272 = vpow.pop %v4271
        %v4273 = vmul.f32 %v4264, 1.442695
        %v4274 = vpow.pop %v4273
        %v4275 = vmul.f32 %v4265, 1.442695
        %v4276 = vpow.pop %v4275
        %v4277 = vmul.f32 %v4266, 1.442695
        %v4278 = vpow.pop %v4277
        %v4279 = vmul.f32 %v4267, 1.442695
        %v4280 = vpow.pop %v4279
        %v4281 = vmul.f32 %v4268, 1.442695
        %v4282 = vpow.pop %v4281
        %v4283 = vmul.f32 %v4269, 1.442695
        %v4284 = vpow.pop %v4283
        %v4285 = vmul.f32 %v4270, 1.442695
        %v4286 = vpow.pop %v4285
        %v4287 = vsel %vm439, %v4272, 0.0
        %4288 = vadd.xlane.f32.xlu0 %v4287
        %v4289 = vpop.xlane.xlu0 %4288
        %v4290 = vsel %vm439, %v4274, 0.0
        %4291 = vadd.xlane.f32.xlu0 %v4290
        %v4292 = vpop.xlane.xlu0 %4291
        %v4293 = vsel %vm439, %v4276, 0.0
        %4294 = vadd.xlane.f32.xlu0 %v4293
        %v4295 = vpop.xlane.xlu0 %4294
        %v4296 = vsel %vm439, %v4278, 0.0
        %4297 = vadd.xlane.f32.xlu0 %v4296
        %v4298 = vpop.xlane.xlu0 %4297
        %v4299 = vsel %vm439, %v4280, 0.0
        %4300 = vadd.xlane.f32.xlu0 %v4299
        %v4301 = vpop.xlane.xlu0 %4300
        %v4302 = vsel %vm439, %v4282, 0.0
        %4303 = vadd.xlane.f32.xlu0 %v4302
        %v4304 = vpop.xlane.xlu0 %4303
        %v4305 = vsel %vm439, %v4284, 0.0
        %4306 = vadd.xlane.f32.xlu0 %v4305
        %v4307 = vpop.xlane.xlu0 %4306
        %v4308 = vsel %vm439, %v4286, 0.0
        %4309 = vadd.xlane.f32.xlu0 %v4308
        %v4310 = vpop.xlane.xlu0 %4309
        %4311 = vrot.lane.b32.xlu0 %v789, 80
        %v4312 = vpop.permute.xlu0 %4311
        %4313 = vrot.lane.b32.xlu0 %v794, 80
        %v4314 = vpop.permute.xlu0 %4313
        %4315 = vrot.lane.b32.xlu0 %v799, 80
        %v4316 = vpop.permute.xlu0 %4315
        %4317 = vrot.lane.b32.xlu0 %v804, 80
        %v4318 = vpop.permute.xlu0 %4317
        %4319 = vrot.lane.b32.xlu0 %v809, 80
        %v4320 = vpop.permute.xlu0 %4319
        %4321 = vrot.lane.b32.xlu0 %v814, 80
        %v4322 = vpop.permute.xlu0 %4321
        %4323 = vrot.lane.b32.xlu0 %v819, 80
        %v4324 = vpop.permute.xlu0 %4323
        %4325 = vrot.lane.b32.xlu0 %v824, 80
        %v4326 = vpop.permute.xlu0 %4325
        %v4336 = vsel %vm439, %v4272, 0
        %v4339 = vsel %vm439, %v4274, 0
        %v4342 = vsel %vm439, %v4276, 0
        %v4345 = vsel %vm439, %v4278, 0
        %v4348 = vsel %vm439, %v4280, 0
        %v4351 = vsel %vm439, %v4282, 0
        %v4354 = vsel %vm439, %v4284, 0
        %v4357 = vsel %vm439, %v4286, 0
        %4359 = vmatprep.subr.mxu0 0.0
        %4360 = vmatpush1.msra.mxu0 0.0
        %4361 = vmatprep.subr.mxu0 0.0
        %4362 = vmatpush1.msra.mxu0 0.0
        %4363 = vmatprep.subr.mxu0 0.0
        %4364 = vmatpush1.msra.mxu0 0.0
        %4365 = vmatprep.subr.mxu0 0.0
        %4366 = vmatpush1.msra.mxu0 0.0
        %4367 = vmatprep.subr.mxu0 0.0
        %4368 = vmatpush1.msra.mxu0 0.0
        %4369 = vmatprep.subr.mxu0 0.0
        %4370 = vmatpush1.msra.mxu0 0.0
        %4371 = vmatprep.subr.mxu0 0.0
        %4372 = vmatpush1.msra.mxu0 0.0
        %4373 = vmatprep.subr.mxu0 0.0
        %4374 = vmatpush1.msra.mxu0 0.0
        %4375 = vmatprep.subr.mxu0 0.0
        %4376 = vmatpush1.msra.mxu0 %v4326
        %4377 = vmatprep.subr.mxu0 0.0
        %4378 = vmatpush1.msra.mxu0 %v4324
        %4379 = vmatprep.subr.mxu0 0.0
        %4380 = vmatpush1.msra.mxu0 %v4322
        %4381 = vmatprep.subr.mxu0 0.0
        %4382 = vmatpush1.msra.mxu0 %v4320
        %4383 = vmatprep.subr.mxu0 0.0
        %4384 = vmatpush1.msra.mxu0 %v4318
        %4385 = vmatprep.subr.mxu0 0.0
        %4386 = vmatpush1.msra.mxu0 %v4316
        %4387 = vmatprep.subr.mxu0 0.0
        %4388 = vmatpush1.msra.mxu0 %v4314
        %4389 = vmatprep.subr.mxu0 0.0
        %4390 = vmatpush1.msra.mxu0 %v4312
        %4391 = vmatprep.subr.mxu0 0.0
        %4392 = vmatpush2.msra.mxu0 0.0
        %4393 = vmatprep.subr.mxu0 0.0
        %4394 = vmatpush2.msra.mxu0 0.0
        %4395 = vmatprep.subr.mxu0 0.0
        %4396 = vmatpush2.msra.mxu0 0.0
        %4397 = vmatprep.subr.mxu0 0.0
        %4398 = vmatpush2.msra.mxu0 0.0
        %4399 = vmatprep.subr.mxu0 0.0
        %4400 = vmatpush2.msra.mxu0 0.0
        %4401 = vmatprep.subr.mxu0 0.0
        %4402 = vmatpush2.msra.mxu0 0.0
        %4403 = vmatprep.subr.mxu0 0.0
        %4404 = vmatpush2.msra.mxu0 0.0
        %4405 = vmatprep.subr.mxu0 0.0
        %4406 = vmatpush2.msra.mxu0 0.0
        %4407 = vmatprep.subr.mxu0 0.0
        %4408 = vmatpush2.msra.mxu0 0.0
        %4409 = vmatprep.subr.mxu0 0.0
        %4410 = vmatpush2.msra.mxu0 0.0
        %4411 = vmatprep.subr.mxu0 0.0
        %4412 = vmatpush2.msra.mxu0 0.0
        %4413 = vmatprep.subr.mxu0 0.0
        %4414 = vmatpush2.msra.mxu0 0.0
        %4415 = vmatprep.subr.mxu0 0.0
        %4416 = vmatpush2.msra.mxu0 0.0
        %4417 = vmatprep.subr.mxu0 0.0
        %4418 = vmatpush2.msra.mxu0 0.0
        %4419 = vmatprep.subr.mxu0 0.0
        %4420 = vmatpush2.msra.mxu0 0.0
        %4421 = vmatprep.subr.mxu0 0.0
        %4422 = vmatpush2.msra.mxu0 0.0
        %4423 = vmatprep.mubr.f32.mxu0 0.0
        %4424 = vmatmul.mubr.f32.gmra.mxu0 %v4336
        %v4425 = vpop.f32.mrf.mxu0
        %v4426 = vadd.f32 0.0, %v4425
        %v4427 = vpop.f32.mrf.mxu0
        %4428 = vmatprep.mubr.f32.mxu0 0.0
        %4429 = vmatmul.mubr.f32.gmra.mxu0 %v4339
        %v4430 = vpop.f32.mrf.mxu0
        %v4431 = vadd.f32 0.0, %v4430
        %v4432 = vpop.f32.mrf.mxu0
        %4433 = vmatprep.mubr.f32.mxu0 0.0
        %4434 = vmatmul.mubr.f32.gmra.mxu0 %v4342
        %v4435 = vpop.f32.mrf.mxu0
        %v4436 = vadd.f32 0.0, %v4435
        %v4437 = vpop.f32.mrf.mxu0
        %4438 = vmatprep.mubr.f32.mxu0 0.0
        %4439 = vmatmul.mubr.f32.gmra.mxu0 %v4345
        %v4440 = vpop.f32.mrf.mxu0
        %v4441 = vadd.f32 0.0, %v4440
        %v4442 = vpop.f32.mrf.mxu0
        %4443 = vmatprep.mubr.f32.mxu0 0.0
        %4444 = vmatmul.mubr.f32.gmra.mxu0 %v4348
        %v4445 = vpop.f32.mrf.mxu0
        %v4446 = vadd.f32 0.0, %v4445
        %v4447 = vpop.f32.mrf.mxu0
        %4448 = vmatprep.mubr.f32.mxu0 0.0
        %4449 = vmatmul.mubr.f32.gmra.mxu0 %v4351
        %v4450 = vpop.f32.mrf.mxu0
        %v4451 = vadd.f32 0.0, %v4450
        %v4452 = vpop.f32.mrf.mxu0
        %4453 = vmatprep.mubr.f32.mxu0 0.0
        %4454 = vmatmul.mubr.f32.gmra.mxu0 %v4354
        %v4455 = vpop.f32.mrf.mxu0
        %v4456 = vadd.f32 0.0, %v4455
        %v4457 = vpop.f32.mrf.mxu0
        %4458 = vmatprep.mubr.f32.mxu0 0.0
        %4459 = vmatmul.mubr.f32.gmra.mxu0 %v4357
        %v4460 = vpop.f32.mrf.mxu0
        %v4461 = vadd.f32 0.0, %v4460
        %v4462 = vpop.f32.mrf.mxu0
        %4463 = vdwg.mxu0
        %v4464 = vrcp.pop %v4289
        %v4465 = vrcp.pop %v4292
        %v4466 = vrcp.pop %v4295
        %v4467 = vrcp.pop %v4298
        %v4468 = vrcp.pop %v4301
        %v4469 = vrcp.pop %v4304
        %v4470 = vrcp.pop %v4307
        %v4471 = vrcp.pop %v4310
        %v4472 = vmul.f32 %v4426, %v4464
        %v4473 = vmul.f32 %v4431, %v4465
        %v4474 = vmul.f32 %v4436, %v4466
        %v4475 = vmul.f32 %v4441, %v4467
        %v4476 = vmul.f32 %v4446, %v4468
        %v4477 = vmul.f32 %v4451, %v4469
        %v4478 = vmul.f32 %v4456, %v4470
        %v4479 = vmul.f32 %v4461, %v4471
        %v4481 = vsel %vm835, %v4472, 0
        %v4484 = vsel %vm835, %v4473, 0
        %v4487 = vsel %vm835, %v4474, 0
        %v4490 = vsel %vm835, %v4475, 0
        %v4493 = vsel %vm835, %v4476, 0
        %v4496 = vsel %vm835, %v4477, 0
        %v4499 = vsel %vm835, %v4478, 0
        %v4502 = vsel %vm835, %v4479, 0
        %4504 = vmatprep.subr.mxu0 0.0
        %4505 = vmatpush1.msra.mxu0 0.0
        %4506 = vmatprep.subr.mxu0 0.0
        %4507 = vmatpush1.msra.mxu0 0.0
        %4508 = vmatprep.subr.mxu0 0.0
        %4509 = vmatpush1.msra.mxu0 0.0
        %4510 = vmatprep.subr.mxu0 0.0
        %4511 = vmatpush1.msra.mxu0 0.0
        %4512 = vmatprep.subr.mxu0 0.0
        %4513 = vmatpush1.msra.mxu0 0.0
        %4514 = vmatprep.subr.mxu0 0.0
        %4515 = vmatpush1.msra.mxu0 0.0
        %4516 = vmatprep.subr.mxu0 0.0
        %4517 = vmatpush1.msra.mxu0 0.0
        %4518 = vmatprep.subr.mxu0 0.0
        %4519 = vmatpush1.msra.mxu0 0.0
        %4520 = vmatprep.subr.mxu0 0.0
        %4521 = vmatpush1.msra.mxu0 0.0
        %4522 = vmatprep.subr.mxu0 0.0
        %4523 = vmatpush1.msra.mxu0 0.0
        %4524 = vmatprep.subr.mxu0 0.0
        %4525 = vmatpush1.msra.mxu0 0.0
        %4526 = vmatprep.subr.mxu0 0.0
        %4527 = vmatpush1.msra.mxu0 0.0
        %4528 = vmatprep.subr.mxu0 0.0
        %4529 = vmatpush1.msra.mxu0 0.0
        %4530 = vmatprep.subr.mxu0 0.0
        %4531 = vmatpush1.msra.mxu0 0.0
        %4532 = vmatprep.subr.mxu0 0.0
        %4533 = vmatpush1.msra.mxu0 0.0
        %4534 = vmatprep.subr.mxu0 0.0
        %4535 = vmatpush1.msra.mxu0 %v833
        %4536 = vmatprep.subr.mxu0 0.0
        %4537 = vmatpush2.msra.mxu0 0.0
        %4538 = vmatprep.subr.mxu0 0.0
        %4539 = vmatpush2.msra.mxu0 0.0
        %4540 = vmatprep.subr.mxu0 0.0
        %4541 = vmatpush2.msra.mxu0 0.0
        %4542 = vmatprep.subr.mxu0 0.0
        %4543 = vmatpush2.msra.mxu0 0.0
        %4544 = vmatprep.subr.mxu0 0.0
        %4545 = vmatpush2.msra.mxu0 0.0
        %4546 = vmatprep.subr.mxu0 0.0
        %4547 = vmatpush2.msra.mxu0 0.0
        %4548 = vmatprep.subr.mxu0 0.0
        %4549 = vmatpush2.msra.mxu0 0.0
        %4550 = vmatprep.subr.mxu0 0.0
        %4551 = vmatpush2.msra.mxu0 0.0
        %4552 = vmatprep.subr.mxu0 0.0
        %4553 = vmatpush2.msra.mxu0 0.0
        %4554 = vmatprep.subr.mxu0 0.0
        %4555 = vmatpush2.msra.mxu0 0.0
        %4556 = vmatprep.subr.mxu0 0.0
        %4557 = vmatpush2.msra.mxu0 0.0
        %4558 = vmatprep.subr.mxu0 0.0
        %4559 = vmatpush2.msra.mxu0 0.0
        %4560 = vmatprep.subr.mxu0 0.0
        %4561 = vmatpush2.msra.mxu0 0.0
        %4562 = vmatprep.subr.mxu0 0.0
        %4563 = vmatpush2.msra.mxu0 0.0
        %4564 = vmatprep.subr.mxu0 0.0
        %4565 = vmatpush2.msra.mxu0 0.0
        %4566 = vmatprep.subr.mxu0 0.0
        %4567 = vmatpush2.msra.mxu0 0.0
        %4568 = vmatprep.mubr.f32.mxu0 0.0
        %4569 = vmatmul.mubr.f32.gmra.mxu0 %v4481
        %v4570 = vpop.f32.mrf.mxu0
        %v4571 = vadd.f32 0.0, %v4570
        %v4572 = vpop.f32.mrf.mxu0
        %4573 = vmatprep.mubr.f32.mxu0 0.0
        %4574 = vmatmul.mubr.f32.gmra.mxu0 %v4484
        %v4575 = vpop.f32.mrf.mxu0
        %v4576 = vadd.f32 0.0, %v4575
        %v4577 = vpop.f32.mrf.mxu0
        %4578 = vmatprep.mubr.f32.mxu0 0.0
        %4579 = vmatmul.mubr.f32.gmra.mxu0 %v4487
        %v4580 = vpop.f32.mrf.mxu0
        %v4581 = vadd.f32 0.0, %v4580
        %v4582 = vpop.f32.mrf.mxu0
        %4583 = vmatprep.mubr.f32.mxu0 0.0
        %4584 = vmatmul.mubr.f32.gmra.mxu0 %v4490
        %v4585 = vpop.f32.mrf.mxu0
        %v4586 = vadd.f32 0.0, %v4585
        %v4587 = vpop.f32.mrf.mxu0
        %4588 = vmatprep.mubr.f32.mxu0 0.0
        %4589 = vmatmul.mubr.f32.gmra.mxu0 %v4493
        %v4590 = vpop.f32.mrf.mxu0
        %v4591 = vadd.f32 0.0, %v4590
        %v4592 = vpop.f32.mrf.mxu0
        %4593 = vmatprep.mubr.f32.mxu0 0.0
        %4594 = vmatmul.mubr.f32.gmra.mxu0 %v4496
        %v4595 = vpop.f32.mrf.mxu0
        %v4596 = vadd.f32 0.0, %v4595
        %v4597 = vpop.f32.mrf.mxu0
        %4598 = vmatprep.mubr.f32.mxu0 0.0
        %4599 = vmatmul.mubr.f32.gmra.mxu0 %v4499
        %v4600 = vpop.f32.mrf.mxu0
        %v4601 = vadd.f32 0.0, %v4600
        %v4602 = vpop.f32.mrf.mxu0
        %4603 = vmatprep.mubr.f32.mxu0 0.0
        %4604 = vmatmul.mubr.f32.gmra.mxu0 %v4502
        %v4605 = vpop.f32.mrf.mxu0
        %v4606 = vadd.f32 0.0, %v4605
        %v4607 = vpop.f32.mrf.mxu0
        %4608 = vdwg.mxu0
        %v4609 = vadd.f32 %v4062, %v4571
        %v4610 = vadd.f32 %v4063, %v4576
        %v4611 = vadd.f32 %v4064, %v4581
        %v4612 = vadd.f32 %v4065, %v4586
        %v4613 = vadd.f32 %v4066, %v4591
        %v4614 = vadd.f32 %v4067, %v4596
        %v4615 = vadd.f32 %v4068, %v4601
        %v4616 = vadd.f32 %v4069, %v4606
        %4617 = vrot.lane.b32.xlu0 %v569, 72
        %v4618 = vpop.permute.xlu0 %4617
        %4619 = vrot.lane.b32.xlu0 %v570, 72
        %v4620 = vpop.permute.xlu0 %4619
        %4621 = vrot.lane.b32.xlu0 %v571, 72
        %v4622 = vpop.permute.xlu0 %4621
        %4623 = vrot.lane.b32.xlu0 %v572, 72
        %v4624 = vpop.permute.xlu0 %4623
        %4625 = vrot.lane.b32.xlu0 %v573, 72
        %v4626 = vpop.permute.xlu0 %4625
        %4627 = vrot.lane.b32.xlu0 %v574, 72
        %v4628 = vpop.permute.xlu0 %4627
        %4629 = vrot.lane.b32.xlu0 %v575, 72
        %v4630 = vpop.permute.xlu0 %4629
        %4631 = vrot.lane.b32.xlu0 %v576, 72
        %v4632 = vpop.permute.xlu0 %4631
        %4633 = vrot.lane.b32.xlu0 %v676, 72
        %v4634 = vpop.permute.xlu0 %4633
        %4635 = vrot.lane.b32.xlu0 %v681, 72
        %v4636 = vpop.permute.xlu0 %4635
        %4637 = vrot.lane.b32.xlu0 %v686, 72
        %v4638 = vpop.permute.xlu0 %4637
        %4639 = vrot.lane.b32.xlu0 %v691, 72
        %v4640 = vpop.permute.xlu0 %4639
        %4641 = vrot.lane.b32.xlu0 %v696, 72
        %v4642 = vpop.permute.xlu0 %4641
        %4643 = vrot.lane.b32.xlu0 %v701, 72
        %v4644 = vpop.permute.xlu0 %4643
        %4645 = vrot.lane.b32.xlu0 %v706, 72
        %v4646 = vpop.permute.xlu0 %4645
        %4647 = vrot.lane.b32.xlu0 %v711, 72
        %v4648 = vpop.permute.xlu0 %4647
        %v4649 = vsel %vm835, %v4618, 0
        %v4651 = vsel %vm835, %v4620, 0
        %v4653 = vsel %vm835, %v4622, 0
        %v4655 = vsel %vm835, %v4624, 0
        %v4657 = vsel %vm835, %v4626, 0
        %v4659 = vsel %vm835, %v4628, 0
        %v4661 = vsel %vm835, %v4630, 0
        %v4663 = vsel %vm835, %v4632, 0
        %v4665 = vsel %vm835, %v4634, 0
        %v4667 = vsel %vm835, %v4636, 0
        %v4669 = vsel %vm835, %v4638, 0
        %v4671 = vsel %vm835, %v4640, 0
        %v4673 = vsel %vm835, %v4642, 0
        %v4675 = vsel %vm835, %v4644, 0
        %v4677 = vsel %vm835, %v4646, 0
        %v4679 = vsel %vm835, %v4648, 0
        %4681 = vmatprep.subr.mxu0 0.0
        %4682 = vmatpush1.xpose.msra.mxu0 0.0
        %4683 = vmatprep.subr.mxu0 0.0
        %4684 = vmatpush1.xpose.msra.mxu0 0.0
        %4685 = vmatprep.subr.mxu0 0.0
        %4686 = vmatpush1.xpose.msra.mxu0 0.0
        %4687 = vmatprep.subr.mxu0 0.0
        %4688 = vmatpush1.xpose.msra.mxu0 0.0
        %4689 = vmatprep.subr.mxu0 0.0
        %4690 = vmatpush1.xpose.msra.mxu0 0.0
        %4691 = vmatprep.subr.mxu0 0.0
        %4692 = vmatpush1.xpose.msra.mxu0 0.0
        %4693 = vmatprep.subr.mxu0 0.0
        %4694 = vmatpush1.xpose.msra.mxu0 0.0
        %4695 = vmatprep.subr.mxu0 0.0
        %4696 = vmatpush1.xpose.msra.mxu0 0.0
        %4697 = vmatprep.subr.mxu0 0.0
        %4698 = vmatpush1.xpose.msra.mxu0 %v4679
        %4699 = vmatprep.subr.mxu0 0.0
        %4700 = vmatpush1.xpose.msra.mxu0 %v4677
        %4701 = vmatprep.subr.mxu0 0.0
        %4702 = vmatpush1.xpose.msra.mxu0 %v4675
        %4703 = vmatprep.subr.mxu0 0.0
        %4704 = vmatpush1.xpose.msra.mxu0 %v4673
        %4705 = vmatprep.subr.mxu0 0.0
        %4706 = vmatpush1.xpose.msra.mxu0 %v4671
        %4707 = vmatprep.subr.mxu0 0.0
        %4708 = vmatpush1.xpose.msra.mxu0 %v4669
        %4709 = vmatprep.subr.mxu0 0.0
        %4710 = vmatpush1.xpose.msra.mxu0 %v4667
        %4711 = vmatprep.subr.mxu0 0.0
        %4712 = vmatpush1.xpose.msra.mxu0 %v4665
        %4713 = vmatprep.subr.mxu0 0.0
        %4714 = vmatpush2.xpose.msra.mxu0 0.0
        %4715 = vmatprep.subr.mxu0 0.0
        %4716 = vmatpush2.xpose.msra.mxu0 0.0
        %4717 = vmatprep.subr.mxu0 0.0
        %4718 = vmatpush2.xpose.msra.mxu0 0.0
        %4719 = vmatprep.subr.mxu0 0.0
        %4720 = vmatpush2.xpose.msra.mxu0 0.0
        %4721 = vmatprep.subr.mxu0 0.0
        %4722 = vmatpush2.xpose.msra.mxu0 0.0
        %4723 = vmatprep.subr.mxu0 0.0
        %4724 = vmatpush2.xpose.msra.mxu0 0.0
        %4725 = vmatprep.subr.mxu0 0.0
        %4726 = vmatpush2.xpose.msra.mxu0 0.0
        %4727 = vmatprep.subr.mxu0 0.0
        %4728 = vmatpush2.xpose.msra.mxu0 0.0
        %4729 = vmatprep.subr.mxu0 0.0
        %4730 = vmatpush2.xpose.msra.mxu0 0.0
        %4731 = vmatprep.subr.mxu0 0.0
        %4732 = vmatpush2.xpose.msra.mxu0 0.0
        %4733 = vmatprep.subr.mxu0 0.0
        %4734 = vmatpush2.xpose.msra.mxu0 0.0
        %4735 = vmatprep.subr.mxu0 0.0
        %4736 = vmatpush2.xpose.msra.mxu0 0.0
        %4737 = vmatprep.subr.mxu0 0.0
        %4738 = vmatpush2.xpose.msra.mxu0 0.0
        %4739 = vmatprep.subr.mxu0 0.0
        %4740 = vmatpush2.xpose.msra.mxu0 0.0
        %4741 = vmatprep.subr.mxu0 0.0
        %4742 = vmatpush2.xpose.msra.mxu0 0.0
        %4743 = vmatprep.subr.mxu0 0.0
        %4744 = vmatpush2.xpose.msra.mxu0 0.0
        %4745 = vmatprep.mubr.f32.mxu0 0.0
        %4746 = vmatmul.mubr.f32.gmra.mxu0 %v4649
        %v4747 = vpop.f32.mrf.mxu0
        %v4748 = vadd.f32 0.0, %v4747
        %v4749 = vpop.f32.mrf.mxu0
        %4750 = vmatprep.mubr.f32.mxu0 0.0
        %4751 = vmatmul.mubr.f32.gmra.mxu0 %v4651
        %v4752 = vpop.f32.mrf.mxu0
        %v4753 = vadd.f32 0.0, %v4752
        %v4754 = vpop.f32.mrf.mxu0
        %4755 = vmatprep.mubr.f32.mxu0 0.0
        %4756 = vmatmul.mubr.f32.gmra.mxu0 %v4653
        %v4757 = vpop.f32.mrf.mxu0
        %v4758 = vadd.f32 0.0, %v4757
        %v4759 = vpop.f32.mrf.mxu0
        %4760 = vmatprep.mubr.f32.mxu0 0.0
        %4761 = vmatmul.mubr.f32.gmra.mxu0 %v4655
        %v4762 = vpop.f32.mrf.mxu0
        %v4763 = vadd.f32 0.0, %v4762
        %v4764 = vpop.f32.mrf.mxu0
        %4765 = vmatprep.mubr.f32.mxu0 0.0
        %4766 = vmatmul.mubr.f32.gmra.mxu0 %v4657
        %v4767 = vpop.f32.mrf.mxu0
        %v4768 = vadd.f32 0.0, %v4767
        %v4769 = vpop.f32.mrf.mxu0
        %4770 = vmatprep.mubr.f32.mxu0 0.0
        %4771 = vmatmul.mubr.f32.gmra.mxu0 %v4659
        %v4772 = vpop.f32.mrf.mxu0
        %v4773 = vadd.f32 0.0, %v4772
        %v4774 = vpop.f32.mrf.mxu0
        %4775 = vmatprep.mubr.f32.mxu0 0.0
        %4776 = vmatmul.mubr.f32.gmra.mxu0 %v4661
        %v4777 = vpop.f32.mrf.mxu0
        %v4778 = vadd.f32 0.0, %v4777
        %v4779 = vpop.f32.mrf.mxu0
        %4780 = vmatprep.mubr.f32.mxu0 0.0
        %4781 = vmatmul.mubr.f32.gmra.mxu0 %v4663
        %v4782 = vpop.f32.mrf.mxu0
        %v4783 = vadd.f32 0.0, %v4782
        %v4784 = vpop.f32.mrf.mxu0
        %4785 = vdwg.mxu0
        %v4786 = vsel %vm439, %v4748, -inf
        %4787 = vmax.xlane.f32.xlu0 %v4786
        %v4788 = vpop.xlane.xlu0 %4787
        %v4789 = vsel %vm439, %v4753, -inf
        %4790 = vmax.xlane.f32.xlu0 %v4789
        %v4791 = vpop.xlane.xlu0 %4790
        %v4792 = vsel %vm439, %v4758, -inf
        %4793 = vmax.xlane.f32.xlu0 %v4792
        %v4794 = vpop.xlane.xlu0 %4793
        %v4795 = vsel %vm439, %v4763, -inf
        %4796 = vmax.xlane.f32.xlu0 %v4795
        %v4797 = vpop.xlane.xlu0 %4796
        %v4798 = vsel %vm439, %v4768, -inf
        %4799 = vmax.xlane.f32.xlu0 %v4798
        %v4800 = vpop.xlane.xlu0 %4799
        %v4801 = vsel %vm439, %v4773, -inf
        %4802 = vmax.xlane.f32.xlu0 %v4801
        %v4803 = vpop.xlane.xlu0 %4802
        %v4804 = vsel %vm439, %v4778, -inf
        %4805 = vmax.xlane.f32.xlu0 %v4804
        %v4806 = vpop.xlane.xlu0 %4805
        %v4807 = vsel %vm439, %v4783, -inf
        %4808 = vmax.xlane.f32.xlu0 %v4807
        %v4809 = vpop.xlane.xlu0 %4808
        %v4810 = vsub.f32 %v4748, %v4788
        %v4811 = vsub.f32 %v4753, %v4791
        %v4812 = vsub.f32 %v4758, %v4794
        %v4813 = vsub.f32 %v4763, %v4797
        %v4814 = vsub.f32 %v4768, %v4800
        %v4815 = vsub.f32 %v4773, %v4803
        %v4816 = vsub.f32 %v4778, %v4806
        %v4817 = vsub.f32 %v4783, %v4809
        %v4818 = vmul.f32 %v4810, 1.442695
        %v4819 = vpow.pop %v4818
        %v4820 = vmul.f32 %v4811, 1.442695
        %v4821 = vpow.pop %v4820
        %v4822 = vmul.f32 %v4812, 1.442695
        %v4823 = vpow.pop %v4822
        %v4824 = vmul.f32 %v4813, 1.442695
        %v4825 = vpow.pop %v4824
        %v4826 = vmul.f32 %v4814, 1.442695
        %v4827 = vpow.pop %v4826
        %v4828 = vmul.f32 %v4815, 1.442695
        %v4829 = vpow.pop %v4828
        %v4830 = vmul.f32 %v4816, 1.442695
        %v4831 = vpow.pop %v4830
        %v4832 = vmul.f32 %v4817, 1.442695
        %v4833 = vpow.pop %v4832
        %v4834 = vsel %vm439, %v4819, 0.0
        %4835 = vadd.xlane.f32.xlu0 %v4834
        %v4836 = vpop.xlane.xlu0 %4835
        %v4837 = vsel %vm439, %v4821, 0.0
        %4838 = vadd.xlane.f32.xlu0 %v4837
        %v4839 = vpop.xlane.xlu0 %4838
        %v4840 = vsel %vm439, %v4823, 0.0
        %4841 = vadd.xlane.f32.xlu0 %v4840
        %v4842 = vpop.xlane.xlu0 %4841
        %v4843 = vsel %vm439, %v4825, 0.0
        %4844 = vadd.xlane.f32.xlu0 %v4843
        %v4845 = vpop.xlane.xlu0 %4844
        %v4846 = vsel %vm439, %v4827, 0.0
        %4847 = vadd.xlane.f32.xlu0 %v4846
        %v4848 = vpop.xlane.xlu0 %4847
        %v4849 = vsel %vm439, %v4829, 0.0
        %4850 = vadd.xlane.f32.xlu0 %v4849
        %v4851 = vpop.xlane.xlu0 %4850
        %v4852 = vsel %vm439, %v4831, 0.0
        %4853 = vadd.xlane.f32.xlu0 %v4852
        %v4854 = vpop.xlane.xlu0 %4853
        %v4855 = vsel %vm439, %v4833, 0.0
        %4856 = vadd.xlane.f32.xlu0 %v4855
        %v4857 = vpop.xlane.xlu0 %4856
        %4858 = vrot.lane.b32.xlu0 %v789, 72
        %v4859 = vpop.permute.xlu0 %4858
        %4860 = vrot.lane.b32.xlu0 %v794, 72
        %v4861 = vpop.permute.xlu0 %4860
        %4862 = vrot.lane.b32.xlu0 %v799, 72
        %v4863 = vpop.permute.xlu0 %4862
        %4864 = vrot.lane.b32.xlu0 %v804, 72
        %v4865 = vpop.permute.xlu0 %4864
        %4866 = vrot.lane.b32.xlu0 %v809, 72
        %v4867 = vpop.permute.xlu0 %4866
        %4868 = vrot.lane.b32.xlu0 %v814, 72
        %v4869 = vpop.permute.xlu0 %4868
        %4870 = vrot.lane.b32.xlu0 %v819, 72
        %v4871 = vpop.permute.xlu0 %4870
        %4872 = vrot.lane.b32.xlu0 %v824, 72
        %v4873 = vpop.permute.xlu0 %4872
        %v4883 = vsel %vm439, %v4819, 0
        %v4886 = vsel %vm439, %v4821, 0
        %v4889 = vsel %vm439, %v4823, 0
        %v4892 = vsel %vm439, %v4825, 0
        %v4895 = vsel %vm439, %v4827, 0
        %v4898 = vsel %vm439, %v4829, 0
        %v4901 = vsel %vm439, %v4831, 0
        %v4904 = vsel %vm439, %v4833, 0
        %4906 = vmatprep.subr.mxu0 0.0
        %4907 = vmatpush1.msra.mxu0 0.0
        %4908 = vmatprep.subr.mxu0 0.0
        %4909 = vmatpush1.msra.mxu0 0.0
        %4910 = vmatprep.subr.mxu0 0.0
        %4911 = vmatpush1.msra.mxu0 0.0
        %4912 = vmatprep.subr.mxu0 0.0
        %4913 = vmatpush1.msra.mxu0 0.0
        %4914 = vmatprep.subr.mxu0 0.0
        %4915 = vmatpush1.msra.mxu0 0.0
        %4916 = vmatprep.subr.mxu0 0.0
        %4917 = vmatpush1.msra.mxu0 0.0
        %4918 = vmatprep.subr.mxu0 0.0
        %4919 = vmatpush1.msra.mxu0 0.0
        %4920 = vmatprep.subr.mxu0 0.0
        %4921 = vmatpush1.msra.mxu0 0.0
        %4922 = vmatprep.subr.mxu0 0.0
        %4923 = vmatpush1.msra.mxu0 %v4873
        %4924 = vmatprep.subr.mxu0 0.0
        %4925 = vmatpush1.msra.mxu0 %v4871
        %4926 = vmatprep.subr.mxu0 0.0
        %4927 = vmatpush1.msra.mxu0 %v4869
        %4928 = vmatprep.subr.mxu0 0.0
        %4929 = vmatpush1.msra.mxu0 %v4867
        %4930 = vmatprep.subr.mxu0 0.0
        %4931 = vmatpush1.msra.mxu0 %v4865
        %4932 = vmatprep.subr.mxu0 0.0
        %4933 = vmatpush1.msra.mxu0 %v4863
        %4934 = vmatprep.subr.mxu0 0.0
        %4935 = vmatpush1.msra.mxu0 %v4861
        %4936 = vmatprep.subr.mxu0 0.0
        %4937 = vmatpush1.msra.mxu0 %v4859
        %4938 = vmatprep.subr.mxu0 0.0
        %4939 = vmatpush2.msra.mxu0 0.0
        %4940 = vmatprep.subr.mxu0 0.0
        %4941 = vmatpush2.msra.mxu0 0.0
        %4942 = vmatprep.subr.mxu0 0.0
        %4943 = vmatpush2.msra.mxu0 0.0
        %4944 = vmatprep.subr.mxu0 0.0
        %4945 = vmatpush2.msra.mxu0 0.0
        %4946 = vmatprep.subr.mxu0 0.0
        %4947 = vmatpush2.msra.mxu0 0.0
        %4948 = vmatprep.subr.mxu0 0.0
        %4949 = vmatpush2.msra.mxu0 0.0
        %4950 = vmatprep.subr.mxu0 0.0
        %4951 = vmatpush2.msra.mxu0 0.0
        %4952 = vmatprep.subr.mxu0 0.0
        %4953 = vmatpush2.msra.mxu0 0.0
        %4954 = vmatprep.subr.mxu0 0.0
        %4955 = vmatpush2.msra.mxu0 0.0
        %4956 = vmatprep.subr.mxu0 0.0
        %4957 = vmatpush2.msra.mxu0 0.0
        %4958 = vmatprep.subr.mxu0 0.0
        %4959 = vmatpush2.msra.mxu0 0.0
        %4960 = vmatprep.subr.mxu0 0.0
        %4961 = vmatpush2.msra.mxu0 0.0
        %4962 = vmatprep.subr.mxu0 0.0
        %4963 = vmatpush2.msra.mxu0 0.0
        %4964 = vmatprep.subr.mxu0 0.0
        %4965 = vmatpush2.msra.mxu0 0.0
        %4966 = vmatprep.subr.mxu0 0.0
        %4967 = vmatpush2.msra.mxu0 0.0
        %4968 = vmatprep.subr.mxu0 0.0
        %4969 = vmatpush2.msra.mxu0 0.0
        %4970 = vmatprep.mubr.f32.mxu0 0.0
        %4971 = vmatmul.mubr.f32.gmra.mxu0 %v4883
        %v4972 = vpop.f32.mrf.mxu0
        %v4973 = vadd.f32 0.0, %v4972
        %v4974 = vpop.f32.mrf.mxu0
        %4975 = vmatprep.mubr.f32.mxu0 0.0
        %4976 = vmatmul.mubr.f32.gmra.mxu0 %v4886
        %v4977 = vpop.f32.mrf.mxu0
        %v4978 = vadd.f32 0.0, %v4977
        %v4979 = vpop.f32.mrf.mxu0
        %4980 = vmatprep.mubr.f32.mxu0 0.0
        %4981 = vmatmul.mubr.f32.gmra.mxu0 %v4889
        %v4982 = vpop.f32.mrf.mxu0
        %v4983 = vadd.f32 0.0, %v4982
        %v4984 = vpop.f32.mrf.mxu0
        %4985 = vmatprep.mubr.f32.mxu0 0.0
        %4986 = vmatmul.mubr.f32.gmra.mxu0 %v4892
        %v4987 = vpop.f32.mrf.mxu0
        %v4988 = vadd.f32 0.0, %v4987
        %v4989 = vpop.f32.mrf.mxu0
        %4990 = vmatprep.mubr.f32.mxu0 0.0
        %4991 = vmatmul.mubr.f32.gmra.mxu0 %v4895
        %v4992 = vpop.f32.mrf.mxu0
        %v4993 = vadd.f32 0.0, %v4992
        %v4994 = vpop.f32.mrf.mxu0
        %4995 = vmatprep.mubr.f32.mxu0 0.0
        %4996 = vmatmul.mubr.f32.gmra.mxu0 %v4898
        %v4997 = vpop.f32.mrf.mxu0
        %v4998 = vadd.f32 0.0, %v4997
        %v4999 = vpop.f32.mrf.mxu0
        %5000 = vmatprep.mubr.f32.mxu0 0.0
        %5001 = vmatmul.mubr.f32.gmra.mxu0 %v4901
        %v5002 = vpop.f32.mrf.mxu0
        %v5003 = vadd.f32 0.0, %v5002
        %v5004 = vpop.f32.mrf.mxu0
        %5005 = vmatprep.mubr.f32.mxu0 0.0
        %5006 = vmatmul.mubr.f32.gmra.mxu0 %v4904
        %v5007 = vpop.f32.mrf.mxu0
        %v5008 = vadd.f32 0.0, %v5007
        %v5009 = vpop.f32.mrf.mxu0
        %5010 = vdwg.mxu0
        %v5011 = vrcp.pop %v4836
        %v5012 = vrcp.pop %v4839
        %v5013 = vrcp.pop %v4842
        %v5014 = vrcp.pop %v4845
        %v5015 = vrcp.pop %v4848
        %v5016 = vrcp.pop %v4851
        %v5017 = vrcp.pop %v4854
        %v5018 = vrcp.pop %v4857
        %v5019 = vmul.f32 %v4973, %v5011
        %v5020 = vmul.f32 %v4978, %v5012
        %v5021 = vmul.f32 %v4983, %v5013
        %v5022 = vmul.f32 %v4988, %v5014
        %v5023 = vmul.f32 %v4993, %v5015
        %v5024 = vmul.f32 %v4998, %v5016
        %v5025 = vmul.f32 %v5003, %v5017
        %v5026 = vmul.f32 %v5008, %v5018
        %v5028 = vsel %vm835, %v5019, 0
        %v5031 = vsel %vm835, %v5020, 0
        %v5034 = vsel %vm835, %v5021, 0
        %v5037 = vsel %vm835, %v5022, 0
        %v5040 = vsel %vm835, %v5023, 0
        %v5043 = vsel %vm835, %v5024, 0
        %v5046 = vsel %vm835, %v5025, 0
        %v5049 = vsel %vm835, %v5026, 0
        %5051 = vmatprep.subr.mxu0 0.0
        %5052 = vmatpush1.msra.mxu0 0.0
        %5053 = vmatprep.subr.mxu0 0.0
        %5054 = vmatpush1.msra.mxu0 0.0
        %5055 = vmatprep.subr.mxu0 0.0
        %5056 = vmatpush1.msra.mxu0 0.0
        %5057 = vmatprep.subr.mxu0 0.0
        %5058 = vmatpush1.msra.mxu0 0.0
        %5059 = vmatprep.subr.mxu0 0.0
        %5060 = vmatpush1.msra.mxu0 0.0
        %5061 = vmatprep.subr.mxu0 0.0
        %5062 = vmatpush1.msra.mxu0 0.0
        %5063 = vmatprep.subr.mxu0 0.0
        %5064 = vmatpush1.msra.mxu0 0.0
        %5065 = vmatprep.subr.mxu0 0.0
        %5066 = vmatpush1.msra.mxu0 0.0
        %5067 = vmatprep.subr.mxu0 0.0
        %5068 = vmatpush1.msra.mxu0 0.0
        %5069 = vmatprep.subr.mxu0 0.0
        %5070 = vmatpush1.msra.mxu0 0.0
        %5071 = vmatprep.subr.mxu0 0.0
        %5072 = vmatpush1.msra.mxu0 0.0
        %5073 = vmatprep.subr.mxu0 0.0
        %5074 = vmatpush1.msra.mxu0 0.0
        %5075 = vmatprep.subr.mxu0 0.0
        %5076 = vmatpush1.msra.mxu0 0.0
        %5077 = vmatprep.subr.mxu0 0.0
        %5078 = vmatpush1.msra.mxu0 0.0
        %5079 = vmatprep.subr.mxu0 0.0
        %5080 = vmatpush1.msra.mxu0 0.0
        %5081 = vmatprep.subr.mxu0 0.0
        %5082 = vmatpush1.msra.mxu0 %v834
        %5083 = vmatprep.subr.mxu0 0.0
        %5084 = vmatpush2.msra.mxu0 0.0
        %5085 = vmatprep.subr.mxu0 0.0
        %5086 = vmatpush2.msra.mxu0 0.0
        %5087 = vmatprep.subr.mxu0 0.0
        %5088 = vmatpush2.msra.mxu0 0.0
        %5089 = vmatprep.subr.mxu0 0.0
        %5090 = vmatpush2.msra.mxu0 0.0
        %5091 = vmatprep.subr.mxu0 0.0
        %5092 = vmatpush2.msra.mxu0 0.0
        %5093 = vmatprep.subr.mxu0 0.0
        %5094 = vmatpush2.msra.mxu0 0.0
        %5095 = vmatprep.subr.mxu0 0.0
        %5096 = vmatpush2.msra.mxu0 0.0
        %5097 = vmatprep.subr.mxu0 0.0
        %5098 = vmatpush2.msra.mxu0 0.0
        %5099 = vmatprep.subr.mxu0 0.0
        %5100 = vmatpush2.msra.mxu0 0.0
        %5101 = vmatprep.subr.mxu0 0.0
        %5102 = vmatpush2.msra.mxu0 0.0
        %5103 = vmatprep.subr.mxu0 0.0
        %5104 = vmatpush2.msra.mxu0 0.0
        %5105 = vmatprep.subr.mxu0 0.0
        %5106 = vmatpush2.msra.mxu0 0.0
        %5107 = vmatprep.subr.mxu0 0.0
        %5108 = vmatpush2.msra.mxu0 0.0
        %5109 = vmatprep.subr.mxu0 0.0
        %5110 = vmatpush2.msra.mxu0 0.0
        %5111 = vmatprep.subr.mxu0 0.0
        %5112 = vmatpush2.msra.mxu0 0.0
        %5113 = vmatprep.subr.mxu0 0.0
        %5114 = vmatpush2.msra.mxu0 0.0
        %5115 = vmatprep.mubr.f32.mxu0 0.0
        %5116 = vmatmul.mubr.f32.gmra.mxu0 %v5028
        %v5117 = vpop.f32.mrf.mxu0
        %v5118 = vadd.f32 0.0, %v5117
        %v5119 = vpop.f32.mrf.mxu0
        %5120 = vmatprep.mubr.f32.mxu0 0.0
        %5121 = vmatmul.mubr.f32.gmra.mxu0 %v5031
        %v5122 = vpop.f32.mrf.mxu0
        %v5123 = vadd.f32 0.0, %v5122
        %v5124 = vpop.f32.mrf.mxu0
        %5125 = vmatprep.mubr.f32.mxu0 0.0
        %5126 = vmatmul.mubr.f32.gmra.mxu0 %v5034
        %v5127 = vpop.f32.mrf.mxu0
        %v5128 = vadd.f32 0.0, %v5127
        %v5129 = vpop.f32.mrf.mxu0
        %5130 = vmatprep.mubr.f32.mxu0 0.0
        %5131 = vmatmul.mubr.f32.gmra.mxu0 %v5037
        %v5132 = vpop.f32.mrf.mxu0
        %v5133 = vadd.f32 0.0, %v5132
        %v5134 = vpop.f32.mrf.mxu0
        %5135 = vmatprep.mubr.f32.mxu0 0.0
        %5136 = vmatmul.mubr.f32.gmra.mxu0 %v5040
        %v5137 = vpop.f32.mrf.mxu0
        %v5138 = vadd.f32 0.0, %v5137
        %v5139 = vpop.f32.mrf.mxu0
        %5140 = vmatprep.mubr.f32.mxu0 0.0
        %5141 = vmatmul.mubr.f32.gmra.mxu0 %v5043
        %v5142 = vpop.f32.mrf.mxu0
        %v5143 = vadd.f32 0.0, %v5142
        %v5144 = vpop.f32.mrf.mxu0
        %5145 = vmatprep.mubr.f32.mxu0 0.0
        %5146 = vmatmul.mubr.f32.gmra.mxu0 %v5046
        %v5147 = vpop.f32.mrf.mxu0
        %v5148 = vadd.f32 0.0, %v5147
        %v5149 = vpop.f32.mrf.mxu0
        %5150 = vmatprep.mubr.f32.mxu0 0.0
        %5151 = vmatmul.mubr.f32.gmra.mxu0 %v5049
        %v5152 = vpop.f32.mrf.mxu0
        %v5153 = vadd.f32 0.0, %v5152
        %v5154 = vpop.f32.mrf.mxu0
        %5155 = vdwg.mxu0
        %v5156 = vadd.f32 %v4609, %v5118
        %v5157 = vadd.f32 %v4610, %v5123
        %v5158 = vadd.f32 %v4611, %v5128
        %v5159 = vadd.f32 %v4612, %v5133
        %v5160 = vadd.f32 %v4613, %v5138
        %v5161 = vadd.f32 %v4614, %v5143
        %v5162 = vadd.f32 %v4615, %v5148
        %v5163 = vadd.f32 %v4616, %v5153
        %v5164 = vld [vmem:[%s6] sm:$0x1]
        %v5166 = vlaneseq
        %v5167 = vshrl.u32 %v5166, 7
        %v5168 = vsub.s32 0, %v5167
        %v5169 = vrot.slane %v5164, %v5168
        %v5171 = vadd.f32 %v5156, %v5169
        %v5172 = vadd.f32 %v5157, %v5169
        %v5173 = vadd.f32 %v5158, %v5169
        %v5174 = vadd.f32 %v5159, %v5169
        %v5175 = vadd.f32 %v5160, %v5169
        %v5176 = vadd.f32 %v5161, %v5169
        %v5177 = vadd.f32 %v5162, %v5169
        %v5178 = vadd.f32 %v5163, %v5169
        %5179 = vst.msk [vmem:[%s412] sm:$0xff] %vm439, %v5171
        %5180 = vst.msk [vmem:[%s412 + $0x8] sm:$0xff] %vm439, %v5172
        %5181 = vst.msk [vmem:[%s412 + $0x10] sm:$0xff] %vm439, %v5173
        %5182 = vst.msk [vmem:[%s412 + $0x18] sm:$0xff] %vm439, %v5174
        %5183 = vst.msk [vmem:[%s412 + $0x20] sm:$0xff] %vm439, %v5175
        %5184 = vst.msk [vmem:[%s412 + $0x28] sm:$0xff] %vm439, %v5176
        %5185 = vst.msk [vmem:[%s412 + $0x30] sm:$0xff] %vm439, %v5177
        %5186 = vst.msk [vmem:[%s412 + $0x38] sm:$0xff] %vm439, %v5178
        %s5187 = sand.u32 %s210, 1
        %s5188 = scalar_lea.sflag [#allocation4], %s5187
        %s5189 = sand.u32 %s210, 1
        %s5190 = smul.addr %s5189, 64
        %s5191 = scalar_lea.vmem [#allocation13], %s5190
        // Predicated region
        $region73: #{tpu_custom_call.1} parent=47 // pred_check
          %p5192 = pneg %p220
        $region74: #{tpu_custom_call.1} parent=47 // pred_check_branch
          %5194 = sbr.rel (%p5192) target = $region76
        $region75: #{tpu_custom_call.1} parent=47 // pred_region
          %s5195 = smul.u32 8, %s34
          %s5197 = ssub.s32 1024, 1024
          %5198 = vsyncadd %s5188, %s5197
          %s5199 = smul.addr %s33, 8
          %s5200 = sadd.s32 %s5195, %s5199
          %s5201 = smul.addr %s5200, 128
          %s5202 = scalar_lea.hbm %s7, %s5201
          %s5203 = sshll.u32 %s5191, 4
          %s5204 = int_to_ptr.vmem [resolvable:$true] %s5203
          %5209 = dma.vmem_to_hbm [thread:$0]  %s5204, 1024, %s5202, %s5188, 128, 128, 8
        $region76: #{tpu_custom_call.1} parent=47 // pred_fallthru
          _
      $region48: #{tpu_custom_call.1} parent=5 // pred_fallthru
        _
      %p5210 = scmp.le.s32.totalorder 2, %s24
      // Predicated region
      $region77: #{tpu_custom_call.1} parent=5 // pred_check
        %p5211 = pneg %p5210
      $region78: #{tpu_custom_call.1} parent=5 // pred_check_branch
        %5213 = sbr.rel (%p5211) target = $region80
      $region79: #{tpu_custom_call.1} parent=5 // pred_region
        %s5214 = ssub.s32 %s24, 2
        // Predicated region
        $region81: #{tpu_custom_call.1} parent=79 // pred_check
          %p5215 = pneg %p226
        $region82: #{tpu_custom_call.1} parent=79 // pred_check_branch
          %5217 = sbr.rel (%p5215) target = $region84
        $region83: #{tpu_custom_call.1} parent=79 // pred_region
          %s5218 = sand.u32 %s211, 1
          %s5219 = scalar_lea.sflag [#allocation4], %s5218
          %s5220 = sand.u32 %s211, 1
          %s5221 = smul.addr %s5220, 64
          %s5222 = scalar_lea.vmem [#allocation13], %s5221
          %5223 = dma.done %s5219, 1024
        $region84: #{tpu_custom_call.1} parent=79 // pred_fallthru
          _
      $region80: #{tpu_custom_call.1} parent=5 // pred_fallthru
        _
    $region6: #{tpu_custom_call.1} parent=1 // loop_footer
      %s28 = sadd.s32 1, %s24
    $region7: #{tpu_custom_call.1} parent=1 // loop_footer_branch
      %23 = sbr.rel target = $region3
    $region8: #{tpu_custom_call.1} parent=1 // loop_exit
      _
    %5224 = vsyncpa [#allocation3], 1
    %s5225 = scalar_lea.sflag [#allocation3], 1
    %5226 = vsyncpa %s5225, 1
    %5227 = vsyncpa [#allocation6], 1
    %s5228 = scalar_lea.sflag [#allocation6], 1
    %5229 = vsyncpa %s5228, 1
    %5230 = vsyncpa [#allocation9], 1
    %5231 = vsyncpa [#allocation12], 1
    %5232 = vsyncpa [#allocation4], 1
    %s5233 = scalar_lea.sflag [#allocation4], 1
    %5234 = vsyncpa %s5233, 1

</llo_original>
